<compile_context>
chip_gen: v7x
topology: tpu7x:2x2x1
jax: 0.10.0
libtpu: 0.0.40
codegen_flags: <defaults>
</compile_context>

<pallas_src>
import functools
import math

import jax
import jax.numpy as jnp
from jax.experimental import pallas as pl
from jax.experimental.pallas import tpu as pltpu

DTYPE = jnp.bfloat16            # storage dtype for weights / activations
VMEM_LIMIT = 48 * 1024 * 1024   # fits v7x (64 MiB physical), >> v5e's 16 MiB default


def _round_up(x, m):
    return (x + m - 1) // m * m


def _pick_batch_block(b, max_blk=8):
    """Largest divisor of b that is <= max_blk (batch elements per grid step)."""
    blk = min(b, max_blk)
    while b % blk:
        blk -= 1
    return blk


# ------------------------- mapping linear (x @ W + b) ------------------------

def _linear_bias_kernel(x_ref, w_ref, b_ref, o_ref):
    acc = jnp.dot(x_ref[...], w_ref[...], preferred_element_type=jnp.float32)
    o_ref[...] = (acc + b_ref[...].astype(jnp.float32)).astype(o_ref.dtype)


def linear_bias(x, w, b, *, block_n=512):
    """x:(M,K) @ w:(K,N) + b:(N,). Output columns tiled 512-wide (padded)."""
    M, K = x.shape
    N = w.shape[1]
    bn = block_n if N >= block_n else _round_up(N, 128)
    n_pad = _round_up(N, bn)
    if n_pad != N:                              # pad columns; never one giant block
        w = jnp.pad(w, ((0, 0), (0, n_pad - N)))
        b = jnp.pad(b, ((0, n_pad - N),))
    out = pl.pallas_call(
        _linear_bias_kernel,
        out_shape=jax.ShapeDtypeStruct((M, n_pad), x.dtype),
        grid=(n_pad // bn,),
        in_specs=[
            pl.BlockSpec((M, K), lambda j: (0, 0),
                         pipeline_mode=pl.Buffered(1)),   # grid-invariant input
            pl.BlockSpec((K, bn), lambda j: (0, j)),       # streamed weight tiles
            pl.BlockSpec((1, bn), lambda j: (0, j)),
        ],
        out_specs=pl.BlockSpec((M, bn), lambda j: (0, j)),
        compiler_params=pltpu.CompilerParams(
            dimension_semantics=("parallel",),
            vmem_limit_bytes=VMEM_LIMIT),
    )(x, w, b.reshape(1, n_pad))
    return out[:, :N] if n_pad != N else out


# ------------------------- fused transformer layer ---------------------------

def _layer_kernel(h_ref, ln1g_ref, ln1b_ref, wqkv_ref, wo_ref, bo_ref,
                  ln2g_ref, ln2b_ref, w1_ref, b1_ref, w2_ref, b2_ref,
                  o_ref, attn_scr, *, num_heads, scale, eps):
    Bblk, N, D = h_ref.shape
    Dh = D // num_heads
    M = Bblk * N
    wdt = wqkv_ref.dtype                          # bf16: MXU input dtype

    # fp32 working copy, flattened to (Bblk*N, D) so dense matmuls get a big M.
    h = h_ref[...].astype(jnp.float32).reshape(M, D)

    def layer_norm(x, g_ref, b_ref):
        mu = jnp.mean(x, axis=-1, keepdims=True)
        var = jnp.mean((x - mu) ** 2, axis=-1, keepdims=True)   # biased (torch)
        y = (x - mu) * jax.lax.rsqrt(var + eps)
        return y * g_ref[...].astype(jnp.float32) + b_ref[...].astype(jnp.float32)

    def mm(a_f32, w_ref):                         # bf16 MXU inputs, fp32 accumulate
        return jnp.dot(a_f32.astype(wdt), w_ref[...],
                       preferred_element_type=jnp.float32)

    # --- attention block: h = h + proj(attn(LN1(h))) -------------------------
    hn = layer_norm(h, ln1g_ref, ln1b_ref)
    qkv = mm(hn, wqkv_ref)                        # (M, 3D), fused q|k|v (no bias)
    q = (qkv[:, :D] * scale).reshape(Bblk, N, D)  # fold 1/sqrt(Dh) into q once
    k = qkv[:, D:2 * D].reshape(Bblk, N, D)
    v = qkv[:, 2 * D:].reshape(Bblk, N, D)

    for hd in range(num_heads):                   # static unroll over heads
        sl = slice(hd * Dh, (hd + 1) * Dh)
        qh = q[:, :, sl].astype(wdt)              # (Bblk, N, Dh)
        kh = k[:, :, sl].astype(wdt)
        vh = v[:, :, sl].astype(wdt)
        s = jnp.einsum('bnd,bmd->bnm', qh, kh,    # batched over Bblk
                       preferred_element_type=jnp.float32)
        s = s - jnp.max(s, axis=-1, keepdims=True)
        p = jnp.exp(s)
        p = p * pl.reciprocal(jnp.sum(p, axis=-1, keepdims=True), approx=True)
        oh = jnp.einsum('bnm,bmd->bnd', p.astype(wdt), vh,
                        preferred_element_type=jnp.float32)
        attn_scr[:, :, sl] = oh                   # in-place head write, no concat

    attn = attn_scr[...].reshape(M, D)            # head-major columns (== torch)
    h = h + mm(attn, wo_ref) + bo_ref[...].astype(jnp.float32)   # residual 1

    # --- MLP block: h = h + fc2(relu(fc1(LN2(h)))) ----------------------------
    hn2 = layer_norm(h, ln2g_ref, ln2b_ref)
    m = mm(hn2, w1_ref) + b1_ref[...].astype(jnp.float32)
    m = jnp.maximum(m, 0.0)
    m = mm(m, w2_ref) + b2_ref[...].astype(jnp.float32)
    o_ref[...] = (h + m).reshape(Bblk, N, D).astype(o_ref.dtype)  # residual 2


def transformer_layer(h, lp, *, num_heads, eps=1e-5, max_batch_block=8):
    B, N, D = h.shape
    Dh = D // num_heads
    Hmlp = lp["w1"].shape[1]
    bblk = _pick_batch_block(B, max_batch_block)
    # VMEM budget (single-buffered weights): ~ (3D^2 + D^2 + 2*D*Hmlp) bf16
    # + 2x (bblk,N,D) act blocks + fp32 intermediates; bblk<=8 keeps this well
    # under VMEM_LIMIT for D up to ~1024.
    # TODO(synk): for non-demo configs pad D to a multiple of 128 and N to a
    # multiple of 8 (lane-dense output blocks, no masked stores).

    kernel = functools.partial(_layer_kernel, num_heads=num_heads,
                               scale=Dh ** -0.5, eps=eps)

    def rep(r, c):   # grid-invariant operand: resident, single-buffered
        return pl.BlockSpec((r, c), lambda i: (0, 0),
                            pipeline_mode=pl.Buffered(1))

    act_spec = pl.BlockSpec((bblk, N, D), lambda i: (i, 0, 0))
    return pl.pallas_call(
        kernel,
        out_shape=jax.ShapeDtypeStruct((B, N, D), h.dtype),
        grid=(B // bblk,),
        in_specs=[
            act_spec,                     # activations (Bblk, N, D)
            rep(1, D), rep(1, D),         # ln1 gamma / beta
            rep(D, 3 * D),                # fused wqkv (bias=False)
            rep(D, D), rep(1, D),         # wo, bo
            rep(1, D), rep(1, D),         # ln2 gamma / beta
            rep(D, Hmlp), rep(1, Hmlp),   # mlp fc1
            rep(Hmlp, D), rep(1, D),      # mlp fc2
        ],
        out_specs=act_spec,
        scratch_shapes=[pltpu.VMEM((bblk, N, D), jnp.float32)],  # attn head acc
        compiler_params=pltpu.CompilerParams(
            dimension_semantics=("parallel",),   # megacore sharding on v7x
            vmem_limit_bytes=VMEM_LIMIT),
    )(h,
      lp["ln1_g"].reshape(1, D), lp["ln1_b"].reshape(1, D),
      lp["wqkv"], lp["wo"], lp["bo"].reshape(1, D),
      lp["ln2_g"].reshape(1, D), lp["ln2_b"].reshape(1, D),
      lp["w1"], lp["b1"].reshape(1, Hmlp),
      lp["w2"], lp["b2"].reshape(1, D))


# ------------------------------ parameters ----------------------------------

def _linear_init(key, fan_in, fan_out, bias=True):
    k1, k2 = jax.random.split(key)
    bound = 1.0 / math.sqrt(fan_in)
    w = jax.random.uniform(k1, (fan_in, fan_out), jnp.float32, -bound, bound)
    b = (jax.random.uniform(k2, (fan_out,), jnp.float32, -bound, bound)
         if bias else jnp.zeros((fan_out,), jnp.float32))
    return w, b


def init_params(key, dim_clip, dim_embedding, prefix_length, clip_length,
                num_layers, num_heads, mlp_ratio=2.0):
    D = dim_embedding
    Hmlp = int(D * mlp_ratio)
    kmap, kconst, *klayers = jax.random.split(key, 2 + num_layers)

    map_w, map_b = _linear_init(kmap, dim_clip, clip_length * D, bias=True)
    prefix_const = jax.random.normal(kconst, (prefix_length, D), jnp.float32)

    layers = []
    for kl in klayers:
        kq, kkv, ko, k1, k2 = jax.random.split(kl, 5)
        wq, _ = _linear_init(kq, D, D, bias=False)          # to_queries (no bias)
        wkv, _ = _linear_init(kkv, D, 2 * D, bias=False)    # to_keys_values (no bias)
        wo, bo = _linear_init(ko, D, D, bias=True)          # project
        w1, b1 = _linear_init(k1, D, Hmlp, bias=True)       # mlp fc1
        w2, b2 = _linear_init(k2, Hmlp, D, bias=True)       # mlp fc2
        layers.append(dict(
            ln1_g=jnp.ones((D,), jnp.float32), ln1_b=jnp.zeros((D,), jnp.float32),
            ln2_g=jnp.ones((D,), jnp.float32), ln2_b=jnp.zeros((D,), jnp.float32),
            wqkv=jnp.concatenate([wq, wkv], axis=1),        # fused (D, 3D)
            wo=wo, bo=bo, w1=w1, b1=b1, w2=w2, b2=b2,
        ))
    params = dict(map_w=map_w, map_b=map_b, prefix_const=prefix_const,
                  layers=layers)
    # bf16 storage (fp32 accumulation / LN / softmax happen inside kernels).
    return jax.tree.map(lambda a: a.astype(DTYPE), params)


# ------------------------------- forward ------------------------------------

def transformer_mapper_forward(x, params, *, clip_length, num_heads):
    B = x.shape[0]
    D = params["prefix_const"].shape[1]

    # self.linear(x).view(B, clip_length, -1)
    mapped = linear_bias(x, params["map_w"], params["map_b"])
    mapped = mapped.reshape(B, clip_length, D)

    # prefix_const expand + cat
    prefix = jnp.broadcast_to(params["prefix_const"][None],
                              (B,) + params["prefix_const"].shape)
    h = jnp.concatenate([mapped, prefix.astype(mapped.dtype)], axis=1)  # (B,N,D)

    # transformer: one fused Pallas kernel per layer
    for lp in params["layers"]:
        h = transformer_layer(h, lp, num_heads=num_heads)

    # out = transformer(prefix)[:, clip_length:]
    return h[:, clip_length:]


# -------------------------------- main ---------------------------------------

if __name__ == "__main__":
    B = 2
    dim_clip = 64
    dim_embedding = 32
    prefix_length = 8
    clip_length = 8
    num_layers = 2       # module default is 8; 2 layers keep the demo small
    num_heads = 8        # fixed by TransformerMapper (Transformer(dim, 8, L))

    key = jax.random.PRNGKey(0)
    kp, kx = jax.random.split(key)
    params = init_params(kp, dim_clip, dim_embedding, prefix_length,
                         clip_length, num_layers, num_heads)
    x = jax.random.normal(kx, (B, dim_clip), jnp.float32).astype(DTYPE)

    fwd = jax.jit(functools.partial(transformer_mapper_forward,
                                    clip_length=clip_length,
                                    num_heads=num_heads))
    out = fwd(x, params)
    jax.block_until_ready(out)
    assert out.shape == (B, prefix_length, dim_embedding), out.shape
    print("KERNEL_OK")
</pallas_src>

<mosaic_0001>
module attributes {stable_mosaic.version = 11 : i64} {
  func.func @_linear_bias_kernel(%arg0: i32, %arg1: memref<2x64xbf16, #tpu.memory_space<vmem>>, %arg2: memref<64x256xbf16, #tpu.memory_space<vmem>>, %arg3: memref<1x256xbf16, #tpu.memory_space<vmem>>, %arg4: memref<2x256xbf16, #tpu.memory_space<vmem>>) attributes {dimension_semantics = [#tpu.dimension_semantics<parallel>], iteration_bounds = array<i64: 1>, scalar_prefetch = 0 : i64, scratch_operands = 0 : i64, tpu.core_type = #tpu.core_type<tc>, window_params = [{pipeline_mode = #tpu.pipeline_mode<synchronous>, transform_indices = @transform_0, window_bounds = array<i64: 2, 64>}, {transform_indices = @transform_1, window_bounds = array<i64: 64, 256>}, {transform_indices = @transform_2, window_bounds = array<i64: 1, 256>}, {transform_indices = @transform_3, window_bounds = array<i64: 2, 256>}]} {
    %c0 = arith.constant 0 : index
    %c0_0 = arith.constant 0 : index
    %0 = vector.load %arg1[%c0, %c0_0] : memref<2x64xbf16, #tpu.memory_space<vmem>>, vector<2x64xbf16>
    %c0_1 = arith.constant 0 : index
    %c0_2 = arith.constant 0 : index
    %1 = vector.load %arg2[%c0_1, %c0_2] : memref<64x256xbf16, #tpu.memory_space<vmem>>, vector<64x256xbf16>
    %cst = arith.constant dense<0.000000e+00> : vector<2x256xf32>
    %2 = tpu.matmul %0, %1, %cst {dimension_numbers = #tpu.dot_dimension_numbers<[1], [0], [0], [1], [0, 0, 1, 1], [], []>} : vector<2x64xbf16>, vector<64x256xbf16>, vector<2x256xf32> -> vector<2x256xf32>
    %c0_3 = arith.constant 0 : index
    %c0_4 = arith.constant 0 : index
    %3 = vector.load %arg3[%c0_3, %c0_4] : memref<1x256xbf16, #tpu.memory_space<vmem>>, vector<1x256xbf16>
    %4 = arith.extf %3 : vector<1x256xbf16> to vector<1x256xf32>
    %5 = vector.broadcast %4 : vector<1x256xf32> to vector<2x256xf32>
    %6 = arith.addf %2, %5 : vector<2x256xf32>
    %7 = arith.truncf %6 : vector<2x256xf32> to vector<2x256xbf16>
    %c0_5 = arith.constant 0 : index
    %c0_6 = arith.constant 0 : index
    %8 = vector.load %arg4[%c0_5, %c0_6] : memref<2x256xbf16, #tpu.memory_space<vmem>>, vector<2x256xbf16>
    tpu.vector_store %arg4[%c0_5, %c0_6], %7 {strides = array<i32>} : memref<2x256xbf16, #tpu.memory_space<vmem>>, vector<2x256xbf16>,
    return
  }
  func.func @transform_0(%arg0: i32) -> (i32, i32) {
    %c0_i32 = arith.constant 0 : i32
    %c0_i32_0 = arith.constant 0 : i32
    %c0_i32_1 = arith.constant 0 : i32
    return %c0_i32, %c0_i32_0 : i32, i32
  }
  func.func @transform_1(%arg0: i32) -> (i32, i32) {
    %c0_i32 = arith.constant 0 : i32
    %c0_i32_0 = arith.constant 0 : i32
    return %c0_i32, %arg0 : i32, i32
  }
  func.func @transform_2(%arg0: i32) -> (i32, i32) {
    %c0_i32 = arith.constant 0 : i32
    %c0_i32_0 = arith.constant 0 : i32
    return %c0_i32, %arg0 : i32, i32
  }
  func.func @transform_3(%arg0: i32) -> (i32, i32) {
    %c0_i32 = arith.constant 0 : i32
    %c0_i32_0 = arith.constant 0 : i32
    return %c0_i32, %arg0 : i32, i32
  }
}

module attributes {stable_mosaic.version = 11 : i64} {
  func.func @_layer_kernel(%arg0: i32, %arg1: memref<2x16x32xbf16, #tpu.memory_space<vmem>>, %arg2: memref<1x32xbf16, #tpu.memory_space<vmem>>, %arg3: memref<1x32xbf16, #tpu.memory_space<vmem>>, %arg4: memref<32x96xbf16, #tpu.memory_space<vmem>>, %arg5: memref<32x32xbf16, #tpu.memory_space<vmem>>, %arg6: memref<1x32xbf16, #tpu.memory_space<vmem>>, %arg7: memref<1x32xbf16, #tpu.memory_space<vmem>>, %arg8: memref<1x32xbf16, #tpu.memory_space<vmem>>, %arg9: memref<32x64xbf16, #tpu.memory_space<vmem>>, %arg10: memref<1x64xbf16, #tpu.memory_space<vmem>>, %arg11: memref<64x32xbf16, #tpu.memory_space<vmem>>, %arg12: memref<1x32xbf16, #tpu.memory_space<vmem>>, %arg13: memref<2x16x32xbf16, #tpu.memory_space<vmem>>, %arg14: memref<2x16x32xf32, #tpu.memory_space<vmem>>) attributes {dimension_semantics = [#tpu.dimension_semantics<parallel>], iteration_bounds = array<i64: 1>, scalar_prefetch = 0 : i64, scratch_operands = 1 : i64, tpu.core_type = #tpu.core_type<tc>, window_params = [{transform_indices = @transform_0, window_bounds = array<i64: 2, 16, 32>}, {pipeline_mode = #tpu.pipeline_mode<synchronous>, transform_indices = @transform_1, window_bounds = array<i64: 1, 32>}, {pipeline_mode = #tpu.pipeline_mode<synchronous>, transform_indices = @transform_2, window_bounds = array<i64: 1, 32>}, {pipeline_mode = #tpu.pipeline_mode<synchronous>, transform_indices = @transform_3, window_bounds = array<i64: 32, 96>}, {pipeline_mode = #tpu.pipeline_mode<synchronous>, transform_indices = @transform_4, window_bounds = array<i64: 32, 32>}, {pipeline_mode = #tpu.pipeline_mode<synchronous>, transform_indices = @transform_5, window_bounds = array<i64: 1, 32>}, {pipeline_mode = #tpu.pipeline_mode<synchronous>, transform_indices = @transform_6, window_bounds = array<i64: 1, 32>}, {pipeline_mode = #tpu.pipeline_mode<synchronous>, transform_indices = @transform_7, window_bounds = array<i64: 1, 32>}, {pipeline_mode = #tpu.pipeline_mode<synchronous>, transform_indices = @transform_8, window_bounds = array<i64: 32, 64>}, {pipeline_mode = #tpu.pipeline_mode<synchronous>, transform_indices = @transform_9, window_bounds = array<i64: 1, 64>}, {pipeline_mode = #tpu.pipeline_mode<synchronous>, transform_indices = @transform_10, window_bounds = array<i64: 64, 32>}, {pipeline_mode = #tpu.pipeline_mode<synchronous>, transform_indices = @transform_11, window_bounds = array<i64: 1, 32>}, {transform_indices = @transform_12, window_bounds = array<i64: 2, 16, 32>}]} {
    %c0 = arith.constant 0 : index
    %c0_0 = arith.constant 0 : index
    %c0_1 = arith.constant 0 : index
    %0 = vector.load %arg1[%c0, %c0_0, %c0_1] : memref<2x16x32xbf16, #tpu.memory_space<vmem>>, vector<2x16x32xbf16>
    %1 = arith.extf %0 : vector<2x16x32xbf16> to vector<2x16x32xf32>
    %2 = vector.shape_cast %1 : vector<2x16x32xf32> to vector<32x32xf32>
    %cst = arith.constant dense<0.000000e+00> : vector<32xf32>
    %3 = vector.multi_reduction <add>, %2, %cst [1] : vector<32x32xf32> to vector<32xf32>
    %4 = vector.shape_cast %3 : vector<32xf32> to vector<32x1xf32>
    %cst_2 = arith.constant 3.200000e+01 : f32
    %5 = vector.broadcast %cst_2 : f32 to vector<32x1xf32>
    %6 = arith.divf %4, %5 : vector<32x1xf32>
    %7 = vector.broadcast %6 : vector<32x1xf32> to vector<32x32xf32>
    %8 = arith.subf %2, %7 : vector<32x32xf32>
    %9 = arith.mulf %8, %8 : vector<32x32xf32>
    %cst_3 = arith.constant dense<0.000000e+00> : vector<32xf32>
    %10 = vector.multi_reduction <add>, %9, %cst_3 [1] : vector<32x32xf32> to vector<32xf32>
    %11 = vector.shape_cast %10 : vector<32xf32> to vector<32x1xf32>
    %cst_4 = arith.constant 3.200000e+01 : f32
    %12 = vector.broadcast %cst_4 : f32 to vector<32x1xf32>
    %13 = arith.divf %11, %12 : vector<32x1xf32>
    %14 = vector.broadcast %6 : vector<32x1xf32> to vector<32x32xf32>
    %15 = arith.subf %2, %14 : vector<32x32xf32>
    %cst_5 = arith.constant 9.99999974E-6 : f32
    %16 = vector.broadcast %cst_5 : f32 to vector<32x1xf32>
    %17 = arith.addf %13, %16 : vector<32x1xf32>
    %18 = math.rsqrt %17 : vector<32x1xf32>
    %19 = vector.broadcast %18 : vector<32x1xf32> to vector<32x32xf32>
    %20 = arith.mulf %15, %19 : vector<32x32xf32>
    %c0_6 = arith.constant 0 : index
    %c0_7 = arith.constant 0 : index
    %21 = vector.load %arg2[%c0_6, %c0_7] : memref<1x32xbf16, #tpu.memory_space<vmem>>, vector<1x32xbf16>
    %22 = arith.extf %21 : vector<1x32xbf16> to vector<1x32xf32>
    %23 = vector.broadcast %22 : vector<1x32xf32> to vector<32x32xf32>
    %24 = arith.mulf %20, %23 : vector<32x32xf32>
    %c0_8 = arith.constant 0 : index
    %c0_9 = arith.constant 0 : index
    %25 = vector.load %arg3[%c0_8, %c0_9] : memref<1x32xbf16, #tpu.memory_space<vmem>>, vector<1x32xbf16>
    %26 = arith.extf %25 : vector<1x32xbf16> to vector<1x32xf32>
    %27 = vector.broadcast %26 : vector<1x32xf32> to vector<32x32xf32>
    %28 = arith.addf %24, %27 : vector<32x32xf32>
    %29 = arith.truncf %28 : vector<32x32xf32> to vector<32x32xbf16>
    %c0_10 = arith.constant 0 : index
    %c0_11 = arith.constant 0 : index
    %30 = vector.load %arg4[%c0_10, %c0_11] : memref<32x96xbf16, #tpu.memory_space<vmem>>, vector<32x96xbf16>
    %cst_12 = arith.constant dense<0.000000e+00> : vector<32x96xf32>
    %31 = tpu.matmul %29, %30, %cst_12 {dimension_numbers = #tpu.dot_dimension_numbers<[1], [0], [0], [1], [0, 0, 1, 1], [], []>} : vector<32x32xbf16>, vector<32x96xbf16>, vector<32x96xf32> -> vector<32x96xf32>
    %32 = vector.extract_strided_slice %31 {offsets = [0, 0], sizes = [32, 32], strides = [1, 1]} : vector<32x96xf32> to vector<32x32xf32>
    %cst_13 = arith.constant 5.000000e-01 : f32
    %33 = vector.broadcast %cst_13 : f32 to vector<32x32xf32>
    %34 = arith.mulf %32, %33 : vector<32x32xf32>
    %35 = vector.shape_cast %34 : vector<32x32xf32> to vector<2x16x32xf32>
    %36 = vector.extract_strided_slice %31 {offsets = [0, 32], sizes = [32, 32], strides = [1, 1]} : vector<32x96xf32> to vector<32x32xf32>
    %37 = vector.shape_cast %36 : vector<32x32xf32> to vector<2x16x32xf32>
    %38 = vector.extract_strided_slice %31 {offsets = [0, 64], sizes = [32, 32], strides = [1, 1]} : vector<32x96xf32> to vector<32x32xf32>
    %39 = vector.shape_cast %38 : vector<32x32xf32> to vector<2x16x32xf32>
    %40 = vector.extract_strided_slice %35 {offsets = [0, 0, 0], sizes = [2, 16, 4], strides = [1, 1, 1]} : vector<2x16x32xf32> to vector<2x16x4xf32>
    %41 = arith.truncf %40 : vector<2x16x4xf32> to vector<2x16x4xbf16>
    %42 = vector.extract_strided_slice %37 {offsets = [0, 0, 0], sizes = [2, 16, 4], strides = [1, 1, 1]} : vector<2x16x32xf32> to vector<2x16x4xf32>
    %43 = arith.truncf %42 : vector<2x16x4xf32> to vector<2x16x4xbf16>
    %44 = vector.extract_strided_slice %39 {offsets = [0, 0, 0], sizes = [2, 16, 4], strides = [1, 1, 1]} : vector<2x16x32xf32> to vector<2x16x4xf32>
    %45 = arith.truncf %44 : vector<2x16x4xf32> to vector<2x16x4xbf16>
    "tpu.trace_start"() <{level = 10 : i32, message = "bnd,bmd->bnm"}> : () -> ()
    %cst_14 = arith.constant dense<0.000000e+00> : vector<2x16x16xf32>
    %46 = tpu.matmul %41, %43, %cst_14 {dimension_numbers = #tpu.dot_dimension_numbers<[2], [2], [1], [1], [0, 0, 0, 1, 1, 1], [0], [0]>} : vector<2x16x4xbf16>, vector<2x16x4xbf16>, vector<2x16x16xf32> -> vector<2x16x16xf32>
    "tpu.trace_stop"() : () -> ()
    %cst_15 = arith.constant dense<0xFF800000> : vector<2x16xf32>
    %47 = vector.multi_reduction <maximumf>, %46, %cst_15 [2] : vector<2x16x16xf32> to vector<2x16xf32>
    %48 = vector.shape_cast %47 : vector<2x16xf32> to vector<2x16x1xf32>
    %49 = vector.broadcast %48 : vector<2x16x1xf32> to vector<2x16x16xf32>
    %50 = arith.subf %46, %49 : vector<2x16x16xf32>
    %51 = math.exp %50 : vector<2x16x16xf32>
    %cst_16 = arith.constant dense<0.000000e+00> : vector<2x16xf32>
    %52 = vector.multi_reduction <add>, %51, %cst_16 [2] : vector<2x16x16xf32> to vector<2x16xf32>
    %53 = vector.shape_cast %52 : vector<2x16xf32> to vector<2x16x1xf32>
    %54 = tpu.reciprocal %53 {approx = true} : vector<2x16x1xf32> -> vector<2x16x1xf32>
    %55 = vector.broadcast %54 : vector<2x16x1xf32> to vector<2x16x16xf32>
    %56 = arith.mulf %51, %55 : vector<2x16x16xf32>
    %57 = arith.truncf %56 : vector<2x16x16xf32> to vector<2x16x16xbf16>
    "tpu.trace_start"() <{level = 10 : i32, message = "bnm,bmd->bnd"}> : () -> ()
    %cst_17 = arith.constant dense<0.000000e+00> : vector<2x16x4xf32>
    %58 = tpu.matmul %57, %45, %cst_17 {dimension_numbers = #tpu.dot_dimension_numbers<[2], [1], [1], [2], [0, 0, 0, 1, 1, 2], [0], [0]>} : vector<2x16x16xbf16>, vector<2x16x4xbf16>, vector<2x16x4xf32> -> vector<2x16x4xf32>
    "tpu.trace_stop"() : () -> ()
    %c0_18 = arith.constant 0 : index
    %c0_19 = arith.constant 0 : index
    %c0_20 = arith.constant 0 : index
    %59 = vector.load %arg14[%c0_18, %c0_19, %c0_20] : memref<2x16x32xf32, #tpu.memory_space<vmem>>, vector<2x16x4xf32>
    tpu.vector_store %arg14[%c0_18, %c0_19, %c0_20], %58 {strides = array<i32>} : memref<2x16x32xf32, #tpu.memory_space<vmem>>, vector<2x16x4xf32>,
    %60 = vector.extract_strided_slice %35 {offsets = [0, 0, 4], sizes = [2, 16, 4], strides = [1, 1, 1]} : vector<2x16x32xf32> to vector<2x16x4xf32>
    %61 = arith.truncf %60 : vector<2x16x4xf32> to vector<2x16x4xbf16>
    %62 = vector.extract_strided_slice %37 {offsets = [0, 0, 4], sizes = [2, 16, 4], strides = [1, 1, 1]} : vector<2x16x32xf32> to vector<2x16x4xf32>
    %63 = arith.truncf %62 : vector<2x16x4xf32> to vector<2x16x4xbf16>
    %64 = vector.extract_strided_slice %39 {offsets = [0, 0, 4], sizes = [2, 16, 4], strides = [1, 1, 1]} : vector<2x16x32xf32> to vector<2x16x4xf32>
    %65 = arith.truncf %64 : vector<2x16x4xf32> to vector<2x16x4xbf16>
    "tpu.trace_start"() <{level = 10 : i32, message = "bnd,bmd->bnm"}> : () -> ()
    %cst_21 = arith.constant dense<0.000000e+00> : vector<2x16x16xf32>
    %66 = tpu.matmul %61, %63, %cst_21 {dimension_numbers = #tpu.dot_dimension_numbers<[2], [2], [1], [1], [0, 0, 0, 1, 1, 1], [0], [0]>} : vector<2x16x4xbf16>, vector<2x16x4xbf16>, vector<2x16x16xf32> -> vector<2x16x16xf32>
    "tpu.trace_stop"() : () -> ()
    %cst_22 = arith.constant dense<0xFF800000> : vector<2x16xf32>
    %67 = vector.multi_reduction <maximumf>, %66, %cst_22 [2] : vector<2x16x16xf32> to vector<2x16xf32>
    %68 = vector.shape_cast %67 : vector<2x16xf32> to vector<2x16x1xf32>
    %69 = vector.broadcast %68 : vector<2x16x1xf32> to vector<2x16x16xf32>
    %70 = arith.subf %66, %69 : vector<2x16x16xf32>
    %71 = math.exp %70 : vector<2x16x16xf32>
    %cst_23 = arith.constant dense<0.000000e+00> : vector<2x16xf32>
    %72 = vector.multi_reduction <add>, %71, %cst_23 [2] : vector<2x16x16xf32> to vector<2x16xf32>
    %73 = vector.shape_cast %72 : vector<2x16xf32> to vector<2x16x1xf32>
    %74 = tpu.reciprocal %73 {approx = true} : vector<2x16x1xf32> -> vector<2x16x1xf32>
    %75 = vector.broadcast %74 : vector<2x16x1xf32> to vector<2x16x16xf32>
    %76 = arith.mulf %71, %75 : vector<2x16x16xf32>
    %77 = arith.truncf %76 : vector<2x16x16xf32> to vector<2x16x16xbf16>
    "tpu.trace_start"() <{level = 10 : i32, message = "bnm,bmd->bnd"}> : () -> ()
    %cst_24 = arith.constant dense<0.000000e+00> : vector<2x16x4xf32>
    %78 = tpu.matmul %77, %65, %cst_24 {dimension_numbers = #tpu.dot_dimension_numbers<[2], [1], [1], [2], [0, 0, 0, 1, 1, 2], [0], [0]>} : vector<2x16x16xbf16>, vector<2x16x4xbf16>, vector<2x16x4xf32> -> vector<2x16x4xf32>
    "tpu.trace_stop"() : () -> ()
    %c0_25 = arith.constant 0 : index
    %c0_26 = arith.constant 0 : index
    %c4 = arith.constant 4 : index
    %79 = vector.load %arg14[%c0_25, %c0_26, %c4] : memref<2x16x32xf32, #tpu.memory_space<vmem>>, vector<2x16x4xf32>
    tpu.vector_store %arg14[%c0_25, %c0_26, %c4], %78 {strides = array<i32>} : memref<2x16x32xf32, #tpu.memory_space<vmem>>, vector<2x16x4xf32>,
    %80 = vector.extract_strided_slice %35 {offsets = [0, 0, 8], sizes = [2, 16, 4], strides = [1, 1, 1]} : vector<2x16x32xf32> to vector<2x16x4xf32>
    %81 = arith.truncf %80 : vector<2x16x4xf32> to vector<2x16x4xbf16>
    %82 = vector.extract_strided_slice %37 {offsets = [0, 0, 8], sizes = [2, 16, 4], strides = [1, 1, 1]} : vector<2x16x32xf32> to vector<2x16x4xf32>
    %83 = arith.truncf %82 : vector<2x16x4xf32> to vector<2x16x4xbf16>
    %84 = vector.extract_strided_slice %39 {offsets = [0, 0, 8], sizes = [2, 16, 4], strides = [1, 1, 1]} : vector<2x16x32xf32> to vector<2x16x4xf32>
    %85 = arith.truncf %84 : vector<2x16x4xf32> to vector<2x16x4xbf16>
    "tpu.trace_start"() <{level = 10 : i32, message = "bnd,bmd->bnm"}> : () -> ()
    %cst_27 = arith.constant dense<0.000000e+00> : vector<2x16x16xf32>
    %86 = tpu.matmul %81, %83, %cst_27 {dimension_numbers = #tpu.dot_dimension_numbers<[2], [2], [1], [1], [0, 0, 0, 1, 1, 1], [0], [0]>} : vector<2x16x4xbf16>, vector<2x16x4xbf16>, vector<2x16x16xf32> -> vector<2x16x16xf32>
    "tpu.trace_stop"() : () -> ()
    %cst_28 = arith.constant dense<0xFF800000> : vector<2x16xf32>
    %87 = vector.multi_reduction <maximumf>, %86, %cst_28 [2] : vector<2x16x16xf32> to vector<2x16xf32>
    %88 = vector.shape_cast %87 : vector<2x16xf32> to vector<2x16x1xf32>
    %89 = vector.broadcast %88 : vector<2x16x1xf32> to vector<2x16x16xf32>
    %90 = arith.subf %86, %89 : vector<2x16x16xf32>
    %91 = math.exp %90 : vector<2x16x16xf32>
    %cst_29 = arith.constant dense<0.000000e+00> : vector<2x16xf32>
    %92 = vector.multi_reduction <add>, %91, %cst_29 [2] : vector<2x16x16xf32> to vector<2x16xf32>
    %93 = vector.shape_cast %92 : vector<2x16xf32> to vector<2x16x1xf32>
    %94 = tpu.reciprocal %93 {approx = true} : vector<2x16x1xf32> -> vector<2x16x1xf32>
    %95 = vector.broadcast %94 : vector<2x16x1xf32> to vector<2x16x16xf32>
    %96 = arith.mulf %91, %95 : vector<2x16x16xf32>
    %97 = arith.truncf %96 : vector<2x16x16xf32> to vector<2x16x16xbf16>
    "tpu.trace_start"() <{level = 10 : i32, message = "bnm,bmd->bnd"}> : () -> ()
    %cst_30 = arith.constant dense<0.000000e+00> : vector<2x16x4xf32>
    %98 = tpu.matmul %97, %85, %cst_30 {dimension_numbers = #tpu.dot_dimension_numbers<[2], [1], [1], [2], [0, 0, 0, 1, 1, 2], [0], [0]>} : vector<2x16x16xbf16>, vector<2x16x4xbf16>, vector<2x16x4xf32> -> vector<2x16x4xf32>
    "tpu.trace_stop"() : () -> ()
    %c0_31 = arith.constant 0 : index
    %c0_32 = arith.constant 0 : index
    %c8 = arith.constant 8 : index
    %99 = vector.load %arg14[%c0_31, %c0_32, %c8] : memref<2x16x32xf32, #tpu.memory_space<vmem>>, vector<2x16x4xf32>
    tpu.vector_store %arg14[%c0_31, %c0_32, %c8], %98 {strides = array<i32>} : memref<2x16x32xf32, #tpu.memory_space<vmem>>, vector<2x16x4xf32>,
    %100 = vector.extract_strided_slice %35 {offsets = [0, 0, 12], sizes = [2, 16, 4], strides = [1, 1, 1]} : vector<2x16x32xf32> to vector<2x16x4xf32>
    %101 = arith.truncf %100 : vector<2x16x4xf32> to vector<2x16x4xbf16>
    %102 = vector.extract_strided_slice %37 {offsets = [0, 0, 12], sizes = [2, 16, 4], strides = [1, 1, 1]} : vector<2x16x32xf32> to vector<2x16x4xf32>
    %103 = arith.truncf %102 : vector<2x16x4xf32> to vector<2x16x4xbf16>
    %104 = vector.extract_strided_slice %39 {offsets = [0, 0, 12], sizes = [2, 16, 4], strides = [1, 1, 1]} : vector<2x16x32xf32> to vector<2x16x4xf32>
    %105 = arith.truncf %104 : vector<2x16x4xf32> to vector<2x16x4xbf16>
    "tpu.trace_start"() <{level = 10 : i32, message = "bnd,bmd->bnm"}> : () -> ()
    %cst_33 = arith.constant dense<0.000000e+00> : vector<2x16x16xf32>
    %106 = tpu.matmul %101, %103, %cst_33 {dimension_numbers = #tpu.dot_dimension_numbers<[2], [2], [1], [1], [0, 0, 0, 1, 1, 1], [0], [0]>} : vector<2x16x4xbf16>, vector<2x16x4xbf16>, vector<2x16x16xf32> -> vector<2x16x16xf32>
    "tpu.trace_stop"() : () -> ()
    %cst_34 = arith.constant dense<0xFF800000> : vector<2x16xf32>
    %107 = vector.multi_reduction <maximumf>, %106, %cst_34 [2] : vector<2x16x16xf32> to vector<2x16xf32>
    %108 = vector.shape_cast %107 : vector<2x16xf32> to vector<2x16x1xf32>
    %109 = vector.broadcast %108 : vector<2x16x1xf32> to vector<2x16x16xf32>
    %110 = arith.subf %106, %109 : vector<2x16x16xf32>
    %111 = math.exp %110 : vector<2x16x16xf32>
    %cst_35 = arith.constant dense<0.000000e+00> : vector<2x16xf32>
    %112 = vector.multi_reduction <add>, %111, %cst_35 [2] : vector<2x16x16xf32> to vector<2x16xf32>
    %113 = vector.shape_cast %112 : vector<2x16xf32> to vector<2x16x1xf32>
    %114 = tpu.reciprocal %113 {approx = true} : vector<2x16x1xf32> -> vector<2x16x1xf32>
    %115 = vector.broadcast %114 : vector<2x16x1xf32> to vector<2x16x16xf32>
    %116 = arith.mulf %111, %115 : vector<2x16x16xf32>
    %117 = arith.truncf %116 : vector<2x16x16xf32> to vector<2x16x16xbf16>
    "tpu.trace_start"() <{level = 10 : i32, message = "bnm,bmd->bnd"}> : () -> ()
    %cst_36 = arith.constant dense<0.000000e+00> : vector<2x16x4xf32>
    %118 = tpu.matmul %117, %105, %cst_36 {dimension_numbers = #tpu.dot_dimension_numbers<[2], [1], [1], [2], [0, 0, 0, 1, 1, 2], [0], [0]>} : vector<2x16x16xbf16>, vector<2x16x4xbf16>, vector<2x16x4xf32> -> vector<2x16x4xf32>
    "tpu.trace_stop"() : () -> ()
    %c0_37 = arith.constant 0 : index
    %c0_38 = arith.constant 0 : index
    %c12 = arith.constant 12 : index
    %119 = vector.load %arg14[%c0_37, %c0_38, %c12] : memref<2x16x32xf32, #tpu.memory_space<vmem>>, vector<2x16x4xf32>
    tpu.vector_store %arg14[%c0_37, %c0_38, %c12], %118 {strides = array<i32>} : memref<2x16x32xf32, #tpu.memory_space<vmem>>, vector<2x16x4xf32>,
    %120 = vector.extract_strided_slice %35 {offsets = [0, 0, 16], sizes = [2, 16, 4], strides = [1, 1, 1]} : vector<2x16x32xf32> to vector<2x16x4xf32>
    %121 = arith.truncf %120 : vector<2x16x4xf32> to vector<2x16x4xbf16>
    %122 = vector.extract_strided_slice %37 {offsets = [0, 0, 16], sizes = [2, 16, 4], strides = [1, 1, 1]} : vector<2x16x32xf32> to vector<2x16x4xf32>
    %123 = arith.truncf %122 : vector<2x16x4xf32> to vector<2x16x4xbf16>
    %124 = vector.extract_strided_slice %39 {offsets = [0, 0, 16], sizes = [2, 16, 4], strides = [1, 1, 1]} : vector<2x16x32xf32> to vector<2x16x4xf32>
    %125 = arith.truncf %124 : vector<2x16x4xf32> to vector<2x16x4xbf16>
    "tpu.trace_start"() <{level = 10 : i32, message = "bnd,bmd->bnm"}> : () -> ()
    %cst_39 = arith.constant dense<0.000000e+00> : vector<2x16x16xf32>
    %126 = tpu.matmul %121, %123, %cst_39 {dimension_numbers = #tpu.dot_dimension_numbers<[2], [2], [1], [1], [0, 0, 0, 1, 1, 1], [0], [0]>} : vector<2x16x4xbf16>, vector<2x16x4xbf16>, vector<2x16x16xf32> -> vector<2x16x16xf32>
    "tpu.trace_stop"() : () -> ()
    %cst_40 = arith.constant dense<0xFF800000> : vector<2x16xf32>
    %127 = vector.multi_reduction <maximumf>, %126, %cst_40 [2] : vector<2x16x16xf32> to vector<2x16xf32>
    %128 = vector.shape_cast %127 : vector<2x16xf32> to vector<2x16x1xf32>
    %129 = vector.broadcast %128 : vector<2x16x1xf32> to vector<2x16x16xf32>
    %130 = arith.subf %126, %129 : vector<2x16x16xf32>
    %131 = math.exp %130 : vector<2x16x16xf32>
    %cst_41 = arith.constant dense<0.000000e+00> : vector<2x16xf32>
    %132 = vector.multi_reduction <add>, %131, %cst_41 [2] : vector<2x16x16xf32> to vector<2x16xf32>
    %133 = vector.shape_cast %132 : vector<2x16xf32> to vector<2x16x1xf32>
    %134 = tpu.reciprocal %133 {approx = true} : vector<2x16x1xf32> -> vector<2x16x1xf32>
    %135 = vector.broadcast %134 : vector<2x16x1xf32> to vector<2x16x16xf32>
    %136 = arith.mulf %131, %135 : vector<2x16x16xf32>
    %137 = arith.truncf %136 : vector<2x16x16xf32> to vector<2x16x16xbf16>
    "tpu.trace_start"() <{level = 10 : i32, message = "bnm,bmd->bnd"}> : () -> ()
    %cst_42 = arith.constant dense<0.000000e+00> : vector<2x16x4xf32>
    %138 = tpu.matmul %137, %125, %cst_42 {dimension_numbers = #tpu.dot_dimension_numbers<[2], [1], [1], [2], [0, 0, 0, 1, 1, 2], [0], [0]>} : vector<2x16x16xbf16>, vector<2x16x4xbf16>, vector<2x16x4xf32> -> vector<2x16x4xf32>
    "tpu.trace_stop"() : () -> ()
    %c0_43 = arith.constant 0 : index
    %c0_44 = arith.constant 0 : index
    %c16 = arith.constant 16 : index
    %139 = vector.load %arg14[%c0_43, %c0_44, %c16] : memref<2x16x32xf32, #tpu.memory_space<vmem>>, vector<2x16x4xf32>
    tpu.vector_store %arg14[%c0_43, %c0_44, %c16], %138 {strides = array<i32>} : memref<2x16x32xf32, #tpu.memory_space<vmem>>, vector<2x16x4xf32>,
    %140 = vector.extract_strided_slice %35 {offsets = [0, 0, 20], sizes = [2, 16, 4], strides = [1, 1, 1]} : vector<2x16x32xf32> to vector<2x16x4xf32>
    %141 = arith.truncf %140 : vector<2x16x4xf32> to vector<2x16x4xbf16>
    %142 = vector.extract_strided_slice %37 {offsets = [0, 0, 20], sizes = [2, 16, 4], strides = [1, 1, 1]} : vector<2x16x32xf32> to vector<2x16x4xf32>
    %143 = arith.truncf %142 : vector<2x16x4xf32> to vector<2x16x4xbf16>
    %144 = vector.extract_strided_slice %39 {offsets = [0, 0, 20], sizes = [2, 16, 4], strides = [1, 1, 1]} : vector<2x16x32xf32> to vector<2x16x4xf32>
    %145 = arith.truncf %144 : vector<2x16x4xf32> to vector<2x16x4xbf16>
    "tpu.trace_start"() <{level = 10 : i32, message = "bnd,bmd->bnm"}> : () -> ()
    %cst_45 = arith.constant dense<0.000000e+00> : vector<2x16x16xf32>
    %146 = tpu.matmul %141, %143, %cst_45 {dimension_numbers = #tpu.dot_dimension_numbers<[2], [2], [1], [1], [0, 0, 0, 1, 1, 1], [0], [0]>} : vector<2x16x4xbf16>, vector<2x16x4xbf16>, vector<2x16x16xf32> -> vector<2x16x16xf32>
    "tpu.trace_stop"() : () -> ()
    %cst_46 = arith.constant dense<0xFF800000> : vector<2x16xf32>
    %147 = vector.multi_reduction <maximumf>, %146, %cst_46 [2] : vector<2x16x16xf32> to vector<2x16xf32>
    %148 = vector.shape_cast %147 : vector<2x16xf32> to vector<2x16x1xf32>
    %149 = vector.broadcast %148 : vector<2x16x1xf32> to vector<2x16x16xf32>
    %150 = arith.subf %146, %149 : vector<2x16x16xf32>
    %151 = math.exp %150 : vector<2x16x16xf32>
    %cst_47 = arith.constant dense<0.000000e+00> : vector<2x16xf32>
    %152 = vector.multi_reduction <add>, %151, %cst_47 [2] : vector<2x16x16xf32> to vector<2x16xf32>
    %153 = vector.shape_cast %152 : vector<2x16xf32> to vector<2x16x1xf32>
    %154 = tpu.reciprocal %153 {approx = true} : vector<2x16x1xf32> -> vector<2x16x1xf32>
    %155 = vector.broadcast %154 : vector<2x16x1xf32> to vector<2x16x16xf32>
    %156 = arith.mulf %151, %155 : vector<2x16x16xf32>
    %157 = arith.truncf %156 : vector<2x16x16xf32> to vector<2x16x16xbf16>
    "tpu.trace_start"() <{level = 10 : i32, message = "bnm,bmd->bnd"}> : () -> ()
    %cst_48 = arith.constant dense<0.000000e+00> : vector<2x16x4xf32>
    %158 = tpu.matmul %157, %145, %cst_48 {dimension_numbers = #tpu.dot_dimension_numbers<[2], [1], [1], [2], [0, 0, 0, 1, 1, 2], [0], [0]>} : vector<2x16x16xbf16>, vector<2x16x4xbf16>, vector<2x16x4xf32> -> vector<2x16x4xf32>
    "tpu.trace_stop"() : () -> ()
    %c0_49 = arith.constant 0 : index
    %c0_50 = arith.constant 0 : index
    %c20 = arith.constant 20 : index
    %159 = vector.load %arg14[%c0_49, %c0_50, %c20] : memref<2x16x32xf32, #tpu.memory_space<vmem>>, vector<2x16x4xf32>
    tpu.vector_store %arg14[%c0_49, %c0_50, %c20], %158 {strides = array<i32>} : memref<2x16x32xf32, #tpu.memory_space<vmem>>, vector<2x16x4xf32>,
    %160 = vector.extract_strided_slice %35 {offsets = [0, 0, 24], sizes = [2, 16, 4], strides = [1, 1, 1]} : vector<2x16x32xf32> to vector<2x16x4xf32>
    %161 = arith.truncf %160 : vector<2x16x4xf32> to vector<2x16x4xbf16>
    %162 = vector.extract_strided_slice %37 {offsets = [0, 0, 24], sizes = [2, 16, 4], strides = [1, 1, 1]} : vector<2x16x32xf32> to vector<2x16x4xf32>
    %163 = arith.truncf %162 : vector<2x16x4xf32> to vector<2x16x4xbf16>
    %164 = vector.extract_strided_slice %39 {offsets = [0, 0, 24], sizes = [2, 16, 4], strides = [1, 1, 1]} : vector<2x16x32xf32> to vector<2x16x4xf32>
    %165 = arith.truncf %164 : vector<2x16x4xf32> to vector<2x16x4xbf16>
    "tpu.trace_start"() <{level = 10 : i32, message = "bnd,bmd->bnm"}> : () -> ()
    %cst_51 = arith.constant dense<0.000000e+00> : vector<2x16x16xf32>
    %166 = tpu.matmul %161, %163, %cst_51 {dimension_numbers = #tpu.dot_dimension_numbers<[2], [2], [1], [1], [0, 0, 0, 1, 1, 1], [0], [0]>} : vector<2x16x4xbf16>, vector<2x16x4xbf16>, vector<2x16x16xf32> -> vector<2x16x16xf32>
    "tpu.trace_stop"() : () -> ()
    %cst_52 = arith.constant dense<0xFF800000> : vector<2x16xf32>
    %167 = vector.multi_reduction <maximumf>, %166, %cst_52 [2] : vector<2x16x16xf32> to vector<2x16xf32>
    %168 = vector.shape_cast %167 : vector<2x16xf32> to vector<2x16x1xf32>
    %169 = vector.broadcast %168 : vector<2x16x1xf32> to vector<2x16x16xf32>
    %170 = arith.subf %166, %169 : vector<2x16x16xf32>
    %171 = math.exp %170 : vector<2x16x16xf32>
    %cst_53 = arith.constant dense<0.000000e+00> : vector<2x16xf32>
    %172 = vector.multi_reduction <add>, %171, %cst_53 [2] : vector<2x16x16xf32> to vector<2x16xf32>
    %173 = vector.shape_cast %172 : vector<2x16xf32> to vector<2x16x1xf32>
    %174 = tpu.reciprocal %173 {approx = true} : vector<2x16x1xf32> -> vector<2x16x1xf32>
    %175 = vector.broadcast %174 : vector<2x16x1xf32> to vector<2x16x16xf32>
    %176 = arith.mulf %171, %175 : vector<2x16x16xf32>
    %177 = arith.truncf %176 : vector<2x16x16xf32> to vector<2x16x16xbf16>
    "tpu.trace_start"() <{level = 10 : i32, message = "bnm,bmd->bnd"}> : () -> ()
    %cst_54 = arith.constant dense<0.000000e+00> : vector<2x16x4xf32>
    %178 = tpu.matmul %177, %165, %cst_54 {dimension_numbers = #tpu.dot_dimension_numbers<[2], [1], [1], [2], [0, 0, 0, 1, 1, 2], [0], [0]>} : vector<2x16x16xbf16>, vector<2x16x4xbf16>, vector<2x16x4xf32> -> vector<2x16x4xf32>
    "tpu.trace_stop"() : () -> ()
    %c0_55 = arith.constant 0 : index
    %c0_56 = arith.constant 0 : index
    %c24 = arith.constant 24 : index
    %179 = vector.load %arg14[%c0_55, %c0_56, %c24] : memref<2x16x32xf32, #tpu.memory_space<vmem>>, vector<2x16x4xf32>
    tpu.vector_store %arg14[%c0_55, %c0_56, %c24], %178 {strides = array<i32>} : memref<2x16x32xf32, #tpu.memory_space<vmem>>, vector<2x16x4xf32>,
    %180 = vector.extract_strided_slice %35 {offsets = [0, 0, 28], sizes = [2, 16, 4], strides = [1, 1, 1]} : vector<2x16x32xf32> to vector<2x16x4xf32>
    %181 = arith.truncf %180 : vector<2x16x4xf32> to vector<2x16x4xbf16>
    %182 = vector.extract_strided_slice %37 {offsets = [0, 0, 28], sizes = [2, 16, 4], strides = [1, 1, 1]} : vector<2x16x32xf32> to vector<2x16x4xf32>
    %183 = arith.truncf %182 : vector<2x16x4xf32> to vector<2x16x4xbf16>
    %184 = vector.extract_strided_slice %39 {offsets = [0, 0, 28], sizes = [2, 16, 4], strides = [1, 1, 1]} : vector<2x16x32xf32> to vector<2x16x4xf32>
    %185 = arith.truncf %184 : vector<2x16x4xf32> to vector<2x16x4xbf16>
    "tpu.trace_start"() <{level = 10 : i32, message = "bnd,bmd->bnm"}> : () -> ()
    %cst_57 = arith.constant dense<0.000000e+00> : vector<2x16x16xf32>
    %186 = tpu.matmul %181, %183, %cst_57 {dimension_numbers = #tpu.dot_dimension_numbers<[2], [2], [1], [1], [0, 0, 0, 1, 1, 1], [0], [0]>} : vector<2x16x4xbf16>, vector<2x16x4xbf16>, vector<2x16x16xf32> -> vector<2x16x16xf32>
    "tpu.trace_stop"() : () -> ()
    %cst_58 = arith.constant dense<0xFF800000> : vector<2x16xf32>
    %187 = vector.multi_reduction <maximumf>, %186, %cst_58 [2] : vector<2x16x16xf32> to vector<2x16xf32>
    %188 = vector.shape_cast %187 : vector<2x16xf32> to vector<2x16x1xf32>
    %189 = vector.broadcast %188 : vector<2x16x1xf32> to vector<2x16x16xf32>
    %190 = arith.subf %186, %189 : vector<2x16x16xf32>
    %191 = math.exp %190 : vector<2x16x16xf32>
    %cst_59 = arith.constant dense<0.000000e+00> : vector<2x16xf32>
    %192 = vector.multi_reduction <add>, %191, %cst_59 [2] : vector<2x16x16xf32> to vector<2x16xf32>
    %193 = vector.shape_cast %192 : vector<2x16xf32> to vector<2x16x1xf32>
    %194 = tpu.reciprocal %193 {approx = true} : vector<2x16x1xf32> -> vector<2x16x1xf32>
    %195 = vector.broadcast %194 : vector<2x16x1xf32> to vector<2x16x16xf32>
    %196 = arith.mulf %191, %195 : vector<2x16x16xf32>
    %197 = arith.truncf %196 : vector<2x16x16xf32> to vector<2x16x16xbf16>
    "tpu.trace_start"() <{level = 10 : i32, message = "bnm,bmd->bnd"}> : () -> ()
    %cst_60 = arith.constant dense<0.000000e+00> : vector<2x16x4xf32>
    %198 = tpu.matmul %197, %185, %cst_60 {dimension_numbers = #tpu.dot_dimension_numbers<[2], [1], [1], [2], [0, 0, 0, 1, 1, 2], [0], [0]>} : vector<2x16x16xbf16>, vector<2x16x4xbf16>, vector<2x16x4xf32> -> vector<2x16x4xf32>
    "tpu.trace_stop"() : () -> ()
    %c0_61 = arith.constant 0 : index
    %c0_62 = arith.constant 0 : index
    %c28 = arith.constant 28 : index
    %199 = vector.load %arg14[%c0_61, %c0_62, %c28] : memref<2x16x32xf32, #tpu.memory_space<vmem>>, vector<2x16x4xf32>
    tpu.vector_store %arg14[%c0_61, %c0_62, %c28], %198 {strides = array<i32>} : memref<2x16x32xf32, #tpu.memory_space<vmem>>, vector<2x16x4xf32>,
    %c0_63 = arith.constant 0 : index
    %c0_64 = arith.constant 0 : index
    %c0_65 = arith.constant 0 : index
    %200 = vector.load %arg14[%c0_63, %c0_64, %c0_65] : memref<2x16x32xf32, #tpu.memory_space<vmem>>, vector<2x16x32xf32>
    %201 = vector.shape_cast %200 : vector<2x16x32xf32> to vector<32x32xf32>
    %202 = arith.truncf %201 : vector<32x32xf32> to vector<32x32xbf16>
    %c0_66 = arith.constant 0 : index
    %c0_67 = arith.constant 0 : index
    %203 = vector.load %arg5[%c0_66, %c0_67] : memref<32x32xbf16, #tpu.memory_space<vmem>>, vector<32x32xbf16>
    %cst_68 = arith.constant dense<0.000000e+00> : vector<32x32xf32>
    %204 = tpu.matmul %202, %203, %cst_68 {dimension_numbers = #tpu.dot_dimension_numbers<[1], [0], [0], [1], [0, 0, 1, 1], [], []>} : vector<32x32xbf16>, vector<32x32xbf16>, vector<32x32xf32> -> vector<32x32xf32>
    %205 = arith.addf %2, %204 : vector<32x32xf32>
    %c0_69 = arith.constant 0 : index
    %c0_70 = arith.constant 0 : index
    %206 = vector.load %arg6[%c0_69, %c0_70] : memref<1x32xbf16, #tpu.memory_space<vmem>>, vector<1x32xbf16>
    %207 = arith.extf %206 : vector<1x32xbf16> to vector<1x32xf32>
    %208 = vector.broadcast %207 : vector<1x32xf32> to vector<32x32xf32>
    %209 = arith.addf %205, %208 : vector<32x32xf32>
    %cst_71 = arith.constant dense<0.000000e+00> : vector<32xf32>
    %210 = vector.multi_reduction <add>, %209, %cst_71 [1] : vector<32x32xf32> to vector<32xf32>
    %211 = vector.shape_cast %210 : vector<32xf32> to vector<32x1xf32>
    %cst_72 = arith.constant 3.200000e+01 : f32
    %212 = vector.broadcast %cst_72 : f32 to vector<32x1xf32>
    %213 = arith.divf %211, %212 : vector<32x1xf32>
    %214 = vector.broadcast %213 : vector<32x1xf32> to vector<32x32xf32>
    %215 = arith.subf %209, %214 : vector<32x32xf32>
    %216 = arith.mulf %215, %215 : vector<32x32xf32>
    %cst_73 = arith.constant dense<0.000000e+00> : vector<32xf32>
    %217 = vector.multi_reduction <add>, %216, %cst_73 [1] : vector<32x32xf32> to vector<32xf32>
    %218 = vector.shape_cast %217 : vector<32xf32> to vector<32x1xf32>
    %cst_74 = arith.constant 3.200000e+01 : f32
    %219 = vector.broadcast %cst_74 : f32 to vector<32x1xf32>
    %220 = arith.divf %218, %219 : vector<32x1xf32>
    %221 = vector.broadcast %213 : vector<32x1xf32> to vector<32x32xf32>
    %222 = arith.subf %209, %221 : vector<32x32xf32>
    %cst_75 = arith.constant 9.99999974E-6 : f32
    %223 = vector.broadcast %cst_75 : f32 to vector<32x1xf32>
    %224 = arith.addf %220, %223 : vector<32x1xf32>
    %225 = math.rsqrt %224 : vector<32x1xf32>
    %226 = vector.broadcast %225 : vector<32x1xf32> to vector<32x32xf32>
    %227 = arith.mulf %222, %226 : vector<32x32xf32>
    %c0_76 = arith.constant 0 : index
    %c0_77 = arith.constant 0 : index
    %228 = vector.load %arg7[%c0_76, %c0_77] : memref<1x32xbf16, #tpu.memory_space<vmem>>, vector<1x32xbf16>
    %229 = arith.extf %228 : vector<1x32xbf16> to vector<1x32xf32>
    %230 = vector.broadcast %229 : vector<1x32xf32> to vector<32x32xf32>
    %231 = arith.mulf %227, %230 : vector<32x32xf32>
    %c0_78 = arith.constant 0 : index
    %c0_79 = arith.constant 0 : index
    %232 = vector.load %arg8[%c0_78, %c0_79] : memref<1x32xbf16, #tpu.memory_space<vmem>>, vector<1x32xbf16>
    %233 = arith.extf %232 : vector<1x32xbf16> to vector<1x32xf32>
    %234 = vector.broadcast %233 : vector<1x32xf32> to vector<32x32xf32>
    %235 = arith.addf %231, %234 : vector<32x32xf32>
    %236 = arith.truncf %235 : vector<32x32xf32> to vector<32x32xbf16>
    %c0_80 = arith.constant 0 : index
    %c0_81 = arith.constant 0 : index
    %237 = vector.load %arg9[%c0_80, %c0_81] : memref<32x64xbf16, #tpu.memory_space<vmem>>, vector<32x64xbf16>
    %cst_82 = arith.constant dense<0.000000e+00> : vector<32x64xf32>
    %238 = tpu.matmul %236, %237, %cst_82 {dimension_numbers = #tpu.dot_dimension_numbers<[1], [0], [0], [1], [0, 0, 1, 1], [], []>} : vector<32x32xbf16>, vector<32x64xbf16>, vector<32x64xf32> -> vector<32x64xf32>
    %c0_83 = arith.constant 0 : index
    %c0_84 = arith.constant 0 : index
    %239 = vector.load %arg10[%c0_83, %c0_84] : memref<1x64xbf16, #tpu.memory_space<vmem>>, vector<1x64xbf16>
    %240 = arith.extf %239 : vector<1x64xbf16> to vector<1x64xf32>
    %241 = vector.broadcast %240 : vector<1x64xf32> to vector<32x64xf32>
    %242 = arith.addf %238, %241 : vector<32x64xf32>
    %cst_85 = arith.constant 0.000000e+00 : f32
    %243 = vector.broadcast %cst_85 : f32 to vector<32x64xf32>
    %244 = arith.maximumf %242, %243 : vector<32x64xf32>
    %245 = arith.truncf %244 : vector<32x64xf32> to vector<32x64xbf16>
    %c0_86 = arith.constant 0 : index
    %c0_87 = arith.constant 0 : index
    %246 = vector.load %arg11[%c0_86, %c0_87] : memref<64x32xbf16, #tpu.memory_space<vmem>>, vector<64x32xbf16>
    %cst_88 = arith.constant dense<0.000000e+00> : vector<32x32xf32>
    %247 = tpu.matmul %245, %246, %cst_88 {dimension_numbers = #tpu.dot_dimension_numbers<[1], [0], [0], [1], [0, 0, 1, 1], [], []>} : vector<32x64xbf16>, vector<64x32xbf16>, vector<32x32xf32> -> vector<32x32xf32>
    %c0_89 = arith.constant 0 : index
    %c0_90 = arith.constant 0 : index
    %248 = vector.load %arg12[%c0_89, %c0_90] : memref<1x32xbf16, #tpu.memory_space<vmem>>, vector<1x32xbf16>
    %249 = arith.extf %248 : vector<1x32xbf16> to vector<1x32xf32>
    %250 = vector.broadcast %249 : vector<1x32xf32> to vector<32x32xf32>
    %251 = arith.addf %247, %250 : vector<32x32xf32>
    %252 = arith.addf %209, %251 : vector<32x32xf32>
    %253 = vector.shape_cast %252 : vector<32x32xf32> to vector<2x16x32xf32>
    %254 = arith.truncf %253 : vector<2x16x32xf32> to vector<2x16x32xbf16>
    %c0_91 = arith.constant 0 : index
    %c0_92 = arith.constant 0 : index
    %c0_93 = arith.constant 0 : index
    %255 = vector.load %arg13[%c0_91, %c0_92, %c0_93] : memref<2x16x32xbf16, #tpu.memory_space<vmem>>, vector<2x16x32xbf16>
    tpu.vector_store %arg13[%c0_91, %c0_92, %c0_93], %254 {strides = array<i32>} : memref<2x16x32xbf16, #tpu.memory_space<vmem>>, vector<2x16x32xbf16>,
    return
  }
  func.func @transform_0(%arg0: i32) -> (i32, i32, i32) {
    %c0_i32 = arith.constant 0 : i32
    %c0_i32_0 = arith.constant 0 : i32
    %c0_i32_1 = arith.constant 0 : i32
    return %arg0, %c0_i32, %c0_i32_0 : i32, i32, i32
  }
  func.func @transform_1(%arg0: i32) -> (i32, i32) {
    %c0_i32 = arith.constant 0 : i32
    %c0_i32_0 = arith.constant 0 : i32
    %c0_i32_1 = arith.constant 0 : i32
    return %c0_i32, %c0_i32_0 : i32, i32
  }
  func.func @transform_2(%arg0: i32) -> (i32, i32) {
    %c0_i32 = arith.constant 0 : i32
    %c0_i32_0 = arith.constant 0 : i32
    %c0_i32_1 = arith.constant 0 : i32
    return %c0_i32, %c0_i32_0 : i32, i32
  }
  func.func @transform_3(%arg0: i32) -> (i32, i32) {
    %c0_i32 = arith.constant 0 : i32
    %c0_i32_0 = arith.constant 0 : i32
    %c0_i32_1 = arith.constant 0 : i32
    return %c0_i32, %c0_i32_0 : i32, i32
  }
  func.func @transform_4(%arg0: i32) -> (i32, i32) {
    %c0_i32 = arith.constant 0 : i32
    %c0_i32_0 = arith.constant 0 : i32
    %c0_i32_1 = arith.constant 0 : i32
    return %c0_i32, %c0_i32_0 : i32, i32
  }
  func.func @transform_5(%arg0: i32) -> (i32, i32) {
    %c0_i32 = arith.constant 0 : i32
    %c0_i32_0 = arith.constant 0 : i32
    %c0_i32_1 = arith.constant 0 : i32
    return %c0_i32, %c0_i32_0 : i32, i32
  }
  func.func @transform_6(%arg0: i32) -> (i32, i32) {
    %c0_i32 = arith.constant 0 : i32
    %c0_i32_0 = arith.constant 0 : i32
    %c0_i32_1 = arith.constant 0 : i32
    return %c0_i32, %c0_i32_0 : i32, i32
  }
  func.func @transform_7(%arg0: i32) -> (i32, i32) {
    %c0_i32 = arith.constant 0 : i32
    %c0_i32_0 = arith.constant 0 : i32
    %c0_i32_1 = arith.constant 0 : i32
    return %c0_i32, %c0_i32_0 : i32, i32
  }
  func.func @transform_8(%arg0: i32) -> (i32, i32) {
    %c0_i32 = arith.constant 0 : i32
    %c0_i32_0 = arith.constant 0 : i32
    %c0_i32_1 = arith.constant 0 : i32
    return %c0_i32, %c0_i32_0 : i32, i32
  }
  func.func @transform_9(%arg0: i32) -> (i32, i32) {
    %c0_i32 = arith.constant 0 : i32
    %c0_i32_0 = arith.constant 0 : i32
    %c0_i32_1 = arith.constant 0 : i32
    return %c0_i32, %c0_i32_0 : i32, i32
  }
  func.func @transform_10(%arg0: i32) -> (i32, i32) {
    %c0_i32 = arith.constant 0 : i32
    %c0_i32_0 = arith.constant 0 : i32
    %c0_i32_1 = arith.constant 0 : i32
    return %c0_i32, %c0_i32_0 : i32, i32
  }
  func.func @transform_11(%arg0: i32) -> (i32, i32) {
    %c0_i32 = arith.constant 0 : i32
    %c0_i32_0 = arith.constant 0 : i32
    %c0_i32_1 = arith.constant 0 : i32
    return %c0_i32, %c0_i32_0 : i32, i32
  }
  func.func @transform_12(%arg0: i32) -> (i32, i32, i32) {
    %c0_i32 = arith.constant 0 : i32
    %c0_i32_0 = arith.constant 0 : i32
    %c0_i32_1 = arith.constant 0 : i32
    return %arg0, %c0_i32, %c0_i32_0 : i32, i32, i32
  }
}

</mosaic_0001>

<llo_original>
// kernel: transformer_mapper_forward.3
$region0: #{transformer_mapper_forward.3}
  #allocation0 [shape = 'u32[]', space=smem, size = 0x4, offset = 0x4, fixed_abs, tag = 'smem constant byte address 0x4 - core index']
  #allocation1 [shape = 'u32[144,128]{1,0:T(1,128)}', space=vmem, size = 0x12000, scoped, tag = 'internal scratch']
  %s0 = inlined_call_operand.vmem [shape: bf16[2,64], index: 0, kind: input, shape index: {}]
  %s1 = inlined_call_operand.vmem [shape: bf16[64,256], index: 1, kind: input, shape index: {}]
  %s2 = inlined_call_operand.vmem [shape: bf16[1,256], index: 2, kind: input, shape index: {}]
  %s3 = inlined_call_operand.vmem [shape: bf16[2,256], index: 3, kind: output, shape index: {}]
  %s4 = sld [smem:[#allocation0]]
  $region22: #{transformer_mapper_forward.3} parent=0
    _
  %s6 = ssub.s32 1, %s4
  %s7 = scalar_select 0, %s6, %s4
  // Predicated region
  $region2: #{transformer_mapper_forward.3} parent=0 // pred_check
    _
  $region3: #{transformer_mapper_forward.3} parent=0 // pred_check_branch
    %9 = sbr.rel (0) target = $region5
  $region4: #{transformer_mapper_forward.3} parent=0 // pred_region
    _
  $region5: #{transformer_mapper_forward.3} parent=0 // pred_fallthru
    _
  // Predicated region
  $region6: #{transformer_mapper_forward.3} parent=0 // pred_check
    _
  $region7: #{transformer_mapper_forward.3} parent=0 // pred_check_branch
    %11 = sbr.rel (0) target = $region9
  $region8: #{transformer_mapper_forward.3} parent=0 // pred_region
    _
  $region9: #{transformer_mapper_forward.3} parent=0 // pred_fallthru
    _
  // Predicated region
  $region10: #{transformer_mapper_forward.3} parent=0 // pred_check
    _
  $region11: #{transformer_mapper_forward.3} parent=0 // pred_check_branch
    %13 = sbr.rel (0) target = $region13
  $region12: #{transformer_mapper_forward.3} parent=0 // pred_region
    _
  $region13: #{transformer_mapper_forward.3} parent=0 // pred_fallthru
    _
  %v15 = vld [vmem:[%s0] sm:$0x1]
  %v16 = vld [vmem:[%s1] sm:$0xff]
  %v17 = vld [vmem:[%s1 + $0x8] sm:$0xff]
  %v18 = vld [vmem:[%s1 + $0x10] sm:$0xff]
  %v19 = vld [vmem:[%s1 + $0x18] sm:$0xff]
  %v20 = vld [vmem:[%s1 + $0x20] sm:$0xff]
  %v21 = vld [vmem:[%s1 + $0x28] sm:$0xff]
  %v22 = vld [vmem:[%s1 + $0x30] sm:$0xff]
  %v23 = vld [vmem:[%s1 + $0x38] sm:$0xff]
  %v24 = vld [vmem:[%s2] sm:$0x3]
  %v25 = vunpack.c.l.bf16 %v24
  %v27 = vlaneseq
  %v28 = vshrl.u32 %v27, 7
  %v29 = vsub.s32 0, %v28
  %v30 = vrot.slane %v25, %v29
  %v31 = vlaneseq
  %v32 = vshrl.u32 %v31, 7
  %v33 = vsub.s32 2, %v32
  %v34 = vrot.slane %v25, %v33
  %v37 = vlaneseq
  %v38 = vshrl.u32 %v37, 7
  %v39 = vsub.s32 0, %v38
  %v40 = vrot.slane %v30, %v39
  %v41 = vlaneseq
  %v42 = vshrl.u32 %v41, 7
  %v43 = vsub.s32 0, %v42
  %v44 = vrot.slane %v34, %v43
  %v53 = vunpack.c.l.b16 %v16
  %v54 = vunpack.c.h.b16 %v16
  %v55 = vunpack.c.l.b16 %v17
  %v56 = vunpack.c.h.b16 %v17
  %v57 = vunpack.c.l.b16 %v18
  %v58 = vunpack.c.h.b16 %v18
  %v59 = vunpack.c.l.b16 %v19
  %v60 = vunpack.c.h.b16 %v19
  %v61 = vunpack.c.l.b16 %v20
  %v62 = vunpack.c.h.b16 %v20
  %v63 = vunpack.c.l.b16 %v21
  %v64 = vunpack.c.h.b16 %v21
  %v65 = vunpack.c.l.b16 %v22
  %v66 = vunpack.c.h.b16 %v22
  %v67 = vunpack.c.l.b16 %v23
  %v68 = vunpack.c.h.b16 %v23
  %v69 = vpack.c.b16 %v55, %v53
  %v70 = vpack.c.b16 %v56, %v54
  %v71 = vpack.c.b16 %v59, %v57
  %v72 = vpack.c.b16 %v60, %v58
  %v73 = vpack.c.b16 %v63, %v61
  %v74 = vpack.c.b16 %v64, %v62
  %v75 = vpack.c.b16 %v67, %v65
  %v76 = vpack.c.b16 %v68, %v66
  %vm85 = vcmask 523264
  %v87 = vsel %vm85, %v15, 0
  %89 = vmatprep.subr.bf16.mxu0 %v70
  %90 = vmatpush1.bf16.msra.mxu0 %v69
  %91 = vmatprep.subr.bf16.mxu0 %v72
  %92 = vmatpush1.bf16.msra.mxu0 %v71
  %93 = vmatprep.subr.bf16.mxu0 %v74
  %94 = vmatpush1.bf16.msra.mxu0 %v73
  %95 = vmatprep.subr.bf16.mxu0 %v76
  %96 = vmatpush1.bf16.msra.mxu0 %v75
  %97 = vmatprep.subr.bf16.mxu0 0
  %98 = vmatpush1.bf16.msra.mxu0 0
  %99 = vmatprep.subr.bf16.mxu0 0
  %100 = vmatpush1.bf16.msra.mxu0 0
  %101 = vmatprep.subr.bf16.mxu0 0
  %102 = vmatpush1.bf16.msra.mxu0 0
  %103 = vmatprep.subr.bf16.mxu0 0
  %104 = vmatpush1.bf16.msra.mxu0 0
  %105 = vmatprep.subr.bf16.mxu0 0
  %106 = vmatpush1.bf16.msra.mxu0 0
  %107 = vmatprep.subr.bf16.mxu0 0
  %108 = vmatpush1.bf16.msra.mxu0 0
  %109 = vmatprep.subr.bf16.mxu0 0
  %110 = vmatpush1.bf16.msra.mxu0 0
  %111 = vmatprep.subr.bf16.mxu0 0
  %112 = vmatpush1.bf16.msra.mxu0 0
  %113 = vmatprep.subr.bf16.mxu0 0
  %114 = vmatpush1.bf16.msra.mxu0 0
  %115 = vmatprep.subr.bf16.mxu0 0
  %116 = vmatpush1.bf16.msra.mxu0 0
  %117 = vmatprep.subr.bf16.mxu0 0
  %118 = vmatpush1.bf16.msra.mxu0 0
  %119 = vmatprep.subr.bf16.mxu0 0
  %120 = vmatpush1.bf16.msra.mxu0 0
  %121 = vmatprep.mubr.bf16.mxu0 0
  %122 = vmatmul.mubr.bf16.gmra.mrb[0].mxu0 %v87
  %v123 = vpop.f32.mrb[0].mxu0
  %v124 = vadd.f32 %v40, %v123
  %v125 = vpop.f32.mrb[0].mxu0
  %v126 = vadd.f32 %v44, %v125
  %v127 = vpop.f32.mrb[0].mxu0
  %v128 = vpop.f32.mrb[0].mxu0
  %129 = vdwg.mxu0
  %v130 = vpack.c.bf16 %v124, %v124
  %v131 = vpack.c.bf16 %v126, %v126
  %v134 = vcombine.low %v130, %v131
  %v136 = vunpack.c.l.s4 1966171168
  %v137 = vunpack.c.0.s8 %v136
  %v138 = vlaneseq
  %v139 = vshrl.u32 %v138, 7
  %v140 = vsub.s32 %v137, %v139
  %v141 = vrot.slane %v134, %v140
  %v143 = vunpack.c.l.s4 1966171168
  %v144 = vunpack.c.0.s8 %v143
  %v145 = vlaneseq
  %v146 = vshrl.u32 %v145, 7
  %v147 = vsub.s32 %v144, %v146
  %v148 = vrot.slane %v141, %v147
  %150 = vst [vmem:[%s3] sm:$0x3] %v148
  // Predicated region
  $region14: #{transformer_mapper_forward.3} parent=0 // pred_check
    _
  $region15: #{transformer_mapper_forward.3} parent=0 // pred_check_branch
    %152 = sbr.rel (0) target = $region17
  $region16: #{transformer_mapper_forward.3} parent=0 // pred_region
    _
  $region17: #{transformer_mapper_forward.3} parent=0 // pred_fallthru
    _
  // Predicated region
  $region18: #{transformer_mapper_forward.3} parent=0 // pred_check
    _
  $region19: #{transformer_mapper_forward.3} parent=0 // pred_check_branch
    %154 = sbr.rel (0) target = $region21
  $region20: #{transformer_mapper_forward.3} parent=0 // pred_region
    _
  $region21: #{transformer_mapper_forward.3} parent=0 // pred_fallthru
    _

// kernel: transformer_mapper_forward.4
$region0: #{transformer_mapper_forward.4}
  #allocation0 [shape = 'u32[]', space=smem, size = 0x4, offset = 0x4, fixed_abs, tag = 'smem constant byte address 0x4 - core index']
  #allocation1 [shape = 'u32[144,128]{1,0:T(1,128)}', space=vmem, size = 0x12000, scoped, tag = 'internal scratch']
  #allocation2 [shape = 'f32[2,16,32]{2,1,0:T(8,128)}', space=vmem, size = 0x4000, scoped, tag = 'scratch operand']
  %s0 = inlined_call_operand.vmem [shape: bf16[2,16,32], index: 0, kind: input, shape index: {}]
  %s1 = inlined_call_operand.vmem [shape: bf16[1,32], index: 1, kind: input, shape index: {}]
  %s2 = inlined_call_operand.vmem [shape: bf16[1,32], index: 2, kind: input, shape index: {}]
  %s3 = inlined_call_operand.vmem [shape: bf16[32,96], index: 3, kind: input, shape index: {}]
  %s4 = inlined_call_operand.vmem [shape: bf16[32,32], index: 4, kind: input, shape index: {}]
  %s5 = inlined_call_operand.vmem [shape: bf16[1,32], index: 5, kind: input, shape index: {}]
  %s6 = inlined_call_operand.vmem [shape: bf16[1,32], index: 6, kind: input, shape index: {}]
  %s7 = inlined_call_operand.vmem [shape: bf16[1,32], index: 7, kind: input, shape index: {}]
  %s8 = inlined_call_operand.vmem [shape: bf16[32,64], index: 8, kind: input, shape index: {}]
  %s9 = inlined_call_operand.vmem [shape: bf16[1,64], index: 9, kind: input, shape index: {}]
  %s10 = inlined_call_operand.vmem [shape: bf16[64,32], index: 10, kind: input, shape index: {}]
  %s11 = inlined_call_operand.vmem [shape: bf16[1,32], index: 11, kind: input, shape index: {}]
  %s12 = inlined_call_operand.vmem [shape: bf16[2,16,32], index: 12, kind: output, shape index: {}]
  %s13 = sld [smem:[#allocation0]]
  $region58: #{transformer_mapper_forward.4} parent=0
    _
  %s15 = ssub.s32 1, %s13
  %s16 = scalar_select 0, %s15, %s13
  // Predicated region
  $region2: #{transformer_mapper_forward.4} parent=0 // pred_check
    _
  $region3: #{transformer_mapper_forward.4} parent=0 // pred_check_branch
    %18 = sbr.rel (0) target = $region5
  $region4: #{transformer_mapper_forward.4} parent=0 // pred_region
    _
  $region5: #{transformer_mapper_forward.4} parent=0 // pred_fallthru
    _
  // Predicated region
  $region6: #{transformer_mapper_forward.4} parent=0 // pred_check
    _
  $region7: #{transformer_mapper_forward.4} parent=0 // pred_check_branch
    %20 = sbr.rel (0) target = $region9
  $region8: #{transformer_mapper_forward.4} parent=0 // pred_region
    _
  $region9: #{transformer_mapper_forward.4} parent=0 // pred_fallthru
    _
  // Predicated region
  $region10: #{transformer_mapper_forward.4} parent=0 // pred_check
    _
  $region11: #{transformer_mapper_forward.4} parent=0 // pred_check_branch
    %22 = sbr.rel (0) target = $region13
  $region12: #{transformer_mapper_forward.4} parent=0 // pred_region
    _
  $region13: #{transformer_mapper_forward.4} parent=0 // pred_fallthru
    _
  // Predicated region
  $region14: #{transformer_mapper_forward.4} parent=0 // pred_check
    _
  $region15: #{transformer_mapper_forward.4} parent=0 // pred_check_branch
    %24 = sbr.rel (0) target = $region17
  $region16: #{transformer_mapper_forward.4} parent=0 // pred_region
    _
  $region17: #{transformer_mapper_forward.4} parent=0 // pred_fallthru
    _
  // Predicated region
  $region18: #{transformer_mapper_forward.4} parent=0 // pred_check
    _
  $region19: #{transformer_mapper_forward.4} parent=0 // pred_check_branch
    %26 = sbr.rel (0) target = $region21
  $region20: #{transformer_mapper_forward.4} parent=0 // pred_region
    _
  $region21: #{transformer_mapper_forward.4} parent=0 // pred_fallthru
    _
  // Predicated region
  $region22: #{transformer_mapper_forward.4} parent=0 // pred_check
    _
  $region23: #{transformer_mapper_forward.4} parent=0 // pred_check_branch
    %28 = sbr.rel (0) target = $region25
  $region24: #{transformer_mapper_forward.4} parent=0 // pred_region
    _
  $region25: #{transformer_mapper_forward.4} parent=0 // pred_fallthru
    _
  // Predicated region
  $region26: #{transformer_mapper_forward.4} parent=0 // pred_check
    _
  $region27: #{transformer_mapper_forward.4} parent=0 // pred_check_branch
    %30 = sbr.rel (0) target = $region29
  $region28: #{transformer_mapper_forward.4} parent=0 // pred_region
    _
  $region29: #{transformer_mapper_forward.4} parent=0 // pred_fallthru
    _
  // Predicated region
  $region30: #{transformer_mapper_forward.4} parent=0 // pred_check
    _
  $region31: #{transformer_mapper_forward.4} parent=0 // pred_check_branch
    %32 = sbr.rel (0) target = $region33
  $region32: #{transformer_mapper_forward.4} parent=0 // pred_region
    _
  $region33: #{transformer_mapper_forward.4} parent=0 // pred_fallthru
    _
  // Predicated region
  $region34: #{transformer_mapper_forward.4} parent=0 // pred_check
    _
  $region35: #{transformer_mapper_forward.4} parent=0 // pred_check_branch
    %34 = sbr.rel (0) target = $region37
  $region36: #{transformer_mapper_forward.4} parent=0 // pred_region
    _
  $region37: #{transformer_mapper_forward.4} parent=0 // pred_fallthru
    _
  // Predicated region
  $region38: #{transformer_mapper_forward.4} parent=0 // pred_check
    _
  $region39: #{transformer_mapper_forward.4} parent=0 // pred_check_branch
    %36 = sbr.rel (0) target = $region41
  $region40: #{transformer_mapper_forward.4} parent=0 // pred_region
    _
  $region41: #{transformer_mapper_forward.4} parent=0 // pred_fallthru
    _
  // Predicated region
  $region42: #{transformer_mapper_forward.4} parent=0 // pred_check
    _
  $region43: #{transformer_mapper_forward.4} parent=0 // pred_check_branch
    %38 = sbr.rel (0) target = $region45
  $region44: #{transformer_mapper_forward.4} parent=0 // pred_region
    _
  $region45: #{transformer_mapper_forward.4} parent=0 // pred_fallthru
    _
  // Predicated region
  $region46: #{transformer_mapper_forward.4} parent=0 // pred_check
    _
  $region47: #{transformer_mapper_forward.4} parent=0 // pred_check_branch
    %40 = sbr.rel (0) target = $region49
  $region48: #{transformer_mapper_forward.4} parent=0 // pred_region
    _
  $region49: #{transformer_mapper_forward.4} parent=0 // pred_fallthru
    _
  %v42 = vld [vmem:[%s0] sm:$0xf]
  %v43 = vld [vmem:[%s0 + $0x4] sm:$0xf]
  %v44 = vld [vmem:[%s0 + $0x8] sm:$0xf]
  %v45 = vld [vmem:[%s0 + $0xc] sm:$0xf]
  %v46 = vunpack.c.l.bf16 %v42
  %v47 = vunpack.c.l.bf16 %v43
  %v48 = vunpack.c.l.bf16 %v44
  %v49 = vunpack.c.l.bf16 %v45
  %vm50 = vcmask 261120
  %v51 = vsel %vm50, %v46, 0.0
  %52 = vadd.xlane.f32.xlu0 %v51
  %v53 = vpop.xlane.xlu0 %52
  %v54 = vsel %vm50, %v47, 0.0
  %55 = vadd.xlane.f32.xlu0 %v54
  %v56 = vpop.xlane.xlu0 %55
  %v57 = vsel %vm50, %v48, 0.0
  %58 = vadd.xlane.f32.xlu0 %v57
  %v59 = vpop.xlane.xlu0 %58
  %v60 = vsel %vm50, %v49, 0.0
  %61 = vadd.xlane.f32.xlu0 %v60
  %v62 = vpop.xlane.xlu0 %61
  %v63 = vrcp.pop 32.0
  %v64 = vmul.f32 %v53, %v63
  %v65 = vmul.f32 %v56, %v63
  %v66 = vmul.f32 %v59, %v63
  %v67 = vmul.f32 %v62, %v63
  %v68 = vsub.f32 %v46, %v64
  %v69 = vsub.f32 %v47, %v65
  %v70 = vsub.f32 %v48, %v66
  %v71 = vsub.f32 %v49, %v67
  %v72 = vmul.f32 %v68, %v68
  %v73 = vmul.f32 %v69, %v69
  %v74 = vmul.f32 %v70, %v70
  %v75 = vmul.f32 %v71, %v71
  %v76 = vsel %vm50, %v72, 0.0
  %77 = vadd.xlane.f32.xlu0 %v76
  %v78 = vpop.xlane.xlu0 %77
  %v79 = vsel %vm50, %v73, 0.0
  %80 = vadd.xlane.f32.xlu0 %v79
  %v81 = vpop.xlane.xlu0 %80
  %v82 = vsel %vm50, %v74, 0.0
  %83 = vadd.xlane.f32.xlu0 %v82
  %v84 = vpop.xlane.xlu0 %83
  %v85 = vsel %vm50, %v75, 0.0
  %86 = vadd.xlane.f32.xlu0 %v85
  %v87 = vpop.xlane.xlu0 %86
  %v88 = vmul.f32 %v78, %v63
  %v89 = vmul.f32 %v81, %v63
  %v90 = vmul.f32 %v84, %v63
  %v91 = vmul.f32 %v87, %v63
  %v92 = vadd.f32 %v88, 1e-05
  %v93 = vadd.f32 %v89, 1e-05
  %v94 = vadd.f32 %v90, 1e-05
  %v95 = vadd.f32 %v91, 1e-05
  %v96 = vrsqrt.pop %v92
  %v97 = vrsqrt.pop %v93
  %v98 = vrsqrt.pop %v94
  %v99 = vrsqrt.pop %v95
  %v100 = vmul.f32 %v68, %v96
  %v101 = vmul.f32 %v69, %v97
  %v102 = vmul.f32 %v70, %v98
  %v103 = vmul.f32 %v71, %v99
  %v104 = vld [vmem:[%s1] sm:$0x1]
  %v105 = vunpack.c.l.bf16 %v104
  %v106 = vlaneseq
  %v107 = vshrl.u32 %v106, 7
  %v108 = vsub.s32 0, %v107
  %v109 = vrot.slane %v105, %v108
  %v110 = vmul.f32 %v100, %v109
  %v111 = vmul.f32 %v101, %v109
  %v112 = vmul.f32 %v102, %v109
  %v113 = vmul.f32 %v103, %v109
  %v114 = vld [vmem:[%s2] sm:$0x1]
  %v115 = vunpack.c.l.bf16 %v114
  %v116 = vlaneseq
  %v117 = vshrl.u32 %v116, 7
  %v118 = vsub.s32 0, %v117
  %v119 = vrot.slane %v115, %v118
  %v120 = vadd.f32 %v110, %v119
  %v121 = vadd.f32 %v111, %v119
  %v122 = vadd.f32 %v112, %v119
  %v123 = vadd.f32 %v113, %v119
  %v124 = vpack.c.bf16 %v121, %v120
  %v125 = vpack.c.bf16 %v123, %v122
  %v126 = vld [vmem:[%s3] sm:$0xf]
  %v127 = vld [vmem:[%s3 + $0x4] sm:$0xf]
  %v128 = vld [vmem:[%s3 + $0x8] sm:$0xf]
  %v129 = vld [vmem:[%s3 + $0xc] sm:$0xf]
  %v134 = vunpack.c.l.b16 %v126
  %v135 = vunpack.c.l.b16 %v127
  %v136 = vunpack.c.l.b16 %v128
  %v137 = vunpack.c.l.b16 %v129
  %v138 = vpack.c.b16 %v135, %v134
  %v139 = vpack.c.b16 %v137, %v136
  %v143 = vsel %vm50, %v124, 0
  %v146 = vsel %vm50, %v125, 0
  %148 = vmatprep.subr.bf16.mxu0 0
  %149 = vmatpush1.bf16.msra.mxu0 %v138
  %150 = vmatprep.subr.bf16.mxu0 0
  %151 = vmatpush1.bf16.msra.mxu0 %v139
  %152 = vmatprep.subr.bf16.mxu0 0
  %153 = vmatpush1.bf16.msra.mxu0 0
  %154 = vmatprep.subr.bf16.mxu0 0
  %155 = vmatpush1.bf16.msra.mxu0 0
  %156 = vmatprep.subr.bf16.mxu0 0
  %157 = vmatpush1.bf16.msra.mxu0 0
  %158 = vmatprep.subr.bf16.mxu0 0
  %159 = vmatpush1.bf16.msra.mxu0 0
  %160 = vmatprep.subr.bf16.mxu0 0
  %161 = vmatpush1.bf16.msra.mxu0 0
  %162 = vmatprep.subr.bf16.mxu0 0
  %163 = vmatpush1.bf16.msra.mxu0 0
  %164 = vmatprep.subr.bf16.mxu0 0
  %165 = vmatpush1.bf16.msra.mxu0 0
  %166 = vmatprep.subr.bf16.mxu0 0
  %167 = vmatpush1.bf16.msra.mxu0 0
  %168 = vmatprep.subr.bf16.mxu0 0
  %169 = vmatpush1.bf16.msra.mxu0 0
  %170 = vmatprep.subr.bf16.mxu0 0
  %171 = vmatpush1.bf16.msra.mxu0 0
  %172 = vmatprep.subr.bf16.mxu0 0
  %173 = vmatpush1.bf16.msra.mxu0 0
  %174 = vmatprep.subr.bf16.mxu0 0
  %175 = vmatpush1.bf16.msra.mxu0 0
  %176 = vmatprep.subr.bf16.mxu0 0
  %177 = vmatpush1.bf16.msra.mxu0 0
  %178 = vmatprep.subr.bf16.mxu0 0
  %179 = vmatpush1.bf16.msra.mxu0 0
  %180 = vmatprep.mubr.bf16.mxu0 0
  %181 = vmatmul.mubr.bf16.gmra.mrb[0].mxu0 %v143
  %v182 = vpop.f32.mrb[0].mxu0
  %v183 = vadd.f32 0.0, %v182
  %v184 = vpop.f32.mrb[0].mxu0
  %v185 = vpop.f32.mrb[0].mxu0
  %v186 = vadd.f32 0.0, %v185
  %v187 = vpop.f32.mrb[0].mxu0
  %188 = vmatprep.mubr.bf16.mxu0 0
  %189 = vmatmul.mubr.bf16.gmra.mrb[0].mxu0 %v146
  %v190 = vpop.f32.mrb[0].mxu0
  %v191 = vadd.f32 0.0, %v190
  %v192 = vpop.f32.mrb[0].mxu0
  %v193 = vpop.f32.mrb[0].mxu0
  %v194 = vadd.f32 0.0, %v193
  %v195 = vpop.f32.mrb[0].mxu0
  %196 = vdwg.mxu0
  %v197 = vmul.f32 %v183, 0.5
  %v198 = vmul.f32 %v186, 0.5
  %v199 = vmul.f32 %v191, 0.5
  %v200 = vmul.f32 %v194, 0.5
  %v201 = vpack.c.bf16 %v198, %v197
  %v202 = vpack.c.bf16 %v200, %v199
  %v203 = vpack.c.bf16 %v186, %v183
  %v204 = vpack.c.bf16 %v194, %v191
  %206 = vrot.lane.b32.xlu0 %v203, 96
  %v207 = vpop.permute.xlu0 %206
  %vm208 = vcmask 31744
  %v210 = vsel %vm208, %v201, 0
  %v213 = vsel %vm208, %v207, 0
  %215 = vmatprep.subr.bf16.mxu0 0
  %216 = vmatpush1.bf16.xpose.msra.mxu0 %v213
  %217 = vmatprep.subr.bf16.mxu0 0
  %218 = vmatpush1.bf16.xpose.msra.mxu0 0
  %219 = vmatprep.subr.bf16.mxu0 0
  %220 = vmatpush1.bf16.xpose.msra.mxu0 0
  %221 = vmatprep.subr.bf16.mxu0 0
  %222 = vmatpush1.bf16.xpose.msra.mxu0 0
  %223 = vmatprep.subr.bf16.mxu0 0
  %224 = vmatpush1.bf16.xpose.msra.mxu0 0
  %225 = vmatprep.subr.bf16.mxu0 0
  %226 = vmatpush1.bf16.xpose.msra.mxu0 0
  %227 = vmatprep.subr.bf16.mxu0 0
  %228 = vmatpush1.bf16.xpose.msra.mxu0 0
  %229 = vmatprep.subr.bf16.mxu0 0
  %230 = vmatpush1.bf16.xpose.msra.mxu0 0
  %231 = vmatprep.subr.bf16.mxu0 0
  %232 = vmatpush1.bf16.xpose.msra.mxu0 0
  %233 = vmatprep.subr.bf16.mxu0 0
  %234 = vmatpush1.bf16.xpose.msra.mxu0 0
  %235 = vmatprep.subr.bf16.mxu0 0
  %236 = vmatpush1.bf16.xpose.msra.mxu0 0
  %237 = vmatprep.subr.bf16.mxu0 0
  %238 = vmatpush1.bf16.xpose.msra.mxu0 0
  %239 = vmatprep.subr.bf16.mxu0 0
  %240 = vmatpush1.bf16.xpose.msra.mxu0 0
  %241 = vmatprep.subr.bf16.mxu0 0
  %242 = vmatpush1.bf16.xpose.msra.mxu0 0
  %243 = vmatprep.subr.bf16.mxu0 0
  %244 = vmatpush1.bf16.xpose.msra.mxu0 0
  %245 = vmatprep.subr.bf16.mxu0 0
  %246 = vmatpush1.bf16.xpose.msra.mxu0 0
  %247 = vmatprep.mubr.bf16.mxu0 0
  %248 = vmatmul.mubr.bf16.gmra.mrb[0].mxu0 %v210
  %v249 = vpop.f32.mrb[0].mxu0
  %v250 = vadd.f32 0.0, %v249
  %v251 = vpop.f32.mrb[0].mxu0
  %v252 = vpop.f32.mrb[0].mxu0
  %v253 = vadd.f32 0.0, %v252
  %v254 = vpop.f32.mrb[0].mxu0
  %255 = vdwg.mxu0
  %257 = vrot.lane.b32.xlu0 %v204, 96
  %v258 = vpop.permute.xlu0 %257
  %v260 = vsel %vm208, %v202, 0
  %v263 = vsel %vm208, %v258, 0
  %265 = vmatprep.subr.bf16.mxu0 0
  %266 = vmatpush1.bf16.xpose.msra.mxu0 %v263
  %267 = vmatprep.subr.bf16.mxu0 0
  %268 = vmatpush1.bf16.xpose.msra.mxu0 0
  %269 = vmatprep.subr.bf16.mxu0 0
  %270 = vmatpush1.bf16.xpose.msra.mxu0 0
  %271 = vmatprep.subr.bf16.mxu0 0
  %272 = vmatpush1.bf16.xpose.msra.mxu0 0
  %273 = vmatprep.subr.bf16.mxu0 0
  %274 = vmatpush1.bf16.xpose.msra.mxu0 0
  %275 = vmatprep.subr.bf16.mxu0 0
  %276 = vmatpush1.bf16.xpose.msra.mxu0 0
  %277 = vmatprep.subr.bf16.mxu0 0
  %278 = vmatpush1.bf16.xpose.msra.mxu0 0
  %279 = vmatprep.subr.bf16.mxu0 0
  %280 = vmatpush1.bf16.xpose.msra.mxu0 0
  %281 = vmatprep.subr.bf16.mxu0 0
  %282 = vmatpush1.bf16.xpose.msra.mxu0 0
  %283 = vmatprep.subr.bf16.mxu0 0
  %284 = vmatpush1.bf16.xpose.msra.mxu0 0
  %285 = vmatprep.subr.bf16.mxu0 0
  %286 = vmatpush1.bf16.xpose.msra.mxu0 0
  %287 = vmatprep.subr.bf16.mxu0 0
  %288 = vmatpush1.bf16.xpose.msra.mxu0 0
  %289 = vmatprep.subr.bf16.mxu0 0
  %290 = vmatpush1.bf16.xpose.msra.mxu0 0
  %291 = vmatprep.subr.bf16.mxu0 0
  %292 = vmatpush1.bf16.xpose.msra.mxu0 0
  %293 = vmatprep.subr.bf16.mxu0 0
  %294 = vmatpush1.bf16.xpose.msra.mxu0 0
  %295 = vmatprep.subr.bf16.mxu0 0
  %296 = vmatpush1.bf16.xpose.msra.mxu0 0
  %297 = vmatprep.mubr.bf16.mxu0 0
  %298 = vmatmul.mubr.bf16.gmra.mrb[0].mxu0 %v260
  %v299 = vpop.f32.mrb[0].mxu0
  %v300 = vadd.f32 0.0, %v299
  %v301 = vpop.f32.mrb[0].mxu0
  %v302 = vpop.f32.mrb[0].mxu0
  %v303 = vadd.f32 0.0, %v302
  %v304 = vpop.f32.mrb[0].mxu0
  %305 = vdwg.mxu0
  %vm306 = vcmask 130048
  %v307 = vsel %vm306, %v250, -inf
  %308 = vmax.xlane.f32.xlu0 %v307
  %v309 = vpop.xlane.xlu0 %308
  %v310 = vsel %vm306, %v253, -inf
  %311 = vmax.xlane.f32.xlu0 %v310
  %v312 = vpop.xlane.xlu0 %311
  %v313 = vsel %vm306, %v300, -inf
  %314 = vmax.xlane.f32.xlu0 %v313
  %v315 = vpop.xlane.xlu0 %314
  %v316 = vsel %vm306, %v303, -inf
  %317 = vmax.xlane.f32.xlu0 %v316
  %v318 = vpop.xlane.xlu0 %317
  %v319 = vsub.f32 %v250, %v309
  %v320 = vsub.f32 %v253, %v312
  %v321 = vsub.f32 %v300, %v315
  %v322 = vsub.f32 %v303, %v318
  %v323 = vmul.f32 %v319, 1.442695
  %v324 = vpow.pop %v323
  %v325 = vmul.f32 %v320, 1.442695
  %v326 = vpow.pop %v325
  %v327 = vmul.f32 %v321, 1.442695
  %v328 = vpow.pop %v327
  %v329 = vmul.f32 %v322, 1.442695
  %v330 = vpow.pop %v329
  %v331 = vsel %vm306, %v324, 0.0
  %332 = vadd.xlane.f32.xlu0 %v331
  %v333 = vpop.xlane.xlu0 %332
  %v334 = vsel %vm306, %v326, 0.0
  %335 = vadd.xlane.f32.xlu0 %v334
  %v336 = vpop.xlane.xlu0 %335
  %v337 = vsel %vm306, %v328, 0.0
  %338 = vadd.xlane.f32.xlu0 %v337
  %v339 = vpop.xlane.xlu0 %338
  %v340 = vsel %vm306, %v330, 0.0
  %341 = vadd.xlane.f32.xlu0 %v340
  %v342 = vpop.xlane.xlu0 %341
  %v343 = vrcp.pop %v333
  %v344 = vrcp.pop %v336
  %v345 = vrcp.pop %v339
  %v346 = vrcp.pop %v342
  %v347 = vmul.f32 %v324, %v343
  %v348 = vmul.f32 %v326, %v344
  %v349 = vmul.f32 %v328, %v345
  %v350 = vmul.f32 %v330, %v346
  %v351 = vpack.c.bf16 %v348, %v347
  %v352 = vpack.c.bf16 %v350, %v349
  %353 = vrot.lane.b32.xlu0 %v203, 64
  %v354 = vpop.permute.xlu0 %353
  %v357 = vsel %vm306, %v351, 0
  %359 = vmatprep.subr.bf16.mxu0 0
  %360 = vmatpush1.bf16.msra.mxu0 %v354
  %361 = vmatprep.subr.bf16.mxu0 0
  %362 = vmatpush1.bf16.msra.mxu0 0
  %363 = vmatprep.subr.bf16.mxu0 0
  %364 = vmatpush1.bf16.msra.mxu0 0
  %365 = vmatprep.subr.bf16.mxu0 0
  %366 = vmatpush1.bf16.msra.mxu0 0
  %367 = vmatprep.subr.bf16.mxu0 0
  %368 = vmatpush1.bf16.msra.mxu0 0
  %369 = vmatprep.subr.bf16.mxu0 0
  %370 = vmatpush1.bf16.msra.mxu0 0
  %371 = vmatprep.subr.bf16.mxu0 0
  %372 = vmatpush1.bf16.msra.mxu0 0
  %373 = vmatprep.subr.bf16.mxu0 0
  %374 = vmatpush1.bf16.msra.mxu0 0
  %375 = vmatprep.subr.bf16.mxu0 0
  %376 = vmatpush1.bf16.msra.mxu0 0
  %377 = vmatprep.subr.bf16.mxu0 0
  %378 = vmatpush1.bf16.msra.mxu0 0
  %379 = vmatprep.subr.bf16.mxu0 0
  %380 = vmatpush1.bf16.msra.mxu0 0
  %381 = vmatprep.subr.bf16.mxu0 0
  %382 = vmatpush1.bf16.msra.mxu0 0
  %383 = vmatprep.subr.bf16.mxu0 0
  %384 = vmatpush1.bf16.msra.mxu0 0
  %385 = vmatprep.subr.bf16.mxu0 0
  %386 = vmatpush1.bf16.msra.mxu0 0
  %387 = vmatprep.subr.bf16.mxu0 0
  %388 = vmatpush1.bf16.msra.mxu0 0
  %389 = vmatprep.subr.bf16.mxu0 0
  %390 = vmatpush1.bf16.msra.mxu0 0
  %391 = vmatprep.mubr.bf16.mxu0 0
  %392 = vmatmul.mubr.bf16.gmra.mrb[0].mxu0 %v357
  %v393 = vpop.f32.mrb[0].mxu0
  %v394 = vadd.f32 0.0, %v393
  %v395 = vpop.f32.mrb[0].mxu0
  %v396 = vpop.f32.mrb[0].mxu0
  %v397 = vadd.f32 0.0, %v396
  %v398 = vpop.f32.mrb[0].mxu0
  %399 = vdwg.mxu0
  %400 = vrot.lane.b32.xlu0 %v204, 64
  %v401 = vpop.permute.xlu0 %400
  %v404 = vsel %vm306, %v352, 0
  %406 = vmatprep.subr.bf16.mxu0 0
  %407 = vmatpush1.bf16.msra.mxu0 %v401
  %408 = vmatprep.subr.bf16.mxu0 0
  %409 = vmatpush1.bf16.msra.mxu0 0
  %410 = vmatprep.subr.bf16.mxu0 0
  %411 = vmatpush1.bf16.msra.mxu0 0
  %412 = vmatprep.subr.bf16.mxu0 0
  %413 = vmatpush1.bf16.msra.mxu0 0
  %414 = vmatprep.subr.bf16.mxu0 0
  %415 = vmatpush1.bf16.msra.mxu0 0
  %416 = vmatprep.subr.bf16.mxu0 0
  %417 = vmatpush1.bf16.msra.mxu0 0
  %418 = vmatprep.subr.bf16.mxu0 0
  %419 = vmatpush1.bf16.msra.mxu0 0
  %420 = vmatprep.subr.bf16.mxu0 0
  %421 = vmatpush1.bf16.msra.mxu0 0
  %422 = vmatprep.subr.bf16.mxu0 0
  %423 = vmatpush1.bf16.msra.mxu0 0
  %424 = vmatprep.subr.bf16.mxu0 0
  %425 = vmatpush1.bf16.msra.mxu0 0
  %426 = vmatprep.subr.bf16.mxu0 0
  %427 = vmatpush1.bf16.msra.mxu0 0
  %428 = vmatprep.subr.bf16.mxu0 0
  %429 = vmatpush1.bf16.msra.mxu0 0
  %430 = vmatprep.subr.bf16.mxu0 0
  %431 = vmatpush1.bf16.msra.mxu0 0
  %432 = vmatprep.subr.bf16.mxu0 0
  %433 = vmatpush1.bf16.msra.mxu0 0
  %434 = vmatprep.subr.bf16.mxu0 0
  %435 = vmatpush1.bf16.msra.mxu0 0
  %436 = vmatprep.subr.bf16.mxu0 0
  %437 = vmatpush1.bf16.msra.mxu0 0
  %438 = vmatprep.mubr.bf16.mxu0 0
  %439 = vmatmul.mubr.bf16.gmra.mrb[0].mxu0 %v404
  %v440 = vpop.f32.mrb[0].mxu0
  %v441 = vadd.f32 0.0, %v440
  %v442 = vpop.f32.mrb[0].mxu0
  %v443 = vpop.f32.mrb[0].mxu0
  %v444 = vadd.f32 0.0, %v443
  %v445 = vpop.f32.mrb[0].mxu0
  %446 = vdwg.mxu0
  %447 = vst.msk [vmem:[#allocation2] sm:$0xff] %vm208, %v394
  %448 = vst.msk [vmem:[#allocation2 + $0x8] sm:$0xff] %vm208, %v397
  %449 = vst.msk [vmem:[#allocation2 + $0x10] sm:$0xff] %vm208, %v441
  %450 = vst.msk [vmem:[#allocation2 + $0x18] sm:$0xff] %vm208, %v444
  %452 = vrot.lane.b32.xlu0 %v201, 124
  %v453 = vpop.permute.xlu0 %452
  %454 = vrot.lane.b32.xlu0 %v203, 92
  %v455 = vpop.permute.xlu0 %454
  %v457 = vsel %vm208, %v453, 0
  %v460 = vsel %vm208, %v455, 0
  %462 = vmatprep.subr.bf16.mxu0 0
  %463 = vmatpush1.bf16.xpose.msra.mxu0 %v460
  %464 = vmatprep.subr.bf16.mxu0 0
  %465 = vmatpush1.bf16.xpose.msra.mxu0 0
  %466 = vmatprep.subr.bf16.mxu0 0
  %467 = vmatpush1.bf16.xpose.msra.mxu0 0
  %468 = vmatprep.subr.bf16.mxu0 0
  %469 = vmatpush1.bf16.xpose.msra.mxu0 0
  %470 = vmatprep.subr.bf16.mxu0 0
  %471 = vmatpush1.bf16.xpose.msra.mxu0 0
  %472 = vmatprep.subr.bf16.mxu0 0
  %473 = vmatpush1.bf16.xpose.msra.mxu0 0
  %474 = vmatprep.subr.bf16.mxu0 0
  %475 = vmatpush1.bf16.xpose.msra.mxu0 0
  %476 = vmatprep.subr.bf16.mxu0 0
  %477 = vmatpush1.bf16.xpose.msra.mxu0 0
  %478 = vmatprep.subr.bf16.mxu0 0
  %479 = vmatpush1.bf16.xpose.msra.mxu0 0
  %480 = vmatprep.subr.bf16.mxu0 0
  %481 = vmatpush1.bf16.xpose.msra.mxu0 0
  %482 = vmatprep.subr.bf16.mxu0 0
  %483 = vmatpush1.bf16.xpose.msra.mxu0 0
  %484 = vmatprep.subr.bf16.mxu0 0
  %485 = vmatpush1.bf16.xpose.msra.mxu0 0
  %486 = vmatprep.subr.bf16.mxu0 0
  %487 = vmatpush1.bf16.xpose.msra.mxu0 0
  %488 = vmatprep.subr.bf16.mxu0 0
  %489 = vmatpush1.bf16.xpose.msra.mxu0 0
  %490 = vmatprep.subr.bf16.mxu0 0
  %491 = vmatpush1.bf16.xpose.msra.mxu0 0
  %492 = vmatprep.subr.bf16.mxu0 0
  %493 = vmatpush1.bf16.xpose.msra.mxu0 0
  %494 = vmatprep.mubr.bf16.mxu0 0
  %495 = vmatmul.mubr.bf16.gmra.mrb[0].mxu0 %v457
  %v496 = vpop.f32.mrb[0].mxu0
  %v497 = vadd.f32 0.0, %v496
  %v498 = vpop.f32.mrb[0].mxu0
  %v499 = vpop.f32.mrb[0].mxu0
  %v500 = vadd.f32 0.0, %v499
  %v501 = vpop.f32.mrb[0].mxu0
  %502 = vdwg.mxu0
  %504 = vrot.lane.b32.xlu0 %v202, 124
  %v505 = vpop.permute.xlu0 %504
  %506 = vrot.lane.b32.xlu0 %v204, 92
  %v507 = vpop.permute.xlu0 %506
  %v509 = vsel %vm208, %v505, 0
  %v512 = vsel %vm208, %v507, 0
  %514 = vmatprep.subr.bf16.mxu0 0
  %515 = vmatpush1.bf16.xpose.msra.mxu0 %v512
  %516 = vmatprep.subr.bf16.mxu0 0
  %517 = vmatpush1.bf16.xpose.msra.mxu0 0
  %518 = vmatprep.subr.bf16.mxu0 0
  %519 = vmatpush1.bf16.xpose.msra.mxu0 0
  %520 = vmatprep.subr.bf16.mxu0 0
  %521 = vmatpush1.bf16.xpose.msra.mxu0 0
  %522 = vmatprep.subr.bf16.mxu0 0
  %523 = vmatpush1.bf16.xpose.msra.mxu0 0
  %524 = vmatprep.subr.bf16.mxu0 0
  %525 = vmatpush1.bf16.xpose.msra.mxu0 0
  %526 = vmatprep.subr.bf16.mxu0 0
  %527 = vmatpush1.bf16.xpose.msra.mxu0 0
  %528 = vmatprep.subr.bf16.mxu0 0
  %529 = vmatpush1.bf16.xpose.msra.mxu0 0
  %530 = vmatprep.subr.bf16.mxu0 0
  %531 = vmatpush1.bf16.xpose.msra.mxu0 0
  %532 = vmatprep.subr.bf16.mxu0 0
  %533 = vmatpush1.bf16.xpose.msra.mxu0 0
  %534 = vmatprep.subr.bf16.mxu0 0
  %535 = vmatpush1.bf16.xpose.msra.mxu0 0
  %536 = vmatprep.subr.bf16.mxu0 0
  %537 = vmatpush1.bf16.xpose.msra.mxu0 0
  %538 = vmatprep.subr.bf16.mxu0 0
  %539 = vmatpush1.bf16.xpose.msra.mxu0 0
  %540 = vmatprep.subr.bf16.mxu0 0
  %541 = vmatpush1.bf16.xpose.msra.mxu0 0
  %542 = vmatprep.subr.bf16.mxu0 0
  %543 = vmatpush1.bf16.xpose.msra.mxu0 0
  %544 = vmatprep.subr.bf16.mxu0 0
  %545 = vmatpush1.bf16.xpose.msra.mxu0 0
  %546 = vmatprep.mubr.bf16.mxu0 0
  %547 = vmatmul.mubr.bf16.gmra.mrb[0].mxu0 %v509
  %v548 = vpop.f32.mrb[0].mxu0
  %v549 = vadd.f32 0.0, %v548
  %v550 = vpop.f32.mrb[0].mxu0
  %v551 = vpop.f32.mrb[0].mxu0
  %v552 = vadd.f32 0.0, %v551
  %v553 = vpop.f32.mrb[0].mxu0
  %554 = vdwg.mxu0
  %v555 = vsel %vm306, %v497, -inf
  %556 = vmax.xlane.f32.xlu0 %v555
  %v557 = vpop.xlane.xlu0 %556
  %v558 = vsel %vm306, %v500, -inf
  %559 = vmax.xlane.f32.xlu0 %v558
  %v560 = vpop.xlane.xlu0 %559
  %v561 = vsel %vm306, %v549, -inf
  %562 = vmax.xlane.f32.xlu0 %v561
  %v563 = vpop.xlane.xlu0 %562
  %v564 = vsel %vm306, %v552, -inf
  %565 = vmax.xlane.f32.xlu0 %v564
  %v566 = vpop.xlane.xlu0 %565
  %v567 = vsub.f32 %v497, %v557
  %v568 = vsub.f32 %v500, %v560
  %v569 = vsub.f32 %v549, %v563
  %v570 = vsub.f32 %v552, %v566
  %v571 = vmul.f32 %v567, 1.442695
  %v572 = vpow.pop %v571
  %v573 = vmul.f32 %v568, 1.442695
  %v574 = vpow.pop %v573
  %v575 = vmul.f32 %v569, 1.442695
  %v576 = vpow.pop %v575
  %v577 = vmul.f32 %v570, 1.442695
  %v578 = vpow.pop %v577
  %v579 = vsel %vm306, %v572, 0.0
  %580 = vadd.xlane.f32.xlu0 %v579
  %v581 = vpop.xlane.xlu0 %580
  %v582 = vsel %vm306, %v574, 0.0
  %583 = vadd.xlane.f32.xlu0 %v582
  %v584 = vpop.xlane.xlu0 %583
  %v585 = vsel %vm306, %v576, 0.0
  %586 = vadd.xlane.f32.xlu0 %v585
  %v587 = vpop.xlane.xlu0 %586
  %v588 = vsel %vm306, %v578, 0.0
  %589 = vadd.xlane.f32.xlu0 %v588
  %v590 = vpop.xlane.xlu0 %589
  %v591 = vrcp.pop %v581
  %v592 = vrcp.pop %v584
  %v593 = vrcp.pop %v587
  %v594 = vrcp.pop %v590
  %v595 = vmul.f32 %v572, %v591
  %v596 = vmul.f32 %v574, %v592
  %v597 = vmul.f32 %v576, %v593
  %v598 = vmul.f32 %v578, %v594
  %v599 = vpack.c.bf16 %v596, %v595
  %v600 = vpack.c.bf16 %v598, %v597
  %601 = vrot.lane.b32.xlu0 %v203, 60
  %v602 = vpop.permute.xlu0 %601
  %v605 = vsel %vm306, %v599, 0
  %607 = vmatprep.subr.bf16.mxu0 0
  %608 = vmatpush1.bf16.msra.mxu0 %v602
  %609 = vmatprep.subr.bf16.mxu0 0
  %610 = vmatpush1.bf16.msra.mxu0 0
  %611 = vmatprep.subr.bf16.mxu0 0
  %612 = vmatpush1.bf16.msra.mxu0 0
  %613 = vmatprep.subr.bf16.mxu0 0
  %614 = vmatpush1.bf16.msra.mxu0 0
  %615 = vmatprep.subr.bf16.mxu0 0
  %616 = vmatpush1.bf16.msra.mxu0 0
  %617 = vmatprep.subr.bf16.mxu0 0
  %618 = vmatpush1.bf16.msra.mxu0 0
  %619 = vmatprep.subr.bf16.mxu0 0
  %620 = vmatpush1.bf16.msra.mxu0 0
  %621 = vmatprep.subr.bf16.mxu0 0
  %622 = vmatpush1.bf16.msra.mxu0 0
  %623 = vmatprep.subr.bf16.mxu0 0
  %624 = vmatpush1.bf16.msra.mxu0 0
  %625 = vmatprep.subr.bf16.mxu0 0
  %626 = vmatpush1.bf16.msra.mxu0 0
  %627 = vmatprep.subr.bf16.mxu0 0
  %628 = vmatpush1.bf16.msra.mxu0 0
  %629 = vmatprep.subr.bf16.mxu0 0
  %630 = vmatpush1.bf16.msra.mxu0 0
  %631 = vmatprep.subr.bf16.mxu0 0
  %632 = vmatpush1.bf16.msra.mxu0 0
  %633 = vmatprep.subr.bf16.mxu0 0
  %634 = vmatpush1.bf16.msra.mxu0 0
  %635 = vmatprep.subr.bf16.mxu0 0
  %636 = vmatpush1.bf16.msra.mxu0 0
  %637 = vmatprep.subr.bf16.mxu0 0
  %638 = vmatpush1.bf16.msra.mxu0 0
  %639 = vmatprep.mubr.bf16.mxu0 0
  %640 = vmatmul.mubr.bf16.gmra.mrb[0].mxu0 %v605
  %v641 = vpop.f32.mrb[0].mxu0
  %v642 = vadd.f32 0.0, %v641
  %v643 = vpop.f32.mrb[0].mxu0
  %v644 = vpop.f32.mrb[0].mxu0
  %v645 = vadd.f32 0.0, %v644
  %v646 = vpop.f32.mrb[0].mxu0
  %647 = vdwg.mxu0
  %648 = vrot.lane.b32.xlu0 %v204, 60
  %v649 = vpop.permute.xlu0 %648
  %v652 = vsel %vm306, %v600, 0
  %654 = vmatprep.subr.bf16.mxu0 0
  %655 = vmatpush1.bf16.msra.mxu0 %v649
  %656 = vmatprep.subr.bf16.mxu0 0
  %657 = vmatpush1.bf16.msra.mxu0 0
  %658 = vmatprep.subr.bf16.mxu0 0
  %659 = vmatpush1.bf16.msra.mxu0 0
  %660 = vmatprep.subr.bf16.mxu0 0
  %661 = vmatpush1.bf16.msra.mxu0 0
  %662 = vmatprep.subr.bf16.mxu0 0
  %663 = vmatpush1.bf16.msra.mxu0 0
  %664 = vmatprep.subr.bf16.mxu0 0
  %665 = vmatpush1.bf16.msra.mxu0 0
  %666 = vmatprep.subr.bf16.mxu0 0
  %667 = vmatpush1.bf16.msra.mxu0 0
  %668 = vmatprep.subr.bf16.mxu0 0
  %669 = vmatpush1.bf16.msra.mxu0 0
  %670 = vmatprep.subr.bf16.mxu0 0
  %671 = vmatpush1.bf16.msra.mxu0 0
  %672 = vmatprep.subr.bf16.mxu0 0
  %673 = vmatpush1.bf16.msra.mxu0 0
  %674 = vmatprep.subr.bf16.mxu0 0
  %675 = vmatpush1.bf16.msra.mxu0 0
  %676 = vmatprep.subr.bf16.mxu0 0
  %677 = vmatpush1.bf16.msra.mxu0 0
  %678 = vmatprep.subr.bf16.mxu0 0
  %679 = vmatpush1.bf16.msra.mxu0 0
  %680 = vmatprep.subr.bf16.mxu0 0
  %681 = vmatpush1.bf16.msra.mxu0 0
  %682 = vmatprep.subr.bf16.mxu0 0
  %683 = vmatpush1.bf16.msra.mxu0 0
  %684 = vmatprep.subr.bf16.mxu0 0
  %685 = vmatpush1.bf16.msra.mxu0 0
  %686 = vmatprep.mubr.bf16.mxu0 0
  %687 = vmatmul.mubr.bf16.gmra.mrb[0].mxu0 %v652
  %v688 = vpop.f32.mrb[0].mxu0
  %v689 = vadd.f32 0.0, %v688
  %v690 = vpop.f32.mrb[0].mxu0
  %v691 = vpop.f32.mrb[0].mxu0
  %v692 = vadd.f32 0.0, %v691
  %v693 = vpop.f32.mrb[0].mxu0
  %694 = vdwg.mxu0
  %699 = vrot.lane.b32.xlu0 %v642, 4
  %v700 = vpop.permute.xlu0 %699
  %701 = vrot.lane.b32.xlu0 %v645, 4
  %v702 = vpop.permute.xlu0 %701
  %703 = vrot.lane.b32.xlu0 %v689, 4
  %v704 = vpop.permute.xlu0 %703
  %705 = vrot.lane.b32.xlu0 %v692, 4
  %v706 = vpop.permute.xlu0 %705
  %vm711 = vcmask 64544
  %712 = vst.msk [vmem:[#allocation2] sm:$0xff] %vm711, %v700
  %713 = vst.msk [vmem:[#allocation2 + $0x8] sm:$0xff] %vm711, %v702
  %714 = vst.msk [vmem:[#allocation2 + $0x10] sm:$0xff] %vm711, %v704
  %715 = vst.msk [vmem:[#allocation2 + $0x18] sm:$0xff] %vm711, %v706
  %716 = vrot.lane.b32.xlu0 %v201, 120
  %v717 = vpop.permute.xlu0 %716
  %718 = vrot.lane.b32.xlu0 %v203, 88
  %v719 = vpop.permute.xlu0 %718
  %v721 = vsel %vm208, %v717, 0
  %v724 = vsel %vm208, %v719, 0
  %726 = vmatprep.subr.bf16.mxu0 0
  %727 = vmatpush1.bf16.xpose.msra.mxu0 %v724
  %728 = vmatprep.subr.bf16.mxu0 0
  %729 = vmatpush1.bf16.xpose.msra.mxu0 0
  %730 = vmatprep.subr.bf16.mxu0 0
  %731 = vmatpush1.bf16.xpose.msra.mxu0 0
  %732 = vmatprep.subr.bf16.mxu0 0
  %733 = vmatpush1.bf16.xpose.msra.mxu0 0
  %734 = vmatprep.subr.bf16.mxu0 0
  %735 = vmatpush1.bf16.xpose.msra.mxu0 0
  %736 = vmatprep.subr.bf16.mxu0 0
  %737 = vmatpush1.bf16.xpose.msra.mxu0 0
  %738 = vmatprep.subr.bf16.mxu0 0
  %739 = vmatpush1.bf16.xpose.msra.mxu0 0
  %740 = vmatprep.subr.bf16.mxu0 0
  %741 = vmatpush1.bf16.xpose.msra.mxu0 0
  %742 = vmatprep.subr.bf16.mxu0 0
  %743 = vmatpush1.bf16.xpose.msra.mxu0 0
  %744 = vmatprep.subr.bf16.mxu0 0
  %745 = vmatpush1.bf16.xpose.msra.mxu0 0
  %746 = vmatprep.subr.bf16.mxu0 0
  %747 = vmatpush1.bf16.xpose.msra.mxu0 0
  %748 = vmatprep.subr.bf16.mxu0 0
  %749 = vmatpush1.bf16.xpose.msra.mxu0 0
  %750 = vmatprep.subr.bf16.mxu0 0
  %751 = vmatpush1.bf16.xpose.msra.mxu0 0
  %752 = vmatprep.subr.bf16.mxu0 0
  %753 = vmatpush1.bf16.xpose.msra.mxu0 0
  %754 = vmatprep.subr.bf16.mxu0 0
  %755 = vmatpush1.bf16.xpose.msra.mxu0 0
  %756 = vmatprep.subr.bf16.mxu0 0
  %757 = vmatpush1.bf16.xpose.msra.mxu0 0
  %758 = vmatprep.mubr.bf16.mxu0 0
  %759 = vmatmul.mubr.bf16.gmra.mrb[0].mxu0 %v721
  %v760 = vpop.f32.mrb[0].mxu0
  %v761 = vadd.f32 0.0, %v760
  %v762 = vpop.f32.mrb[0].mxu0
  %v763 = vpop.f32.mrb[0].mxu0
  %v764 = vadd.f32 0.0, %v763
  %v765 = vpop.f32.mrb[0].mxu0
  %766 = vdwg.mxu0
  %767 = vrot.lane.b32.xlu0 %v202, 120
  %v768 = vpop.permute.xlu0 %767
  %769 = vrot.lane.b32.xlu0 %v204, 88
  %v770 = vpop.permute.xlu0 %769
  %v772 = vsel %vm208, %v768, 0
  %v775 = vsel %vm208, %v770, 0
  %777 = vmatprep.subr.bf16.mxu0 0
  %778 = vmatpush1.bf16.xpose.msra.mxu0 %v775
  %779 = vmatprep.subr.bf16.mxu0 0
  %780 = vmatpush1.bf16.xpose.msra.mxu0 0
  %781 = vmatprep.subr.bf16.mxu0 0
  %782 = vmatpush1.bf16.xpose.msra.mxu0 0
  %783 = vmatprep.subr.bf16.mxu0 0
  %784 = vmatpush1.bf16.xpose.msra.mxu0 0
  %785 = vmatprep.subr.bf16.mxu0 0
  %786 = vmatpush1.bf16.xpose.msra.mxu0 0
  %787 = vmatprep.subr.bf16.mxu0 0
  %788 = vmatpush1.bf16.xpose.msra.mxu0 0
  %789 = vmatprep.subr.bf16.mxu0 0
  %790 = vmatpush1.bf16.xpose.msra.mxu0 0
  %791 = vmatprep.subr.bf16.mxu0 0
  %792 = vmatpush1.bf16.xpose.msra.mxu0 0
  %793 = vmatprep.subr.bf16.mxu0 0
  %794 = vmatpush1.bf16.xpose.msra.mxu0 0
  %795 = vmatprep.subr.bf16.mxu0 0
  %796 = vmatpush1.bf16.xpose.msra.mxu0 0
  %797 = vmatprep.subr.bf16.mxu0 0
  %798 = vmatpush1.bf16.xpose.msra.mxu0 0
  %799 = vmatprep.subr.bf16.mxu0 0
  %800 = vmatpush1.bf16.xpose.msra.mxu0 0
  %801 = vmatprep.subr.bf16.mxu0 0
  %802 = vmatpush1.bf16.xpose.msra.mxu0 0
  %803 = vmatprep.subr.bf16.mxu0 0
  %804 = vmatpush1.bf16.xpose.msra.mxu0 0
  %805 = vmatprep.subr.bf16.mxu0 0
  %806 = vmatpush1.bf16.xpose.msra.mxu0 0
  %807 = vmatprep.subr.bf16.mxu0 0
  %808 = vmatpush1.bf16.xpose.msra.mxu0 0
  %809 = vmatprep.mubr.bf16.mxu0 0
  %810 = vmatmul.mubr.bf16.gmra.mrb[0].mxu0 %v772
  %v811 = vpop.f32.mrb[0].mxu0
  %v812 = vadd.f32 0.0, %v811
  %v813 = vpop.f32.mrb[0].mxu0
  %v814 = vpop.f32.mrb[0].mxu0
  %v815 = vadd.f32 0.0, %v814
  %v816 = vpop.f32.mrb[0].mxu0
  %817 = vdwg.mxu0
  %v818 = vsel %vm306, %v761, -inf
  %819 = vmax.xlane.f32.xlu0 %v818
  %v820 = vpop.xlane.xlu0 %819
  %v821 = vsel %vm306, %v764, -inf
  %822 = vmax.xlane.f32.xlu0 %v821
  %v823 = vpop.xlane.xlu0 %822
  %v824 = vsel %vm306, %v812, -inf
  %825 = vmax.xlane.f32.xlu0 %v824
  %v826 = vpop.xlane.xlu0 %825
  %v827 = vsel %vm306, %v815, -inf
  %828 = vmax.xlane.f32.xlu0 %v827
  %v829 = vpop.xlane.xlu0 %828
  %v830 = vsub.f32 %v761, %v820
  %v831 = vsub.f32 %v764, %v823
  %v832 = vsub.f32 %v812, %v826
  %v833 = vsub.f32 %v815, %v829
  %v834 = vmul.f32 %v830, 1.442695
  %v835 = vpow.pop %v834
  %v836 = vmul.f32 %v831, 1.442695
  %v837 = vpow.pop %v836
  %v838 = vmul.f32 %v832, 1.442695
  %v839 = vpow.pop %v838
  %v840 = vmul.f32 %v833, 1.442695
  %v841 = vpow.pop %v840
  %v842 = vsel %vm306, %v835, 0.0
  %843 = vadd.xlane.f32.xlu0 %v842
  %v844 = vpop.xlane.xlu0 %843
  %v845 = vsel %vm306, %v837, 0.0
  %846 = vadd.xlane.f32.xlu0 %v845
  %v847 = vpop.xlane.xlu0 %846
  %v848 = vsel %vm306, %v839, 0.0
  %849 = vadd.xlane.f32.xlu0 %v848
  %v850 = vpop.xlane.xlu0 %849
  %v851 = vsel %vm306, %v841, 0.0
  %852 = vadd.xlane.f32.xlu0 %v851
  %v853 = vpop.xlane.xlu0 %852
  %v854 = vrcp.pop %v844
  %v855 = vrcp.pop %v847
  %v856 = vrcp.pop %v850
  %v857 = vrcp.pop %v853
  %v858 = vmul.f32 %v835, %v854
  %v859 = vmul.f32 %v837, %v855
  %v860 = vmul.f32 %v839, %v856
  %v861 = vmul.f32 %v841, %v857
  %v862 = vpack.c.bf16 %v859, %v858
  %v863 = vpack.c.bf16 %v861, %v860
  %864 = vrot.lane.b32.xlu0 %v203, 56
  %v865 = vpop.permute.xlu0 %864
  %v868 = vsel %vm306, %v862, 0
  %870 = vmatprep.subr.bf16.mxu0 0
  %871 = vmatpush1.bf16.msra.mxu0 %v865
  %872 = vmatprep.subr.bf16.mxu0 0
  %873 = vmatpush1.bf16.msra.mxu0 0
  %874 = vmatprep.subr.bf16.mxu0 0
  %875 = vmatpush1.bf16.msra.mxu0 0
  %876 = vmatprep.subr.bf16.mxu0 0
  %877 = vmatpush1.bf16.msra.mxu0 0
  %878 = vmatprep.subr.bf16.mxu0 0
  %879 = vmatpush1.bf16.msra.mxu0 0
  %880 = vmatprep.subr.bf16.mxu0 0
  %881 = vmatpush1.bf16.msra.mxu0 0
  %882 = vmatprep.subr.bf16.mxu0 0
  %883 = vmatpush1.bf16.msra.mxu0 0
  %884 = vmatprep.subr.bf16.mxu0 0
  %885 = vmatpush1.bf16.msra.mxu0 0
  %886 = vmatprep.subr.bf16.mxu0 0
  %887 = vmatpush1.bf16.msra.mxu0 0
  %888 = vmatprep.subr.bf16.mxu0 0
  %889 = vmatpush1.bf16.msra.mxu0 0
  %890 = vmatprep.subr.bf16.mxu0 0
  %891 = vmatpush1.bf16.msra.mxu0 0
  %892 = vmatprep.subr.bf16.mxu0 0
  %893 = vmatpush1.bf16.msra.mxu0 0
  %894 = vmatprep.subr.bf16.mxu0 0
  %895 = vmatpush1.bf16.msra.mxu0 0
  %896 = vmatprep.subr.bf16.mxu0 0
  %897 = vmatpush1.bf16.msra.mxu0 0
  %898 = vmatprep.subr.bf16.mxu0 0
  %899 = vmatpush1.bf16.msra.mxu0 0
  %900 = vmatprep.subr.bf16.mxu0 0
  %901 = vmatpush1.bf16.msra.mxu0 0
  %902 = vmatprep.mubr.bf16.mxu0 0
  %903 = vmatmul.mubr.bf16.gmra.mrb[0].mxu0 %v868
  %v904 = vpop.f32.mrb[0].mxu0
  %v905 = vadd.f32 0.0, %v904
  %v906 = vpop.f32.mrb[0].mxu0
  %v907 = vpop.f32.mrb[0].mxu0
  %v908 = vadd.f32 0.0, %v907
  %v909 = vpop.f32.mrb[0].mxu0
  %910 = vdwg.mxu0
  %911 = vrot.lane.b32.xlu0 %v204, 56
  %v912 = vpop.permute.xlu0 %911
  %v915 = vsel %vm306, %v863, 0
  %917 = vmatprep.subr.bf16.mxu0 0
  %918 = vmatpush1.bf16.msra.mxu0 %v912
  %919 = vmatprep.subr.bf16.mxu0 0
  %920 = vmatpush1.bf16.msra.mxu0 0
  %921 = vmatprep.subr.bf16.mxu0 0
  %922 = vmatpush1.bf16.msra.mxu0 0
  %923 = vmatprep.subr.bf16.mxu0 0
  %924 = vmatpush1.bf16.msra.mxu0 0
  %925 = vmatprep.subr.bf16.mxu0 0
  %926 = vmatpush1.bf16.msra.mxu0 0
  %927 = vmatprep.subr.bf16.mxu0 0
  %928 = vmatpush1.bf16.msra.mxu0 0
  %929 = vmatprep.subr.bf16.mxu0 0
  %930 = vmatpush1.bf16.msra.mxu0 0
  %931 = vmatprep.subr.bf16.mxu0 0
  %932 = vmatpush1.bf16.msra.mxu0 0
  %933 = vmatprep.subr.bf16.mxu0 0
  %934 = vmatpush1.bf16.msra.mxu0 0
  %935 = vmatprep.subr.bf16.mxu0 0
  %936 = vmatpush1.bf16.msra.mxu0 0
  %937 = vmatprep.subr.bf16.mxu0 0
  %938 = vmatpush1.bf16.msra.mxu0 0
  %939 = vmatprep.subr.bf16.mxu0 0
  %940 = vmatpush1.bf16.msra.mxu0 0
  %941 = vmatprep.subr.bf16.mxu0 0
  %942 = vmatpush1.bf16.msra.mxu0 0
  %943 = vmatprep.subr.bf16.mxu0 0
  %944 = vmatpush1.bf16.msra.mxu0 0
  %945 = vmatprep.subr.bf16.mxu0 0
  %946 = vmatpush1.bf16.msra.mxu0 0
  %947 = vmatprep.subr.bf16.mxu0 0
  %948 = vmatpush1.bf16.msra.mxu0 0
  %949 = vmatprep.mubr.bf16.mxu0 0
  %950 = vmatmul.mubr.bf16.gmra.mrb[0].mxu0 %v915
  %v951 = vpop.f32.mrb[0].mxu0
  %v952 = vadd.f32 0.0, %v951
  %v953 = vpop.f32.mrb[0].mxu0
  %v954 = vpop.f32.mrb[0].mxu0
  %v955 = vadd.f32 0.0, %v954
  %v956 = vpop.f32.mrb[0].mxu0
  %957 = vdwg.mxu0
  %962 = vrot.lane.b32.xlu0 %v905, 8
  %v963 = vpop.permute.xlu0 %962
  %964 = vrot.lane.b32.xlu0 %v908, 8
  %v965 = vpop.permute.xlu0 %964
  %966 = vrot.lane.b32.xlu0 %v952, 8
  %v967 = vpop.permute.xlu0 %966
  %968 = vrot.lane.b32.xlu0 %v955, 8
  %v969 = vpop.permute.xlu0 %968
  %vm974 = vcmask 97344
  %975 = vst.msk [vmem:[#allocation2] sm:$0xff] %vm974, %v963
  %976 = vst.msk [vmem:[#allocation2 + $0x8] sm:$0xff] %vm974, %v965
  %977 = vst.msk [vmem:[#allocation2 + $0x10] sm:$0xff] %vm974, %v967
  %978 = vst.msk [vmem:[#allocation2 + $0x18] sm:$0xff] %vm974, %v969
  %979 = vrot.lane.b32.xlu0 %v201, 116
  %v980 = vpop.permute.xlu0 %979
  %981 = vrot.lane.b32.xlu0 %v203, 84
  %v982 = vpop.permute.xlu0 %981
  %v984 = vsel %vm208, %v980, 0
  %v987 = vsel %vm208, %v982, 0
  %989 = vmatprep.subr.bf16.mxu0 0
  %990 = vmatpush1.bf16.xpose.msra.mxu0 %v987
  %991 = vmatprep.subr.bf16.mxu0 0
  %992 = vmatpush1.bf16.xpose.msra.mxu0 0
  %993 = vmatprep.subr.bf16.mxu0 0
  %994 = vmatpush1.bf16.xpose.msra.mxu0 0
  %995 = vmatprep.subr.bf16.mxu0 0
  %996 = vmatpush1.bf16.xpose.msra.mxu0 0
  %997 = vmatprep.subr.bf16.mxu0 0
  %998 = vmatpush1.bf16.xpose.msra.mxu0 0
  %999 = vmatprep.subr.bf16.mxu0 0
  %1000 = vmatpush1.bf16.xpose.msra.mxu0 0
  %1001 = vmatprep.subr.bf16.mxu0 0
  %1002 = vmatpush1.bf16.xpose.msra.mxu0 0
  %1003 = vmatprep.subr.bf16.mxu0 0
  %1004 = vmatpush1.bf16.xpose.msra.mxu0 0
  %1005 = vmatprep.subr.bf16.mxu0 0
  %1006 = vmatpush1.bf16.xpose.msra.mxu0 0
  %1007 = vmatprep.subr.bf16.mxu0 0
  %1008 = vmatpush1.bf16.xpose.msra.mxu0 0
  %1009 = vmatprep.subr.bf16.mxu0 0
  %1010 = vmatpush1.bf16.xpose.msra.mxu0 0
  %1011 = vmatprep.subr.bf16.mxu0 0
  %1012 = vmatpush1.bf16.xpose.msra.mxu0 0
  %1013 = vmatprep.subr.bf16.mxu0 0
  %1014 = vmatpush1.bf16.xpose.msra.mxu0 0
  %1015 = vmatprep.subr.bf16.mxu0 0
  %1016 = vmatpush1.bf16.xpose.msra.mxu0 0
  %1017 = vmatprep.subr.bf16.mxu0 0
  %1018 = vmatpush1.bf16.xpose.msra.mxu0 0
  %1019 = vmatprep.subr.bf16.mxu0 0
  %1020 = vmatpush1.bf16.xpose.msra.mxu0 0
  %1021 = vmatprep.mubr.bf16.mxu0 0
  %1022 = vmatmul.mubr.bf16.gmra.mrb[0].mxu0 %v984
  %v1023 = vpop.f32.mrb[0].mxu0
  %v1024 = vadd.f32 0.0, %v1023
  %v1025 = vpop.f32.mrb[0].mxu0
  %v1026 = vpop.f32.mrb[0].mxu0
  %v1027 = vadd.f32 0.0, %v1026
  %v1028 = vpop.f32.mrb[0].mxu0
  %1029 = vdwg.mxu0
  %1030 = vrot.lane.b32.xlu0 %v202, 116
  %v1031 = vpop.permute.xlu0 %1030
  %1032 = vrot.lane.b32.xlu0 %v204, 84
  %v1033 = vpop.permute.xlu0 %1032
  %v1035 = vsel %vm208, %v1031, 0
  %v1038 = vsel %vm208, %v1033, 0
  %1040 = vmatprep.subr.bf16.mxu0 0
  %1041 = vmatpush1.bf16.xpose.msra.mxu0 %v1038
  %1042 = vmatprep.subr.bf16.mxu0 0
  %1043 = vmatpush1.bf16.xpose.msra.mxu0 0
  %1044 = vmatprep.subr.bf16.mxu0 0
  %1045 = vmatpush1.bf16.xpose.msra.mxu0 0
  %1046 = vmatprep.subr.bf16.mxu0 0
  %1047 = vmatpush1.bf16.xpose.msra.mxu0 0
  %1048 = vmatprep.subr.bf16.mxu0 0
  %1049 = vmatpush1.bf16.xpose.msra.mxu0 0
  %1050 = vmatprep.subr.bf16.mxu0 0
  %1051 = vmatpush1.bf16.xpose.msra.mxu0 0
  %1052 = vmatprep.subr.bf16.mxu0 0
  %1053 = vmatpush1.bf16.xpose.msra.mxu0 0
  %1054 = vmatprep.subr.bf16.mxu0 0
  %1055 = vmatpush1.bf16.xpose.msra.mxu0 0
  %1056 = vmatprep.subr.bf16.mxu0 0
  %1057 = vmatpush1.bf16.xpose.msra.mxu0 0
  %1058 = vmatprep.subr.bf16.mxu0 0
  %1059 = vmatpush1.bf16.xpose.msra.mxu0 0
  %1060 = vmatprep.subr.bf16.mxu0 0
  %1061 = vmatpush1.bf16.xpose.msra.mxu0 0
  %1062 = vmatprep.subr.bf16.mxu0 0
  %1063 = vmatpush1.bf16.xpose.msra.mxu0 0
  %1064 = vmatprep.subr.bf16.mxu0 0
  %1065 = vmatpush1.bf16.xpose.msra.mxu0 0
  %1066 = vmatprep.subr.bf16.mxu0 0
  %1067 = vmatpush1.bf16.xpose.msra.mxu0 0
  %1068 = vmatprep.subr.bf16.mxu0 0
  %1069 = vmatpush1.bf16.xpose.msra.mxu0 0
  %1070 = vmatprep.subr.bf16.mxu0 0
  %1071 = vmatpush1.bf16.xpose.msra.mxu0 0
  %1072 = vmatprep.mubr.bf16.mxu0 0
  %1073 = vmatmul.mubr.bf16.gmra.mrb[0].mxu0 %v1035
  %v1074 = vpop.f32.mrb[0].mxu0
  %v1075 = vadd.f32 0.0, %v1074
  %v1076 = vpop.f32.mrb[0].mxu0
  %v1077 = vpop.f32.mrb[0].mxu0
  %v1078 = vadd.f32 0.0, %v1077
  %v1079 = vpop.f32.mrb[0].mxu0
  %1080 = vdwg.mxu0
  %v1081 = vsel %vm306, %v1024, -inf
  %1082 = vmax.xlane.f32.xlu0 %v1081
  %v1083 = vpop.xlane.xlu0 %1082
  %v1084 = vsel %vm306, %v1027, -inf
  %1085 = vmax.xlane.f32.xlu0 %v1084
  %v1086 = vpop.xlane.xlu0 %1085
  %v1087 = vsel %vm306, %v1075, -inf
  %1088 = vmax.xlane.f32.xlu0 %v1087
  %v1089 = vpop.xlane.xlu0 %1088
  %v1090 = vsel %vm306, %v1078, -inf
  %1091 = vmax.xlane.f32.xlu0 %v1090
  %v1092 = vpop.xlane.xlu0 %1091
  %v1093 = vsub.f32 %v1024, %v1083
  %v1094 = vsub.f32 %v1027, %v1086
  %v1095 = vsub.f32 %v1075, %v1089
  %v1096 = vsub.f32 %v1078, %v1092
  %v1097 = vmul.f32 %v1093, 1.442695
  %v1098 = vpow.pop %v1097
  %v1099 = vmul.f32 %v1094, 1.442695
  %v1100 = vpow.pop %v1099
  %v1101 = vmul.f32 %v1095, 1.442695
  %v1102 = vpow.pop %v1101
  %v1103 = vmul.f32 %v1096, 1.442695
  %v1104 = vpow.pop %v1103
  %v1105 = vsel %vm306, %v1098, 0.0
  %1106 = vadd.xlane.f32.xlu0 %v1105
  %v1107 = vpop.xlane.xlu0 %1106
  %v1108 = vsel %vm306, %v1100, 0.0
  %1109 = vadd.xlane.f32.xlu0 %v1108
  %v1110 = vpop.xlane.xlu0 %1109
  %v1111 = vsel %vm306, %v1102, 0.0
  %1112 = vadd.xlane.f32.xlu0 %v1111
  %v1113 = vpop.xlane.xlu0 %1112
  %v1114 = vsel %vm306, %v1104, 0.0
  %1115 = vadd.xlane.f32.xlu0 %v1114
  %v1116 = vpop.xlane.xlu0 %1115
  %v1117 = vrcp.pop %v1107
  %v1118 = vrcp.pop %v1110
  %v1119 = vrcp.pop %v1113
  %v1120 = vrcp.pop %v1116
  %v1121 = vmul.f32 %v1098, %v1117
  %v1122 = vmul.f32 %v1100, %v1118
  %v1123 = vmul.f32 %v1102, %v1119
  %v1124 = vmul.f32 %v1104, %v1120
  %v1125 = vpack.c.bf16 %v1122, %v1121
  %v1126 = vpack.c.bf16 %v1124, %v1123
  %1127 = vrot.lane.b32.xlu0 %v203, 52
  %v1128 = vpop.permute.xlu0 %1127
  %v1131 = vsel %vm306, %v1125, 0
  %1133 = vmatprep.subr.bf16.mxu0 0
  %1134 = vmatpush1.bf16.msra.mxu0 %v1128
  %1135 = vmatprep.subr.bf16.mxu0 0
  %1136 = vmatpush1.bf16.msra.mxu0 0
  %1137 = vmatprep.subr.bf16.mxu0 0
  %1138 = vmatpush1.bf16.msra.mxu0 0
  %1139 = vmatprep.subr.bf16.mxu0 0
  %1140 = vmatpush1.bf16.msra.mxu0 0
  %1141 = vmatprep.subr.bf16.mxu0 0
  %1142 = vmatpush1.bf16.msra.mxu0 0
  %1143 = vmatprep.subr.bf16.mxu0 0
  %1144 = vmatpush1.bf16.msra.mxu0 0
  %1145 = vmatprep.subr.bf16.mxu0 0
  %1146 = vmatpush1.bf16.msra.mxu0 0
  %1147 = vmatprep.subr.bf16.mxu0 0
  %1148 = vmatpush1.bf16.msra.mxu0 0
  %1149 = vmatprep.subr.bf16.mxu0 0
  %1150 = vmatpush1.bf16.msra.mxu0 0
  %1151 = vmatprep.subr.bf16.mxu0 0
  %1152 = vmatpush1.bf16.msra.mxu0 0
  %1153 = vmatprep.subr.bf16.mxu0 0
  %1154 = vmatpush1.bf16.msra.mxu0 0
  %1155 = vmatprep.subr.bf16.mxu0 0
  %1156 = vmatpush1.bf16.msra.mxu0 0
  %1157 = vmatprep.subr.bf16.mxu0 0
  %1158 = vmatpush1.bf16.msra.mxu0 0
  %1159 = vmatprep.subr.bf16.mxu0 0
  %1160 = vmatpush1.bf16.msra.mxu0 0
  %1161 = vmatprep.subr.bf16.mxu0 0
  %1162 = vmatpush1.bf16.msra.mxu0 0
  %1163 = vmatprep.subr.bf16.mxu0 0
  %1164 = vmatpush1.bf16.msra.mxu0 0
  %1165 = vmatprep.mubr.bf16.mxu0 0
  %1166 = vmatmul.mubr.bf16.gmra.mrb[0].mxu0 %v1131
  %v1167 = vpop.f32.mrb[0].mxu0
  %v1168 = vadd.f32 0.0, %v1167
  %v1169 = vpop.f32.mrb[0].mxu0
  %v1170 = vpop.f32.mrb[0].mxu0
  %v1171 = vadd.f32 0.0, %v1170
  %v1172 = vpop.f32.mrb[0].mxu0
  %1173 = vdwg.mxu0
  %1174 = vrot.lane.b32.xlu0 %v204, 52
  %v1175 = vpop.permute.xlu0 %1174
  %v1178 = vsel %vm306, %v1126, 0
  %1180 = vmatprep.subr.bf16.mxu0 0
  %1181 = vmatpush1.bf16.msra.mxu0 %v1175
  %1182 = vmatprep.subr.bf16.mxu0 0
  %1183 = vmatpush1.bf16.msra.mxu0 0
  %1184 = vmatprep.subr.bf16.mxu0 0
  %1185 = vmatpush1.bf16.msra.mxu0 0
  %1186 = vmatprep.subr.bf16.mxu0 0
  %1187 = vmatpush1.bf16.msra.mxu0 0
  %1188 = vmatprep.subr.bf16.mxu0 0
  %1189 = vmatpush1.bf16.msra.mxu0 0
  %1190 = vmatprep.subr.bf16.mxu0 0
  %1191 = vmatpush1.bf16.msra.mxu0 0
  %1192 = vmatprep.subr.bf16.mxu0 0
  %1193 = vmatpush1.bf16.msra.mxu0 0
  %1194 = vmatprep.subr.bf16.mxu0 0
  %1195 = vmatpush1.bf16.msra.mxu0 0
  %1196 = vmatprep.subr.bf16.mxu0 0
  %1197 = vmatpush1.bf16.msra.mxu0 0
  %1198 = vmatprep.subr.bf16.mxu0 0
  %1199 = vmatpush1.bf16.msra.mxu0 0
  %1200 = vmatprep.subr.bf16.mxu0 0
  %1201 = vmatpush1.bf16.msra.mxu0 0
  %1202 = vmatprep.subr.bf16.mxu0 0
  %1203 = vmatpush1.bf16.msra.mxu0 0
  %1204 = vmatprep.subr.bf16.mxu0 0
  %1205 = vmatpush1.bf16.msra.mxu0 0
  %1206 = vmatprep.subr.bf16.mxu0 0
  %1207 = vmatpush1.bf16.msra.mxu0 0
  %1208 = vmatprep.subr.bf16.mxu0 0
  %1209 = vmatpush1.bf16.msra.mxu0 0
  %1210 = vmatprep.subr.bf16.mxu0 0
  %1211 = vmatpush1.bf16.msra.mxu0 0
  %1212 = vmatprep.mubr.bf16.mxu0 0
  %1213 = vmatmul.mubr.bf16.gmra.mrb[0].mxu0 %v1178
  %v1214 = vpop.f32.mrb[0].mxu0
  %v1215 = vadd.f32 0.0, %v1214
  %v1216 = vpop.f32.mrb[0].mxu0
  %v1217 = vpop.f32.mrb[0].mxu0
  %v1218 = vadd.f32 0.0, %v1217
  %v1219 = vpop.f32.mrb[0].mxu0
  %1220 = vdwg.mxu0
  %1225 = vrot.lane.b32.xlu0 %v1168, 12
  %v1226 = vpop.permute.xlu0 %1225
  %1227 = vrot.lane.b32.xlu0 %v1171, 12
  %v1228 = vpop.permute.xlu0 %1227
  %1229 = vrot.lane.b32.xlu0 %v1215, 12
  %v1230 = vpop.permute.xlu0 %1229
  %1231 = vrot.lane.b32.xlu0 %v1218, 12
  %v1232 = vpop.permute.xlu0 %1231
  %vm1237 = vcmask 130144
  %1238 = vst.msk [vmem:[#allocation2] sm:$0xff] %vm1237, %v1226
  %1239 = vst.msk [vmem:[#allocation2 + $0x8] sm:$0xff] %vm1237, %v1228
  %1240 = vst.msk [vmem:[#allocation2 + $0x10] sm:$0xff] %vm1237, %v1230
  %1241 = vst.msk [vmem:[#allocation2 + $0x18] sm:$0xff] %vm1237, %v1232
  %1242 = vrot.lane.b32.xlu0 %v201, 112
  %v1243 = vpop.permute.xlu0 %1242
  %1244 = vrot.lane.b32.xlu0 %v203, 80
  %v1245 = vpop.permute.xlu0 %1244
  %v1247 = vsel %vm208, %v1243, 0
  %v1250 = vsel %vm208, %v1245, 0
  %1252 = vmatprep.subr.bf16.mxu0 0
  %1253 = vmatpush1.bf16.xpose.msra.mxu0 %v1250
  %1254 = vmatprep.subr.bf16.mxu0 0
  %1255 = vmatpush1.bf16.xpose.msra.mxu0 0
  %1256 = vmatprep.subr.bf16.mxu0 0
  %1257 = vmatpush1.bf16.xpose.msra.mxu0 0
  %1258 = vmatprep.subr.bf16.mxu0 0
  %1259 = vmatpush1.bf16.xpose.msra.mxu0 0
  %1260 = vmatprep.subr.bf16.mxu0 0
  %1261 = vmatpush1.bf16.xpose.msra.mxu0 0
  %1262 = vmatprep.subr.bf16.mxu0 0
  %1263 = vmatpush1.bf16.xpose.msra.mxu0 0
  %1264 = vmatprep.subr.bf16.mxu0 0
  %1265 = vmatpush1.bf16.xpose.msra.mxu0 0
  %1266 = vmatprep.subr.bf16.mxu0 0
  %1267 = vmatpush1.bf16.xpose.msra.mxu0 0
  %1268 = vmatprep.subr.bf16.mxu0 0
  %1269 = vmatpush1.bf16.xpose.msra.mxu0 0
  %1270 = vmatprep.subr.bf16.mxu0 0
  %1271 = vmatpush1.bf16.xpose.msra.mxu0 0
  %1272 = vmatprep.subr.bf16.mxu0 0
  %1273 = vmatpush1.bf16.xpose.msra.mxu0 0
  %1274 = vmatprep.subr.bf16.mxu0 0
  %1275 = vmatpush1.bf16.xpose.msra.mxu0 0
  %1276 = vmatprep.subr.bf16.mxu0 0
  %1277 = vmatpush1.bf16.xpose.msra.mxu0 0
  %1278 = vmatprep.subr.bf16.mxu0 0
  %1279 = vmatpush1.bf16.xpose.msra.mxu0 0
  %1280 = vmatprep.subr.bf16.mxu0 0
  %1281 = vmatpush1.bf16.xpose.msra.mxu0 0
  %1282 = vmatprep.subr.bf16.mxu0 0
  %1283 = vmatpush1.bf16.xpose.msra.mxu0 0
  %1284 = vmatprep.mubr.bf16.mxu0 0
  %1285 = vmatmul.mubr.bf16.gmra.mrb[0].mxu0 %v1247
  %v1286 = vpop.f32.mrb[0].mxu0
  %v1287 = vadd.f32 0.0, %v1286
  %v1288 = vpop.f32.mrb[0].mxu0
  %v1289 = vpop.f32.mrb[0].mxu0
  %v1290 = vadd.f32 0.0, %v1289
  %v1291 = vpop.f32.mrb[0].mxu0
  %1292 = vdwg.mxu0
  %1293 = vrot.lane.b32.xlu0 %v202, 112
  %v1294 = vpop.permute.xlu0 %1293
  %1295 = vrot.lane.b32.xlu0 %v204, 80
  %v1296 = vpop.permute.xlu0 %1295
  %v1298 = vsel %vm208, %v1294, 0
  %v1301 = vsel %vm208, %v1296, 0
  %1303 = vmatprep.subr.bf16.mxu0 0
  %1304 = vmatpush1.bf16.xpose.msra.mxu0 %v1301
  %1305 = vmatprep.subr.bf16.mxu0 0
  %1306 = vmatpush1.bf16.xpose.msra.mxu0 0
  %1307 = vmatprep.subr.bf16.mxu0 0
  %1308 = vmatpush1.bf16.xpose.msra.mxu0 0
  %1309 = vmatprep.subr.bf16.mxu0 0
  %1310 = vmatpush1.bf16.xpose.msra.mxu0 0
  %1311 = vmatprep.subr.bf16.mxu0 0
  %1312 = vmatpush1.bf16.xpose.msra.mxu0 0
  %1313 = vmatprep.subr.bf16.mxu0 0
  %1314 = vmatpush1.bf16.xpose.msra.mxu0 0
  %1315 = vmatprep.subr.bf16.mxu0 0
  %1316 = vmatpush1.bf16.xpose.msra.mxu0 0
  %1317 = vmatprep.subr.bf16.mxu0 0
  %1318 = vmatpush1.bf16.xpose.msra.mxu0 0
  %1319 = vmatprep.subr.bf16.mxu0 0
  %1320 = vmatpush1.bf16.xpose.msra.mxu0 0
  %1321 = vmatprep.subr.bf16.mxu0 0
  %1322 = vmatpush1.bf16.xpose.msra.mxu0 0
  %1323 = vmatprep.subr.bf16.mxu0 0
  %1324 = vmatpush1.bf16.xpose.msra.mxu0 0
  %1325 = vmatprep.subr.bf16.mxu0 0
  %1326 = vmatpush1.bf16.xpose.msra.mxu0 0
  %1327 = vmatprep.subr.bf16.mxu0 0
  %1328 = vmatpush1.bf16.xpose.msra.mxu0 0
  %1329 = vmatprep.subr.bf16.mxu0 0
  %1330 = vmatpush1.bf16.xpose.msra.mxu0 0
  %1331 = vmatprep.subr.bf16.mxu0 0
  %1332 = vmatpush1.bf16.xpose.msra.mxu0 0
  %1333 = vmatprep.subr.bf16.mxu0 0
  %1334 = vmatpush1.bf16.xpose.msra.mxu0 0
  %1335 = vmatprep.mubr.bf16.mxu0 0
  %1336 = vmatmul.mubr.bf16.gmra.mrb[0].mxu0 %v1298
  %v1337 = vpop.f32.mrb[0].mxu0
  %v1338 = vadd.f32 0.0, %v1337
  %v1339 = vpop.f32.mrb[0].mxu0
  %v1340 = vpop.f32.mrb[0].mxu0
  %v1341 = vadd.f32 0.0, %v1340
  %v1342 = vpop.f32.mrb[0].mxu0
  %1343 = vdwg.mxu0
  %v1344 = vsel %vm306, %v1287, -inf
  %1345 = vmax.xlane.f32.xlu0 %v1344
  %v1346 = vpop.xlane.xlu0 %1345
  %v1347 = vsel %vm306, %v1290, -inf
  %1348 = vmax.xlane.f32.xlu0 %v1347
  %v1349 = vpop.xlane.xlu0 %1348
  %v1350 = vsel %vm306, %v1338, -inf
  %1351 = vmax.xlane.f32.xlu0 %v1350
  %v1352 = vpop.xlane.xlu0 %1351
  %v1353 = vsel %vm306, %v1341, -inf
  %1354 = vmax.xlane.f32.xlu0 %v1353
  %v1355 = vpop.xlane.xlu0 %1354
  %v1356 = vsub.f32 %v1287, %v1346
  %v1357 = vsub.f32 %v1290, %v1349
  %v1358 = vsub.f32 %v1338, %v1352
  %v1359 = vsub.f32 %v1341, %v1355
  %v1360 = vmul.f32 %v1356, 1.442695
  %v1361 = vpow.pop %v1360
  %v1362 = vmul.f32 %v1357, 1.442695
  %v1363 = vpow.pop %v1362
  %v1364 = vmul.f32 %v1358, 1.442695
  %v1365 = vpow.pop %v1364
  %v1366 = vmul.f32 %v1359, 1.442695
  %v1367 = vpow.pop %v1366
  %v1368 = vsel %vm306, %v1361, 0.0
  %1369 = vadd.xlane.f32.xlu0 %v1368
  %v1370 = vpop.xlane.xlu0 %1369
  %v1371 = vsel %vm306, %v1363, 0.0
  %1372 = vadd.xlane.f32.xlu0 %v1371
  %v1373 = vpop.xlane.xlu0 %1372
  %v1374 = vsel %vm306, %v1365, 0.0
  %1375 = vadd.xlane.f32.xlu0 %v1374
  %v1376 = vpop.xlane.xlu0 %1375
  %v1377 = vsel %vm306, %v1367, 0.0
  %1378 = vadd.xlane.f32.xlu0 %v1377
  %v1379 = vpop.xlane.xlu0 %1378
  %v1380 = vrcp.pop %v1370
  %v1381 = vrcp.pop %v1373
  %v1382 = vrcp.pop %v1376
  %v1383 = vrcp.pop %v1379
  %v1384 = vmul.f32 %v1361, %v1380
  %v1385 = vmul.f32 %v1363, %v1381
  %v1386 = vmul.f32 %v1365, %v1382
  %v1387 = vmul.f32 %v1367, %v1383
  %v1388 = vpack.c.bf16 %v1385, %v1384
  %v1389 = vpack.c.bf16 %v1387, %v1386
  %1390 = vrot.lane.b32.xlu0 %v203, 48
  %v1391 = vpop.permute.xlu0 %1390
  %v1394 = vsel %vm306, %v1388, 0
  %1396 = vmatprep.subr.bf16.mxu0 0
  %1397 = vmatpush1.bf16.msra.mxu0 %v1391
  %1398 = vmatprep.subr.bf16.mxu0 0
  %1399 = vmatpush1.bf16.msra.mxu0 0
  %1400 = vmatprep.subr.bf16.mxu0 0
  %1401 = vmatpush1.bf16.msra.mxu0 0
  %1402 = vmatprep.subr.bf16.mxu0 0
  %1403 = vmatpush1.bf16.msra.mxu0 0
  %1404 = vmatprep.subr.bf16.mxu0 0
  %1405 = vmatpush1.bf16.msra.mxu0 0
  %1406 = vmatprep.subr.bf16.mxu0 0
  %1407 = vmatpush1.bf16.msra.mxu0 0
  %1408 = vmatprep.subr.bf16.mxu0 0
  %1409 = vmatpush1.bf16.msra.mxu0 0
  %1410 = vmatprep.subr.bf16.mxu0 0
  %1411 = vmatpush1.bf16.msra.mxu0 0
  %1412 = vmatprep.subr.bf16.mxu0 0
  %1413 = vmatpush1.bf16.msra.mxu0 0
  %1414 = vmatprep.subr.bf16.mxu0 0
  %1415 = vmatpush1.bf16.msra.mxu0 0
  %1416 = vmatprep.subr.bf16.mxu0 0
  %1417 = vmatpush1.bf16.msra.mxu0 0
  %1418 = vmatprep.subr.bf16.mxu0 0
  %1419 = vmatpush1.bf16.msra.mxu0 0
  %1420 = vmatprep.subr.bf16.mxu0 0
  %1421 = vmatpush1.bf16.msra.mxu0 0
  %1422 = vmatprep.subr.bf16.mxu0 0
  %1423 = vmatpush1.bf16.msra.mxu0 0
  %1424 = vmatprep.subr.bf16.mxu0 0
  %1425 = vmatpush1.bf16.msra.mxu0 0
  %1426 = vmatprep.subr.bf16.mxu0 0
  %1427 = vmatpush1.bf16.msra.mxu0 0
  %1428 = vmatprep.mubr.bf16.mxu0 0
  %1429 = vmatmul.mubr.bf16.gmra.mrb[0].mxu0 %v1394
  %v1430 = vpop.f32.mrb[0].mxu0
  %v1431 = vadd.f32 0.0, %v1430
  %v1432 = vpop.f32.mrb[0].mxu0
  %v1433 = vpop.f32.mrb[0].mxu0
  %v1434 = vadd.f32 0.0, %v1433
  %v1435 = vpop.f32.mrb[0].mxu0
  %1436 = vdwg.mxu0
  %1437 = vrot.lane.b32.xlu0 %v204, 48
  %v1438 = vpop.permute.xlu0 %1437
  %v1441 = vsel %vm306, %v1389, 0
  %1443 = vmatprep.subr.bf16.mxu0 0
  %1444 = vmatpush1.bf16.msra.mxu0 %v1438
  %1445 = vmatprep.subr.bf16.mxu0 0
  %1446 = vmatpush1.bf16.msra.mxu0 0
  %1447 = vmatprep.subr.bf16.mxu0 0
  %1448 = vmatpush1.bf16.msra.mxu0 0
  %1449 = vmatprep.subr.bf16.mxu0 0
  %1450 = vmatpush1.bf16.msra.mxu0 0
  %1451 = vmatprep.subr.bf16.mxu0 0
  %1452 = vmatpush1.bf16.msra.mxu0 0
  %1453 = vmatprep.subr.bf16.mxu0 0
  %1454 = vmatpush1.bf16.msra.mxu0 0
  %1455 = vmatprep.subr.bf16.mxu0 0
  %1456 = vmatpush1.bf16.msra.mxu0 0
  %1457 = vmatprep.subr.bf16.mxu0 0
  %1458 = vmatpush1.bf16.msra.mxu0 0
  %1459 = vmatprep.subr.bf16.mxu0 0
  %1460 = vmatpush1.bf16.msra.mxu0 0
  %1461 = vmatprep.subr.bf16.mxu0 0
  %1462 = vmatpush1.bf16.msra.mxu0 0
  %1463 = vmatprep.subr.bf16.mxu0 0
  %1464 = vmatpush1.bf16.msra.mxu0 0
  %1465 = vmatprep.subr.bf16.mxu0 0
  %1466 = vmatpush1.bf16.msra.mxu0 0
  %1467 = vmatprep.subr.bf16.mxu0 0
  %1468 = vmatpush1.bf16.msra.mxu0 0
  %1469 = vmatprep.subr.bf16.mxu0 0
  %1470 = vmatpush1.bf16.msra.mxu0 0
  %1471 = vmatprep.subr.bf16.mxu0 0
  %1472 = vmatpush1.bf16.msra.mxu0 0
  %1473 = vmatprep.subr.bf16.mxu0 0
  %1474 = vmatpush1.bf16.msra.mxu0 0
  %1475 = vmatprep.mubr.bf16.mxu0 0
  %1476 = vmatmul.mubr.bf16.gmra.mrb[0].mxu0 %v1441
  %v1477 = vpop.f32.mrb[0].mxu0
  %v1478 = vadd.f32 0.0, %v1477
  %v1479 = vpop.f32.mrb[0].mxu0
  %v1480 = vpop.f32.mrb[0].mxu0
  %v1481 = vadd.f32 0.0, %v1480
  %v1482 = vpop.f32.mrb[0].mxu0
  %1483 = vdwg.mxu0
  %1488 = vrot.lane.b32.xlu0 %v1431, 16
  %v1489 = vpop.permute.xlu0 %1488
  %1490 = vrot.lane.b32.xlu0 %v1434, 16
  %v1491 = vpop.permute.xlu0 %1490
  %1492 = vrot.lane.b32.xlu0 %v1478, 16
  %v1493 = vpop.permute.xlu0 %1492
  %1494 = vrot.lane.b32.xlu0 %v1481, 16
  %v1495 = vpop.permute.xlu0 %1494
  %vm1500 = vcmask 162944
  %1501 = vst.msk [vmem:[#allocation2] sm:$0xff] %vm1500, %v1489
  %1502 = vst.msk [vmem:[#allocation2 + $0x8] sm:$0xff] %vm1500, %v1491
  %1503 = vst.msk [vmem:[#allocation2 + $0x10] sm:$0xff] %vm1500, %v1493
  %1504 = vst.msk [vmem:[#allocation2 + $0x18] sm:$0xff] %vm1500, %v1495
  %1505 = vrot.lane.b32.xlu0 %v201, 108
  %v1506 = vpop.permute.xlu0 %1505
  %1507 = vrot.lane.b32.xlu0 %v203, 76
  %v1508 = vpop.permute.xlu0 %1507
  %v1510 = vsel %vm208, %v1506, 0
  %v1513 = vsel %vm208, %v1508, 0
  %1515 = vmatprep.subr.bf16.mxu0 0
  %1516 = vmatpush1.bf16.xpose.msra.mxu0 %v1513
  %1517 = vmatprep.subr.bf16.mxu0 0
  %1518 = vmatpush1.bf16.xpose.msra.mxu0 0
  %1519 = vmatprep.subr.bf16.mxu0 0
  %1520 = vmatpush1.bf16.xpose.msra.mxu0 0
  %1521 = vmatprep.subr.bf16.mxu0 0
  %1522 = vmatpush1.bf16.xpose.msra.mxu0 0
  %1523 = vmatprep.subr.bf16.mxu0 0
  %1524 = vmatpush1.bf16.xpose.msra.mxu0 0
  %1525 = vmatprep.subr.bf16.mxu0 0
  %1526 = vmatpush1.bf16.xpose.msra.mxu0 0
  %1527 = vmatprep.subr.bf16.mxu0 0
  %1528 = vmatpush1.bf16.xpose.msra.mxu0 0
  %1529 = vmatprep.subr.bf16.mxu0 0
  %1530 = vmatpush1.bf16.xpose.msra.mxu0 0
  %1531 = vmatprep.subr.bf16.mxu0 0
  %1532 = vmatpush1.bf16.xpose.msra.mxu0 0
  %1533 = vmatprep.subr.bf16.mxu0 0
  %1534 = vmatpush1.bf16.xpose.msra.mxu0 0
  %1535 = vmatprep.subr.bf16.mxu0 0
  %1536 = vmatpush1.bf16.xpose.msra.mxu0 0
  %1537 = vmatprep.subr.bf16.mxu0 0
  %1538 = vmatpush1.bf16.xpose.msra.mxu0 0
  %1539 = vmatprep.subr.bf16.mxu0 0
  %1540 = vmatpush1.bf16.xpose.msra.mxu0 0
  %1541 = vmatprep.subr.bf16.mxu0 0
  %1542 = vmatpush1.bf16.xpose.msra.mxu0 0
  %1543 = vmatprep.subr.bf16.mxu0 0
  %1544 = vmatpush1.bf16.xpose.msra.mxu0 0
  %1545 = vmatprep.subr.bf16.mxu0 0
  %1546 = vmatpush1.bf16.xpose.msra.mxu0 0
  %1547 = vmatprep.mubr.bf16.mxu0 0
  %1548 = vmatmul.mubr.bf16.gmra.mrb[0].mxu0 %v1510
  %v1549 = vpop.f32.mrb[0].mxu0
  %v1550 = vadd.f32 0.0, %v1549
  %v1551 = vpop.f32.mrb[0].mxu0
  %v1552 = vpop.f32.mrb[0].mxu0
  %v1553 = vadd.f32 0.0, %v1552
  %v1554 = vpop.f32.mrb[0].mxu0
  %1555 = vdwg.mxu0
  %1556 = vrot.lane.b32.xlu0 %v202, 108
  %v1557 = vpop.permute.xlu0 %1556
  %1558 = vrot.lane.b32.xlu0 %v204, 76
  %v1559 = vpop.permute.xlu0 %1558
  %v1561 = vsel %vm208, %v1557, 0
  %v1564 = vsel %vm208, %v1559, 0
  %1566 = vmatprep.subr.bf16.mxu0 0
  %1567 = vmatpush1.bf16.xpose.msra.mxu0 %v1564
  %1568 = vmatprep.subr.bf16.mxu0 0
  %1569 = vmatpush1.bf16.xpose.msra.mxu0 0
  %1570 = vmatprep.subr.bf16.mxu0 0
  %1571 = vmatpush1.bf16.xpose.msra.mxu0 0
  %1572 = vmatprep.subr.bf16.mxu0 0
  %1573 = vmatpush1.bf16.xpose.msra.mxu0 0
  %1574 = vmatprep.subr.bf16.mxu0 0
  %1575 = vmatpush1.bf16.xpose.msra.mxu0 0
  %1576 = vmatprep.subr.bf16.mxu0 0
  %1577 = vmatpush1.bf16.xpose.msra.mxu0 0
  %1578 = vmatprep.subr.bf16.mxu0 0
  %1579 = vmatpush1.bf16.xpose.msra.mxu0 0
  %1580 = vmatprep.subr.bf16.mxu0 0
  %1581 = vmatpush1.bf16.xpose.msra.mxu0 0
  %1582 = vmatprep.subr.bf16.mxu0 0
  %1583 = vmatpush1.bf16.xpose.msra.mxu0 0
  %1584 = vmatprep.subr.bf16.mxu0 0
  %1585 = vmatpush1.bf16.xpose.msra.mxu0 0
  %1586 = vmatprep.subr.bf16.mxu0 0
  %1587 = vmatpush1.bf16.xpose.msra.mxu0 0
  %1588 = vmatprep.subr.bf16.mxu0 0
  %1589 = vmatpush1.bf16.xpose.msra.mxu0 0
  %1590 = vmatprep.subr.bf16.mxu0 0
  %1591 = vmatpush1.bf16.xpose.msra.mxu0 0
  %1592 = vmatprep.subr.bf16.mxu0 0
  %1593 = vmatpush1.bf16.xpose.msra.mxu0 0
  %1594 = vmatprep.subr.bf16.mxu0 0
  %1595 = vmatpush1.bf16.xpose.msra.mxu0 0
  %1596 = vmatprep.subr.bf16.mxu0 0
  %1597 = vmatpush1.bf16.xpose.msra.mxu0 0
  %1598 = vmatprep.mubr.bf16.mxu0 0
  %1599 = vmatmul.mubr.bf16.gmra.mrb[0].mxu0 %v1561
  %v1600 = vpop.f32.mrb[0].mxu0
  %v1601 = vadd.f32 0.0, %v1600
  %v1602 = vpop.f32.mrb[0].mxu0
  %v1603 = vpop.f32.mrb[0].mxu0
  %v1604 = vadd.f32 0.0, %v1603
  %v1605 = vpop.f32.mrb[0].mxu0
  %1606 = vdwg.mxu0
  %v1607 = vsel %vm306, %v1550, -inf
  %1608 = vmax.xlane.f32.xlu0 %v1607
  %v1609 = vpop.xlane.xlu0 %1608
  %v1610 = vsel %vm306, %v1553, -inf
  %1611 = vmax.xlane.f32.xlu0 %v1610
  %v1612 = vpop.xlane.xlu0 %1611
  %v1613 = vsel %vm306, %v1601, -inf
  %1614 = vmax.xlane.f32.xlu0 %v1613
  %v1615 = vpop.xlane.xlu0 %1614
  %v1616 = vsel %vm306, %v1604, -inf
  %1617 = vmax.xlane.f32.xlu0 %v1616
  %v1618 = vpop.xlane.xlu0 %1617
  %v1619 = vsub.f32 %v1550, %v1609
  %v1620 = vsub.f32 %v1553, %v1612
  %v1621 = vsub.f32 %v1601, %v1615
  %v1622 = vsub.f32 %v1604, %v1618
  %v1623 = vmul.f32 %v1619, 1.442695
  %v1624 = vpow.pop %v1623
  %v1625 = vmul.f32 %v1620, 1.442695
  %v1626 = vpow.pop %v1625
  %v1627 = vmul.f32 %v1621, 1.442695
  %v1628 = vpow.pop %v1627
  %v1629 = vmul.f32 %v1622, 1.442695
  %v1630 = vpow.pop %v1629
  %v1631 = vsel %vm306, %v1624, 0.0
  %1632 = vadd.xlane.f32.xlu0 %v1631
  %v1633 = vpop.xlane.xlu0 %1632
  %v1634 = vsel %vm306, %v1626, 0.0
  %1635 = vadd.xlane.f32.xlu0 %v1634
  %v1636 = vpop.xlane.xlu0 %1635
  %v1637 = vsel %vm306, %v1628, 0.0
  %1638 = vadd.xlane.f32.xlu0 %v1637
  %v1639 = vpop.xlane.xlu0 %1638
  %v1640 = vsel %vm306, %v1630, 0.0
  %1641 = vadd.xlane.f32.xlu0 %v1640
  %v1642 = vpop.xlane.xlu0 %1641
  %v1643 = vrcp.pop %v1633
  %v1644 = vrcp.pop %v1636
  %v1645 = vrcp.pop %v1639
  %v1646 = vrcp.pop %v1642
  %v1647 = vmul.f32 %v1624, %v1643
  %v1648 = vmul.f32 %v1626, %v1644
  %v1649 = vmul.f32 %v1628, %v1645
  %v1650 = vmul.f32 %v1630, %v1646
  %v1651 = vpack.c.bf16 %v1648, %v1647
  %v1652 = vpack.c.bf16 %v1650, %v1649
  %1653 = vrot.lane.b32.xlu0 %v203, 44
  %v1654 = vpop.permute.xlu0 %1653
  %v1657 = vsel %vm306, %v1651, 0
  %1659 = vmatprep.subr.bf16.mxu0 0
  %1660 = vmatpush1.bf16.msra.mxu0 %v1654
  %1661 = vmatprep.subr.bf16.mxu0 0
  %1662 = vmatpush1.bf16.msra.mxu0 0
  %1663 = vmatprep.subr.bf16.mxu0 0
  %1664 = vmatpush1.bf16.msra.mxu0 0
  %1665 = vmatprep.subr.bf16.mxu0 0
  %1666 = vmatpush1.bf16.msra.mxu0 0
  %1667 = vmatprep.subr.bf16.mxu0 0
  %1668 = vmatpush1.bf16.msra.mxu0 0
  %1669 = vmatprep.subr.bf16.mxu0 0
  %1670 = vmatpush1.bf16.msra.mxu0 0
  %1671 = vmatprep.subr.bf16.mxu0 0
  %1672 = vmatpush1.bf16.msra.mxu0 0
  %1673 = vmatprep.subr.bf16.mxu0 0
  %1674 = vmatpush1.bf16.msra.mxu0 0
  %1675 = vmatprep.subr.bf16.mxu0 0
  %1676 = vmatpush1.bf16.msra.mxu0 0
  %1677 = vmatprep.subr.bf16.mxu0 0
  %1678 = vmatpush1.bf16.msra.mxu0 0
  %1679 = vmatprep.subr.bf16.mxu0 0
  %1680 = vmatpush1.bf16.msra.mxu0 0
  %1681 = vmatprep.subr.bf16.mxu0 0
  %1682 = vmatpush1.bf16.msra.mxu0 0
  %1683 = vmatprep.subr.bf16.mxu0 0
  %1684 = vmatpush1.bf16.msra.mxu0 0
  %1685 = vmatprep.subr.bf16.mxu0 0
  %1686 = vmatpush1.bf16.msra.mxu0 0
  %1687 = vmatprep.subr.bf16.mxu0 0
  %1688 = vmatpush1.bf16.msra.mxu0 0
  %1689 = vmatprep.subr.bf16.mxu0 0
  %1690 = vmatpush1.bf16.msra.mxu0 0
  %1691 = vmatprep.mubr.bf16.mxu0 0
  %1692 = vmatmul.mubr.bf16.gmra.mrb[0].mxu0 %v1657
  %v1693 = vpop.f32.mrb[0].mxu0
  %v1694 = vadd.f32 0.0, %v1693
  %v1695 = vpop.f32.mrb[0].mxu0
  %v1696 = vpop.f32.mrb[0].mxu0
  %v1697 = vadd.f32 0.0, %v1696
  %v1698 = vpop.f32.mrb[0].mxu0
  %1699 = vdwg.mxu0
  %1700 = vrot.lane.b32.xlu0 %v204, 44
  %v1701 = vpop.permute.xlu0 %1700
  %v1704 = vsel %vm306, %v1652, 0
  %1706 = vmatprep.subr.bf16.mxu0 0
  %1707 = vmatpush1.bf16.msra.mxu0 %v1701
  %1708 = vmatprep.subr.bf16.mxu0 0
  %1709 = vmatpush1.bf16.msra.mxu0 0
  %1710 = vmatprep.subr.bf16.mxu0 0
  %1711 = vmatpush1.bf16.msra.mxu0 0
  %1712 = vmatprep.subr.bf16.mxu0 0
  %1713 = vmatpush1.bf16.msra.mxu0 0
  %1714 = vmatprep.subr.bf16.mxu0 0
  %1715 = vmatpush1.bf16.msra.mxu0 0
  %1716 = vmatprep.subr.bf16.mxu0 0
  %1717 = vmatpush1.bf16.msra.mxu0 0
  %1718 = vmatprep.subr.bf16.mxu0 0
  %1719 = vmatpush1.bf16.msra.mxu0 0
  %1720 = vmatprep.subr.bf16.mxu0 0
  %1721 = vmatpush1.bf16.msra.mxu0 0
  %1722 = vmatprep.subr.bf16.mxu0 0
  %1723 = vmatpush1.bf16.msra.mxu0 0
  %1724 = vmatprep.subr.bf16.mxu0 0
  %1725 = vmatpush1.bf16.msra.mxu0 0
  %1726 = vmatprep.subr.bf16.mxu0 0
  %1727 = vmatpush1.bf16.msra.mxu0 0
  %1728 = vmatprep.subr.bf16.mxu0 0
  %1729 = vmatpush1.bf16.msra.mxu0 0
  %1730 = vmatprep.subr.bf16.mxu0 0
  %1731 = vmatpush1.bf16.msra.mxu0 0
  %1732 = vmatprep.subr.bf16.mxu0 0
  %1733 = vmatpush1.bf16.msra.mxu0 0
  %1734 = vmatprep.subr.bf16.mxu0 0
  %1735 = vmatpush1.bf16.msra.mxu0 0
  %1736 = vmatprep.subr.bf16.mxu0 0
  %1737 = vmatpush1.bf16.msra.mxu0 0
  %1738 = vmatprep.mubr.bf16.mxu0 0
  %1739 = vmatmul.mubr.bf16.gmra.mrb[0].mxu0 %v1704
  %v1740 = vpop.f32.mrb[0].mxu0
  %v1741 = vadd.f32 0.0, %v1740
  %v1742 = vpop.f32.mrb[0].mxu0
  %v1743 = vpop.f32.mrb[0].mxu0
  %v1744 = vadd.f32 0.0, %v1743
  %v1745 = vpop.f32.mrb[0].mxu0
  %1746 = vdwg.mxu0
  %1751 = vrot.lane.b32.xlu0 %v1694, 20
  %v1752 = vpop.permute.xlu0 %1751
  %1753 = vrot.lane.b32.xlu0 %v1697, 20
  %v1754 = vpop.permute.xlu0 %1753
  %1755 = vrot.lane.b32.xlu0 %v1741, 20
  %v1756 = vpop.permute.xlu0 %1755
  %1757 = vrot.lane.b32.xlu0 %v1744, 20
  %v1758 = vpop.permute.xlu0 %1757
  %vm1763 = vcmask 195744
  %1764 = vst.msk [vmem:[#allocation2] sm:$0xff] %vm1763, %v1752
  %1765 = vst.msk [vmem:[#allocation2 + $0x8] sm:$0xff] %vm1763, %v1754
  %1766 = vst.msk [vmem:[#allocation2 + $0x10] sm:$0xff] %vm1763, %v1756
  %1767 = vst.msk [vmem:[#allocation2 + $0x18] sm:$0xff] %vm1763, %v1758
  %1768 = vrot.lane.b32.xlu0 %v201, 104
  %v1769 = vpop.permute.xlu0 %1768
  %1770 = vrot.lane.b32.xlu0 %v203, 72
  %v1771 = vpop.permute.xlu0 %1770
  %v1773 = vsel %vm208, %v1769, 0
  %v1776 = vsel %vm208, %v1771, 0
  %1778 = vmatprep.subr.bf16.mxu0 0
  %1779 = vmatpush1.bf16.xpose.msra.mxu0 %v1776
  %1780 = vmatprep.subr.bf16.mxu0 0
  %1781 = vmatpush1.bf16.xpose.msra.mxu0 0
  %1782 = vmatprep.subr.bf16.mxu0 0
  %1783 = vmatpush1.bf16.xpose.msra.mxu0 0
  %1784 = vmatprep.subr.bf16.mxu0 0
  %1785 = vmatpush1.bf16.xpose.msra.mxu0 0
  %1786 = vmatprep.subr.bf16.mxu0 0
  %1787 = vmatpush1.bf16.xpose.msra.mxu0 0
  %1788 = vmatprep.subr.bf16.mxu0 0
  %1789 = vmatpush1.bf16.xpose.msra.mxu0 0
  %1790 = vmatprep.subr.bf16.mxu0 0
  %1791 = vmatpush1.bf16.xpose.msra.mxu0 0
  %1792 = vmatprep.subr.bf16.mxu0 0
  %1793 = vmatpush1.bf16.xpose.msra.mxu0 0
  %1794 = vmatprep.subr.bf16.mxu0 0
  %1795 = vmatpush1.bf16.xpose.msra.mxu0 0
  %1796 = vmatprep.subr.bf16.mxu0 0
  %1797 = vmatpush1.bf16.xpose.msra.mxu0 0
  %1798 = vmatprep.subr.bf16.mxu0 0
  %1799 = vmatpush1.bf16.xpose.msra.mxu0 0
  %1800 = vmatprep.subr.bf16.mxu0 0
  %1801 = vmatpush1.bf16.xpose.msra.mxu0 0
  %1802 = vmatprep.subr.bf16.mxu0 0
  %1803 = vmatpush1.bf16.xpose.msra.mxu0 0
  %1804 = vmatprep.subr.bf16.mxu0 0
  %1805 = vmatpush1.bf16.xpose.msra.mxu0 0
  %1806 = vmatprep.subr.bf16.mxu0 0
  %1807 = vmatpush1.bf16.xpose.msra.mxu0 0
  %1808 = vmatprep.subr.bf16.mxu0 0
  %1809 = vmatpush1.bf16.xpose.msra.mxu0 0
  %1810 = vmatprep.mubr.bf16.mxu0 0
  %1811 = vmatmul.mubr.bf16.gmra.mrb[0].mxu0 %v1773
  %v1812 = vpop.f32.mrb[0].mxu0
  %v1813 = vadd.f32 0.0, %v1812
  %v1814 = vpop.f32.mrb[0].mxu0
  %v1815 = vpop.f32.mrb[0].mxu0
  %v1816 = vadd.f32 0.0, %v1815
  %v1817 = vpop.f32.mrb[0].mxu0
  %1818 = vdwg.mxu0
  %1819 = vrot.lane.b32.xlu0 %v202, 104
  %v1820 = vpop.permute.xlu0 %1819
  %1821 = vrot.lane.b32.xlu0 %v204, 72
  %v1822 = vpop.permute.xlu0 %1821
  %v1824 = vsel %vm208, %v1820, 0
  %v1827 = vsel %vm208, %v1822, 0
  %1829 = vmatprep.subr.bf16.mxu0 0
  %1830 = vmatpush1.bf16.xpose.msra.mxu0 %v1827
  %1831 = vmatprep.subr.bf16.mxu0 0
  %1832 = vmatpush1.bf16.xpose.msra.mxu0 0
  %1833 = vmatprep.subr.bf16.mxu0 0
  %1834 = vmatpush1.bf16.xpose.msra.mxu0 0
  %1835 = vmatprep.subr.bf16.mxu0 0
  %1836 = vmatpush1.bf16.xpose.msra.mxu0 0
  %1837 = vmatprep.subr.bf16.mxu0 0
  %1838 = vmatpush1.bf16.xpose.msra.mxu0 0
  %1839 = vmatprep.subr.bf16.mxu0 0
  %1840 = vmatpush1.bf16.xpose.msra.mxu0 0
  %1841 = vmatprep.subr.bf16.mxu0 0
  %1842 = vmatpush1.bf16.xpose.msra.mxu0 0
  %1843 = vmatprep.subr.bf16.mxu0 0
  %1844 = vmatpush1.bf16.xpose.msra.mxu0 0
  %1845 = vmatprep.subr.bf16.mxu0 0
  %1846 = vmatpush1.bf16.xpose.msra.mxu0 0
  %1847 = vmatprep.subr.bf16.mxu0 0
  %1848 = vmatpush1.bf16.xpose.msra.mxu0 0
  %1849 = vmatprep.subr.bf16.mxu0 0
  %1850 = vmatpush1.bf16.xpose.msra.mxu0 0
  %1851 = vmatprep.subr.bf16.mxu0 0
  %1852 = vmatpush1.bf16.xpose.msra.mxu0 0
  %1853 = vmatprep.subr.bf16.mxu0 0
  %1854 = vmatpush1.bf16.xpose.msra.mxu0 0
  %1855 = vmatprep.subr.bf16.mxu0 0
  %1856 = vmatpush1.bf16.xpose.msra.mxu0 0
  %1857 = vmatprep.subr.bf16.mxu0 0
  %1858 = vmatpush1.bf16.xpose.msra.mxu0 0
  %1859 = vmatprep.subr.bf16.mxu0 0
  %1860 = vmatpush1.bf16.xpose.msra.mxu0 0
  %1861 = vmatprep.mubr.bf16.mxu0 0
  %1862 = vmatmul.mubr.bf16.gmra.mrb[0].mxu0 %v1824
  %v1863 = vpop.f32.mrb[0].mxu0
  %v1864 = vadd.f32 0.0, %v1863
  %v1865 = vpop.f32.mrb[0].mxu0
  %v1866 = vpop.f32.mrb[0].mxu0
  %v1867 = vadd.f32 0.0, %v1866
  %v1868 = vpop.f32.mrb[0].mxu0
  %1869 = vdwg.mxu0
  %v1870 = vsel %vm306, %v1813, -inf
  %1871 = vmax.xlane.f32.xlu0 %v1870
  %v1872 = vpop.xlane.xlu0 %1871
  %v1873 = vsel %vm306, %v1816, -inf
  %1874 = vmax.xlane.f32.xlu0 %v1873
  %v1875 = vpop.xlane.xlu0 %1874
  %v1876 = vsel %vm306, %v1864, -inf
  %1877 = vmax.xlane.f32.xlu0 %v1876
  %v1878 = vpop.xlane.xlu0 %1877
  %v1879 = vsel %vm306, %v1867, -inf
  %1880 = vmax.xlane.f32.xlu0 %v1879
  %v1881 = vpop.xlane.xlu0 %1880
  %v1882 = vsub.f32 %v1813, %v1872
  %v1883 = vsub.f32 %v1816, %v1875
  %v1884 = vsub.f32 %v1864, %v1878
  %v1885 = vsub.f32 %v1867, %v1881
  %v1886 = vmul.f32 %v1882, 1.442695
  %v1887 = vpow.pop %v1886
  %v1888 = vmul.f32 %v1883, 1.442695
  %v1889 = vpow.pop %v1888
  %v1890 = vmul.f32 %v1884, 1.442695
  %v1891 = vpow.pop %v1890
  %v1892 = vmul.f32 %v1885, 1.442695
  %v1893 = vpow.pop %v1892
  %v1894 = vsel %vm306, %v1887, 0.0
  %1895 = vadd.xlane.f32.xlu0 %v1894
  %v1896 = vpop.xlane.xlu0 %1895
  %v1897 = vsel %vm306, %v1889, 0.0
  %1898 = vadd.xlane.f32.xlu0 %v1897
  %v1899 = vpop.xlane.xlu0 %1898
  %v1900 = vsel %vm306, %v1891, 0.0
  %1901 = vadd.xlane.f32.xlu0 %v1900
  %v1902 = vpop.xlane.xlu0 %1901
  %v1903 = vsel %vm306, %v1893, 0.0
  %1904 = vadd.xlane.f32.xlu0 %v1903
  %v1905 = vpop.xlane.xlu0 %1904
  %v1906 = vrcp.pop %v1896
  %v1907 = vrcp.pop %v1899
  %v1908 = vrcp.pop %v1902
  %v1909 = vrcp.pop %v1905
  %v1910 = vmul.f32 %v1887, %v1906
  %v1911 = vmul.f32 %v1889, %v1907
  %v1912 = vmul.f32 %v1891, %v1908
  %v1913 = vmul.f32 %v1893, %v1909
  %v1914 = vpack.c.bf16 %v1911, %v1910
  %v1915 = vpack.c.bf16 %v1913, %v1912
  %1916 = vrot.lane.b32.xlu0 %v203, 40
  %v1917 = vpop.permute.xlu0 %1916
  %v1920 = vsel %vm306, %v1914, 0
  %1922 = vmatprep.subr.bf16.mxu0 0
  %1923 = vmatpush1.bf16.msra.mxu0 %v1917
  %1924 = vmatprep.subr.bf16.mxu0 0
  %1925 = vmatpush1.bf16.msra.mxu0 0
  %1926 = vmatprep.subr.bf16.mxu0 0
  %1927 = vmatpush1.bf16.msra.mxu0 0
  %1928 = vmatprep.subr.bf16.mxu0 0
  %1929 = vmatpush1.bf16.msra.mxu0 0
  %1930 = vmatprep.subr.bf16.mxu0 0
  %1931 = vmatpush1.bf16.msra.mxu0 0
  %1932 = vmatprep.subr.bf16.mxu0 0
  %1933 = vmatpush1.bf16.msra.mxu0 0
  %1934 = vmatprep.subr.bf16.mxu0 0
  %1935 = vmatpush1.bf16.msra.mxu0 0
  %1936 = vmatprep.subr.bf16.mxu0 0
  %1937 = vmatpush1.bf16.msra.mxu0 0
  %1938 = vmatprep.subr.bf16.mxu0 0
  %1939 = vmatpush1.bf16.msra.mxu0 0
  %1940 = vmatprep.subr.bf16.mxu0 0
  %1941 = vmatpush1.bf16.msra.mxu0 0
  %1942 = vmatprep.subr.bf16.mxu0 0
  %1943 = vmatpush1.bf16.msra.mxu0 0
  %1944 = vmatprep.subr.bf16.mxu0 0
  %1945 = vmatpush1.bf16.msra.mxu0 0
  %1946 = vmatprep.subr.bf16.mxu0 0
  %1947 = vmatpush1.bf16.msra.mxu0 0
  %1948 = vmatprep.subr.bf16.mxu0 0
  %1949 = vmatpush1.bf16.msra.mxu0 0
  %1950 = vmatprep.subr.bf16.mxu0 0
  %1951 = vmatpush1.bf16.msra.mxu0 0
  %1952 = vmatprep.subr.bf16.mxu0 0
  %1953 = vmatpush1.bf16.msra.mxu0 0
  %1954 = vmatprep.mubr.bf16.mxu0 0
  %1955 = vmatmul.mubr.bf16.gmra.mrb[0].mxu0 %v1920
  %v1956 = vpop.f32.mrb[0].mxu0
  %v1957 = vadd.f32 0.0, %v1956
  %v1958 = vpop.f32.mrb[0].mxu0
  %v1959 = vpop.f32.mrb[0].mxu0
  %v1960 = vadd.f32 0.0, %v1959
  %v1961 = vpop.f32.mrb[0].mxu0
  %1962 = vdwg.mxu0
  %1963 = vrot.lane.b32.xlu0 %v204, 40
  %v1964 = vpop.permute.xlu0 %1963
  %v1967 = vsel %vm306, %v1915, 0
  %1969 = vmatprep.subr.bf16.mxu0 0
  %1970 = vmatpush1.bf16.msra.mxu0 %v1964
  %1971 = vmatprep.subr.bf16.mxu0 0
  %1972 = vmatpush1.bf16.msra.mxu0 0
  %1973 = vmatprep.subr.bf16.mxu0 0
  %1974 = vmatpush1.bf16.msra.mxu0 0
  %1975 = vmatprep.subr.bf16.mxu0 0
  %1976 = vmatpush1.bf16.msra.mxu0 0
  %1977 = vmatprep.subr.bf16.mxu0 0
  %1978 = vmatpush1.bf16.msra.mxu0 0
  %1979 = vmatprep.subr.bf16.mxu0 0
  %1980 = vmatpush1.bf16.msra.mxu0 0
  %1981 = vmatprep.subr.bf16.mxu0 0
  %1982 = vmatpush1.bf16.msra.mxu0 0
  %1983 = vmatprep.subr.bf16.mxu0 0
  %1984 = vmatpush1.bf16.msra.mxu0 0
  %1985 = vmatprep.subr.bf16.mxu0 0
  %1986 = vmatpush1.bf16.msra.mxu0 0
  %1987 = vmatprep.subr.bf16.mxu0 0
  %1988 = vmatpush1.bf16.msra.mxu0 0
  %1989 = vmatprep.subr.bf16.mxu0 0
  %1990 = vmatpush1.bf16.msra.mxu0 0
  %1991 = vmatprep.subr.bf16.mxu0 0
  %1992 = vmatpush1.bf16.msra.mxu0 0
  %1993 = vmatprep.subr.bf16.mxu0 0
  %1994 = vmatpush1.bf16.msra.mxu0 0
  %1995 = vmatprep.subr.bf16.mxu0 0
  %1996 = vmatpush1.bf16.msra.mxu0 0
  %1997 = vmatprep.subr.bf16.mxu0 0
  %1998 = vmatpush1.bf16.msra.mxu0 0
  %1999 = vmatprep.subr.bf16.mxu0 0
  %2000 = vmatpush1.bf16.msra.mxu0 0
  %2001 = vmatprep.mubr.bf16.mxu0 0
  %2002 = vmatmul.mubr.bf16.gmra.mrb[0].mxu0 %v1967
  %v2003 = vpop.f32.mrb[0].mxu0
  %v2004 = vadd.f32 0.0, %v2003
  %v2005 = vpop.f32.mrb[0].mxu0
  %v2006 = vpop.f32.mrb[0].mxu0
  %v2007 = vadd.f32 0.0, %v2006
  %v2008 = vpop.f32.mrb[0].mxu0
  %2009 = vdwg.mxu0
  %2014 = vrot.lane.b32.xlu0 %v1957, 24
  %v2015 = vpop.permute.xlu0 %2014
  %2016 = vrot.lane.b32.xlu0 %v1960, 24
  %v2017 = vpop.permute.xlu0 %2016
  %2018 = vrot.lane.b32.xlu0 %v2004, 24
  %v2019 = vpop.permute.xlu0 %2018
  %2020 = vrot.lane.b32.xlu0 %v2007, 24
  %v2021 = vpop.permute.xlu0 %2020
  %vm2026 = vcmask 228544
  %2027 = vst.msk [vmem:[#allocation2] sm:$0xff] %vm2026, %v2015
  %2028 = vst.msk [vmem:[#allocation2 + $0x8] sm:$0xff] %vm2026, %v2017
  %2029 = vst.msk [vmem:[#allocation2 + $0x10] sm:$0xff] %vm2026, %v2019
  %2030 = vst.msk [vmem:[#allocation2 + $0x18] sm:$0xff] %vm2026, %v2021
  %2031 = vrot.lane.b32.xlu0 %v201, 100
  %v2032 = vpop.permute.xlu0 %2031
  %2033 = vrot.lane.b32.xlu0 %v203, 68
  %v2034 = vpop.permute.xlu0 %2033
  %v2036 = vsel %vm208, %v2032, 0
  %v2039 = vsel %vm208, %v2034, 0
  %2041 = vmatprep.subr.bf16.mxu0 0
  %2042 = vmatpush1.bf16.xpose.msra.mxu0 %v2039
  %2043 = vmatprep.subr.bf16.mxu0 0
  %2044 = vmatpush1.bf16.xpose.msra.mxu0 0
  %2045 = vmatprep.subr.bf16.mxu0 0
  %2046 = vmatpush1.bf16.xpose.msra.mxu0 0
  %2047 = vmatprep.subr.bf16.mxu0 0
  %2048 = vmatpush1.bf16.xpose.msra.mxu0 0
  %2049 = vmatprep.subr.bf16.mxu0 0
  %2050 = vmatpush1.bf16.xpose.msra.mxu0 0
  %2051 = vmatprep.subr.bf16.mxu0 0
  %2052 = vmatpush1.bf16.xpose.msra.mxu0 0
  %2053 = vmatprep.subr.bf16.mxu0 0
  %2054 = vmatpush1.bf16.xpose.msra.mxu0 0
  %2055 = vmatprep.subr.bf16.mxu0 0
  %2056 = vmatpush1.bf16.xpose.msra.mxu0 0
  %2057 = vmatprep.subr.bf16.mxu0 0
  %2058 = vmatpush1.bf16.xpose.msra.mxu0 0
  %2059 = vmatprep.subr.bf16.mxu0 0
  %2060 = vmatpush1.bf16.xpose.msra.mxu0 0
  %2061 = vmatprep.subr.bf16.mxu0 0
  %2062 = vmatpush1.bf16.xpose.msra.mxu0 0
  %2063 = vmatprep.subr.bf16.mxu0 0
  %2064 = vmatpush1.bf16.xpose.msra.mxu0 0
  %2065 = vmatprep.subr.bf16.mxu0 0
  %2066 = vmatpush1.bf16.xpose.msra.mxu0 0
  %2067 = vmatprep.subr.bf16.mxu0 0
  %2068 = vmatpush1.bf16.xpose.msra.mxu0 0
  %2069 = vmatprep.subr.bf16.mxu0 0
  %2070 = vmatpush1.bf16.xpose.msra.mxu0 0
  %2071 = vmatprep.subr.bf16.mxu0 0
  %2072 = vmatpush1.bf16.xpose.msra.mxu0 0
  %2073 = vmatprep.mubr.bf16.mxu0 0
  %2074 = vmatmul.mubr.bf16.gmra.mrb[0].mxu0 %v2036
  %v2075 = vpop.f32.mrb[0].mxu0
  %v2076 = vadd.f32 0.0, %v2075
  %v2077 = vpop.f32.mrb[0].mxu0
  %v2078 = vpop.f32.mrb[0].mxu0
  %v2079 = vadd.f32 0.0, %v2078
  %v2080 = vpop.f32.mrb[0].mxu0
  %2081 = vdwg.mxu0
  %2082 = vrot.lane.b32.xlu0 %v202, 100
  %v2083 = vpop.permute.xlu0 %2082
  %2084 = vrot.lane.b32.xlu0 %v204, 68
  %v2085 = vpop.permute.xlu0 %2084
  %v2087 = vsel %vm208, %v2083, 0
  %v2090 = vsel %vm208, %v2085, 0
  %2092 = vmatprep.subr.bf16.mxu0 0
  %2093 = vmatpush1.bf16.xpose.msra.mxu0 %v2090
  %2094 = vmatprep.subr.bf16.mxu0 0
  %2095 = vmatpush1.bf16.xpose.msra.mxu0 0
  %2096 = vmatprep.subr.bf16.mxu0 0
  %2097 = vmatpush1.bf16.xpose.msra.mxu0 0
  %2098 = vmatprep.subr.bf16.mxu0 0
  %2099 = vmatpush1.bf16.xpose.msra.mxu0 0
  %2100 = vmatprep.subr.bf16.mxu0 0
  %2101 = vmatpush1.bf16.xpose.msra.mxu0 0
  %2102 = vmatprep.subr.bf16.mxu0 0
  %2103 = vmatpush1.bf16.xpose.msra.mxu0 0
  %2104 = vmatprep.subr.bf16.mxu0 0
  %2105 = vmatpush1.bf16.xpose.msra.mxu0 0
  %2106 = vmatprep.subr.bf16.mxu0 0
  %2107 = vmatpush1.bf16.xpose.msra.mxu0 0
  %2108 = vmatprep.subr.bf16.mxu0 0
  %2109 = vmatpush1.bf16.xpose.msra.mxu0 0
  %2110 = vmatprep.subr.bf16.mxu0 0
  %2111 = vmatpush1.bf16.xpose.msra.mxu0 0
  %2112 = vmatprep.subr.bf16.mxu0 0
  %2113 = vmatpush1.bf16.xpose.msra.mxu0 0
  %2114 = vmatprep.subr.bf16.mxu0 0
  %2115 = vmatpush1.bf16.xpose.msra.mxu0 0
  %2116 = vmatprep.subr.bf16.mxu0 0
  %2117 = vmatpush1.bf16.xpose.msra.mxu0 0
  %2118 = vmatprep.subr.bf16.mxu0 0
  %2119 = vmatpush1.bf16.xpose.msra.mxu0 0
  %2120 = vmatprep.subr.bf16.mxu0 0
  %2121 = vmatpush1.bf16.xpose.msra.mxu0 0
  %2122 = vmatprep.subr.bf16.mxu0 0
  %2123 = vmatpush1.bf16.xpose.msra.mxu0 0
  %2124 = vmatprep.mubr.bf16.mxu0 0
  %2125 = vmatmul.mubr.bf16.gmra.mrb[0].mxu0 %v2087
  %v2126 = vpop.f32.mrb[0].mxu0
  %v2127 = vadd.f32 0.0, %v2126
  %v2128 = vpop.f32.mrb[0].mxu0
  %v2129 = vpop.f32.mrb[0].mxu0
  %v2130 = vadd.f32 0.0, %v2129
  %v2131 = vpop.f32.mrb[0].mxu0
  %2132 = vdwg.mxu0
  %v2133 = vsel %vm306, %v2076, -inf
  %2134 = vmax.xlane.f32.xlu0 %v2133
  %v2135 = vpop.xlane.xlu0 %2134
  %v2136 = vsel %vm306, %v2079, -inf
  %2137 = vmax.xlane.f32.xlu0 %v2136
  %v2138 = vpop.xlane.xlu0 %2137
  %v2139 = vsel %vm306, %v2127, -inf
  %2140 = vmax.xlane.f32.xlu0 %v2139
  %v2141 = vpop.xlane.xlu0 %2140
  %v2142 = vsel %vm306, %v2130, -inf
  %2143 = vmax.xlane.f32.xlu0 %v2142
  %v2144 = vpop.xlane.xlu0 %2143
  %v2145 = vsub.f32 %v2076, %v2135
  %v2146 = vsub.f32 %v2079, %v2138
  %v2147 = vsub.f32 %v2127, %v2141
  %v2148 = vsub.f32 %v2130, %v2144
  %v2149 = vmul.f32 %v2145, 1.442695
  %v2150 = vpow.pop %v2149
  %v2151 = vmul.f32 %v2146, 1.442695
  %v2152 = vpow.pop %v2151
  %v2153 = vmul.f32 %v2147, 1.442695
  %v2154 = vpow.pop %v2153
  %v2155 = vmul.f32 %v2148, 1.442695
  %v2156 = vpow.pop %v2155
  %v2157 = vsel %vm306, %v2150, 0.0
  %2158 = vadd.xlane.f32.xlu0 %v2157
  %v2159 = vpop.xlane.xlu0 %2158
  %v2160 = vsel %vm306, %v2152, 0.0
  %2161 = vadd.xlane.f32.xlu0 %v2160
  %v2162 = vpop.xlane.xlu0 %2161
  %v2163 = vsel %vm306, %v2154, 0.0
  %2164 = vadd.xlane.f32.xlu0 %v2163
  %v2165 = vpop.xlane.xlu0 %2164
  %v2166 = vsel %vm306, %v2156, 0.0
  %2167 = vadd.xlane.f32.xlu0 %v2166
  %v2168 = vpop.xlane.xlu0 %2167
  %v2169 = vrcp.pop %v2159
  %v2170 = vrcp.pop %v2162
  %v2171 = vrcp.pop %v2165
  %v2172 = vrcp.pop %v2168
  %v2173 = vmul.f32 %v2150, %v2169
  %v2174 = vmul.f32 %v2152, %v2170
  %v2175 = vmul.f32 %v2154, %v2171
  %v2176 = vmul.f32 %v2156, %v2172
  %v2177 = vpack.c.bf16 %v2174, %v2173
  %v2178 = vpack.c.bf16 %v2176, %v2175
  %2179 = vrot.lane.b32.xlu0 %v203, 36
  %v2180 = vpop.permute.xlu0 %2179
  %v2183 = vsel %vm306, %v2177, 0
  %2185 = vmatprep.subr.bf16.mxu0 0
  %2186 = vmatpush1.bf16.msra.mxu0 %v2180
  %2187 = vmatprep.subr.bf16.mxu0 0
  %2188 = vmatpush1.bf16.msra.mxu0 0
  %2189 = vmatprep.subr.bf16.mxu0 0
  %2190 = vmatpush1.bf16.msra.mxu0 0
  %2191 = vmatprep.subr.bf16.mxu0 0
  %2192 = vmatpush1.bf16.msra.mxu0 0
  %2193 = vmatprep.subr.bf16.mxu0 0
  %2194 = vmatpush1.bf16.msra.mxu0 0
  %2195 = vmatprep.subr.bf16.mxu0 0
  %2196 = vmatpush1.bf16.msra.mxu0 0
  %2197 = vmatprep.subr.bf16.mxu0 0
  %2198 = vmatpush1.bf16.msra.mxu0 0
  %2199 = vmatprep.subr.bf16.mxu0 0
  %2200 = vmatpush1.bf16.msra.mxu0 0
  %2201 = vmatprep.subr.bf16.mxu0 0
  %2202 = vmatpush1.bf16.msra.mxu0 0
  %2203 = vmatprep.subr.bf16.mxu0 0
  %2204 = vmatpush1.bf16.msra.mxu0 0
  %2205 = vmatprep.subr.bf16.mxu0 0
  %2206 = vmatpush1.bf16.msra.mxu0 0
  %2207 = vmatprep.subr.bf16.mxu0 0
  %2208 = vmatpush1.bf16.msra.mxu0 0
  %2209 = vmatprep.subr.bf16.mxu0 0
  %2210 = vmatpush1.bf16.msra.mxu0 0
  %2211 = vmatprep.subr.bf16.mxu0 0
  %2212 = vmatpush1.bf16.msra.mxu0 0
  %2213 = vmatprep.subr.bf16.mxu0 0
  %2214 = vmatpush1.bf16.msra.mxu0 0
  %2215 = vmatprep.subr.bf16.mxu0 0
  %2216 = vmatpush1.bf16.msra.mxu0 0
  %2217 = vmatprep.mubr.bf16.mxu0 0
  %2218 = vmatmul.mubr.bf16.gmra.mrb[0].mxu0 %v2183
  %v2219 = vpop.f32.mrb[0].mxu0
  %v2220 = vadd.f32 0.0, %v2219
  %v2221 = vpop.f32.mrb[0].mxu0
  %v2222 = vpop.f32.mrb[0].mxu0
  %v2223 = vadd.f32 0.0, %v2222
  %v2224 = vpop.f32.mrb[0].mxu0
  %2225 = vdwg.mxu0
  %2226 = vrot.lane.b32.xlu0 %v204, 36
  %v2227 = vpop.permute.xlu0 %2226
  %v2230 = vsel %vm306, %v2178, 0
  %2232 = vmatprep.subr.bf16.mxu0 0
  %2233 = vmatpush1.bf16.msra.mxu0 %v2227
  %2234 = vmatprep.subr.bf16.mxu0 0
  %2235 = vmatpush1.bf16.msra.mxu0 0
  %2236 = vmatprep.subr.bf16.mxu0 0
  %2237 = vmatpush1.bf16.msra.mxu0 0
  %2238 = vmatprep.subr.bf16.mxu0 0
  %2239 = vmatpush1.bf16.msra.mxu0 0
  %2240 = vmatprep.subr.bf16.mxu0 0
  %2241 = vmatpush1.bf16.msra.mxu0 0
  %2242 = vmatprep.subr.bf16.mxu0 0
  %2243 = vmatpush1.bf16.msra.mxu0 0
  %2244 = vmatprep.subr.bf16.mxu0 0
  %2245 = vmatpush1.bf16.msra.mxu0 0
  %2246 = vmatprep.subr.bf16.mxu0 0
  %2247 = vmatpush1.bf16.msra.mxu0 0
  %2248 = vmatprep.subr.bf16.mxu0 0
  %2249 = vmatpush1.bf16.msra.mxu0 0
  %2250 = vmatprep.subr.bf16.mxu0 0
  %2251 = vmatpush1.bf16.msra.mxu0 0
  %2252 = vmatprep.subr.bf16.mxu0 0
  %2253 = vmatpush1.bf16.msra.mxu0 0
  %2254 = vmatprep.subr.bf16.mxu0 0
  %2255 = vmatpush1.bf16.msra.mxu0 0
  %2256 = vmatprep.subr.bf16.mxu0 0
  %2257 = vmatpush1.bf16.msra.mxu0 0
  %2258 = vmatprep.subr.bf16.mxu0 0
  %2259 = vmatpush1.bf16.msra.mxu0 0
  %2260 = vmatprep.subr.bf16.mxu0 0
  %2261 = vmatpush1.bf16.msra.mxu0 0
  %2262 = vmatprep.subr.bf16.mxu0 0
  %2263 = vmatpush1.bf16.msra.mxu0 0
  %2264 = vmatprep.mubr.bf16.mxu0 0
  %2265 = vmatmul.mubr.bf16.gmra.mrb[0].mxu0 %v2230
  %v2266 = vpop.f32.mrb[0].mxu0
  %v2267 = vadd.f32 0.0, %v2266
  %v2268 = vpop.f32.mrb[0].mxu0
  %v2269 = vpop.f32.mrb[0].mxu0
  %v2270 = vadd.f32 0.0, %v2269
  %v2271 = vpop.f32.mrb[0].mxu0
  %2272 = vdwg.mxu0
  %2277 = vrot.lane.b32.xlu0 %v2220, 28
  %v2278 = vpop.permute.xlu0 %2277
  %2279 = vrot.lane.b32.xlu0 %v2223, 28
  %v2280 = vpop.permute.xlu0 %2279
  %2281 = vrot.lane.b32.xlu0 %v2267, 28
  %v2282 = vpop.permute.xlu0 %2281
  %2283 = vrot.lane.b32.xlu0 %v2270, 28
  %v2284 = vpop.permute.xlu0 %2283
  %vm2289 = vcmask 261344
  %2290 = vst.msk [vmem:[#allocation2] sm:$0xff] %vm2289, %v2278
  %2291 = vst.msk [vmem:[#allocation2 + $0x8] sm:$0xff] %vm2289, %v2280
  %2292 = vst.msk [vmem:[#allocation2 + $0x10] sm:$0xff] %vm2289, %v2282
  %2293 = vst.msk [vmem:[#allocation2 + $0x18] sm:$0xff] %vm2289, %v2284
  %v2294 = vld [vmem:[#allocation2] sm:$0xff]
  %v2295 = vld [vmem:[#allocation2 + $0x8] sm:$0xff]
  %v2296 = vld [vmem:[#allocation2 + $0x10] sm:$0xff]
  %v2297 = vld [vmem:[#allocation2 + $0x18] sm:$0xff]
  %v2298 = vpack.c.bf16 %v2295, %v2294
  %v2299 = vpack.c.bf16 %v2297, %v2296
  %v2300 = vld [vmem:[%s4] sm:$0xf]
  %v2301 = vld [vmem:[%s4 + $0x4] sm:$0xf]
  %v2302 = vld [vmem:[%s4 + $0x8] sm:$0xf]
  %v2303 = vld [vmem:[%s4 + $0xc] sm:$0xf]
  %v2308 = vunpack.c.l.b16 %v2300
  %v2309 = vunpack.c.l.b16 %v2301
  %v2310 = vunpack.c.l.b16 %v2302
  %v2311 = vunpack.c.l.b16 %v2303
  %v2312 = vpack.c.b16 %v2309, %v2308
  %v2313 = vpack.c.b16 %v2311, %v2310
  %v2317 = vsel %vm50, %v2298, 0
  %v2320 = vsel %vm50, %v2299, 0
  %2322 = vmatprep.subr.bf16.mxu0 0
  %2323 = vmatpush1.bf16.msra.mxu0 %v2312
  %2324 = vmatprep.subr.bf16.mxu0 0
  %2325 = vmatpush1.bf16.msra.mxu0 %v2313
  %2326 = vmatprep.subr.bf16.mxu0 0
  %2327 = vmatpush1.bf16.msra.mxu0 0
  %2328 = vmatprep.subr.bf16.mxu0 0
  %2329 = vmatpush1.bf16.msra.mxu0 0
  %2330 = vmatprep.subr.bf16.mxu0 0
  %2331 = vmatpush1.bf16.msra.mxu0 0
  %2332 = vmatprep.subr.bf16.mxu0 0
  %2333 = vmatpush1.bf16.msra.mxu0 0
  %2334 = vmatprep.subr.bf16.mxu0 0
  %2335 = vmatpush1.bf16.msra.mxu0 0
  %2336 = vmatprep.subr.bf16.mxu0 0
  %2337 = vmatpush1.bf16.msra.mxu0 0
  %2338 = vmatprep.subr.bf16.mxu0 0
  %2339 = vmatpush1.bf16.msra.mxu0 0
  %2340 = vmatprep.subr.bf16.mxu0 0
  %2341 = vmatpush1.bf16.msra.mxu0 0
  %2342 = vmatprep.subr.bf16.mxu0 0
  %2343 = vmatpush1.bf16.msra.mxu0 0
  %2344 = vmatprep.subr.bf16.mxu0 0
  %2345 = vmatpush1.bf16.msra.mxu0 0
  %2346 = vmatprep.subr.bf16.mxu0 0
  %2347 = vmatpush1.bf16.msra.mxu0 0
  %2348 = vmatprep.subr.bf16.mxu0 0
  %2349 = vmatpush1.bf16.msra.mxu0 0
  %2350 = vmatprep.subr.bf16.mxu0 0
  %2351 = vmatpush1.bf16.msra.mxu0 0
  %2352 = vmatprep.subr.bf16.mxu0 0
  %2353 = vmatpush1.bf16.msra.mxu0 0
  %2354 = vmatprep.mubr.bf16.mxu0 0
  %2355 = vmatmul.mubr.bf16.gmra.mrb[0].mxu0 %v2317
  %v2356 = vpop.f32.mrb[0].mxu0
  %v2357 = vadd.f32 0.0, %v2356
  %v2358 = vpop.f32.mrb[0].mxu0
  %v2359 = vpop.f32.mrb[0].mxu0
  %v2360 = vadd.f32 0.0, %v2359
  %v2361 = vpop.f32.mrb[0].mxu0
  %2362 = vmatprep.mubr.bf16.mxu0 0
  %2363 = vmatmul.mubr.bf16.gmra.mrb[0].mxu0 %v2320
  %v2364 = vpop.f32.mrb[0].mxu0
  %v2365 = vadd.f32 0.0, %v2364
  %v2366 = vpop.f32.mrb[0].mxu0
  %v2367 = vpop.f32.mrb[0].mxu0
  %v2368 = vadd.f32 0.0, %v2367
  %v2369 = vpop.f32.mrb[0].mxu0
  %2370 = vdwg.mxu0
  %v2371 = vadd.f32 %v46, %v2357
  %v2372 = vadd.f32 %v47, %v2360
  %v2373 = vadd.f32 %v48, %v2365
  %v2374 = vadd.f32 %v49, %v2368
  %v2375 = vld [vmem:[%s5] sm:$0x1]
  %v2376 = vunpack.c.l.bf16 %v2375
  %v2377 = vlaneseq
  %v2378 = vshrl.u32 %v2377, 7
  %v2379 = vsub.s32 0, %v2378
  %v2380 = vrot.slane %v2376, %v2379
  %v2381 = vadd.f32 %v2371, %v2380
  %v2382 = vadd.f32 %v2372, %v2380
  %v2383 = vadd.f32 %v2373, %v2380
  %v2384 = vadd.f32 %v2374, %v2380
  %v2385 = vsel %vm50, %v2381, 0.0
  %2386 = vadd.xlane.f32.xlu0 %v2385
  %v2387 = vpop.xlane.xlu0 %2386
  %v2388 = vsel %vm50, %v2382, 0.0
  %2389 = vadd.xlane.f32.xlu0 %v2388
  %v2390 = vpop.xlane.xlu0 %2389
  %v2391 = vsel %vm50, %v2383, 0.0
  %2392 = vadd.xlane.f32.xlu0 %v2391
  %v2393 = vpop.xlane.xlu0 %2392
  %v2394 = vsel %vm50, %v2384, 0.0
  %2395 = vadd.xlane.f32.xlu0 %v2394
  %v2396 = vpop.xlane.xlu0 %2395
  %v2397 = vmul.f32 %v2387, %v63
  %v2398 = vmul.f32 %v2390, %v63
  %v2399 = vmul.f32 %v2393, %v63
  %v2400 = vmul.f32 %v2396, %v63
  %v2401 = vsub.f32 %v2381, %v2397
  %v2402 = vsub.f32 %v2382, %v2398
  %v2403 = vsub.f32 %v2383, %v2399
  %v2404 = vsub.f32 %v2384, %v2400
  %v2405 = vmul.f32 %v2401, %v2401
  %v2406 = vmul.f32 %v2402, %v2402
  %v2407 = vmul.f32 %v2403, %v2403
  %v2408 = vmul.f32 %v2404, %v2404
  %v2409 = vsel %vm50, %v2405, 0.0
  %2410 = vadd.xlane.f32.xlu0 %v2409
  %v2411 = vpop.xlane.xlu0 %2410
  %v2412 = vsel %vm50, %v2406, 0.0
  %2413 = vadd.xlane.f32.xlu0 %v2412
  %v2414 = vpop.xlane.xlu0 %2413
  %v2415 = vsel %vm50, %v2407, 0.0
  %2416 = vadd.xlane.f32.xlu0 %v2415
  %v2417 = vpop.xlane.xlu0 %2416
  %v2418 = vsel %vm50, %v2408, 0.0
  %2419 = vadd.xlane.f32.xlu0 %v2418
  %v2420 = vpop.xlane.xlu0 %2419
  %v2421 = vmul.f32 %v2411, %v63
  %v2422 = vmul.f32 %v2414, %v63
  %v2423 = vmul.f32 %v2417, %v63
  %v2424 = vmul.f32 %v2420, %v63
  %v2425 = vadd.f32 %v2421, 1e-05
  %v2426 = vadd.f32 %v2422, 1e-05
  %v2427 = vadd.f32 %v2423, 1e-05
  %v2428 = vadd.f32 %v2424, 1e-05
  %v2429 = vrsqrt.pop %v2425
  %v2430 = vrsqrt.pop %v2426
  %v2431 = vrsqrt.pop %v2427
  %v2432 = vrsqrt.pop %v2428
  %v2433 = vmul.f32 %v2401, %v2429
  %v2434 = vmul.f32 %v2402, %v2430
  %v2435 = vmul.f32 %v2403, %v2431
  %v2436 = vmul.f32 %v2404, %v2432
  %v2437 = vld [vmem:[%s6] sm:$0x1]
  %v2438 = vunpack.c.l.bf16 %v2437
  %v2439 = vlaneseq
  %v2440 = vshrl.u32 %v2439, 7
  %v2441 = vsub.s32 0, %v2440
  %v2442 = vrot.slane %v2438, %v2441
  %v2443 = vmul.f32 %v2433, %v2442
  %v2444 = vmul.f32 %v2434, %v2442
  %v2445 = vmul.f32 %v2435, %v2442
  %v2446 = vmul.f32 %v2436, %v2442
  %v2447 = vld [vmem:[%s7] sm:$0x1]
  %v2448 = vunpack.c.l.bf16 %v2447
  %v2449 = vlaneseq
  %v2450 = vshrl.u32 %v2449, 7
  %v2451 = vsub.s32 0, %v2450
  %v2452 = vrot.slane %v2448, %v2451
  %v2453 = vadd.f32 %v2443, %v2452
  %v2454 = vadd.f32 %v2444, %v2452
  %v2455 = vadd.f32 %v2445, %v2452
  %v2456 = vadd.f32 %v2446, %v2452
  %v2457 = vpack.c.bf16 %v2454, %v2453
  %v2458 = vpack.c.bf16 %v2456, %v2455
  %v2459 = vld [vmem:[%s8] sm:$0xf]
  %v2460 = vld [vmem:[%s8 + $0x4] sm:$0xf]
  %v2461 = vld [vmem:[%s8 + $0x8] sm:$0xf]
  %v2462 = vld [vmem:[%s8 + $0xc] sm:$0xf]
  %v2463 = vld [vmem:[%s9] sm:$0x1]
  %v2464 = vunpack.c.l.bf16 %v2463
  %v2465 = vlaneseq
  %v2466 = vshrl.u32 %v2465, 7
  %v2467 = vsub.s32 0, %v2466
  %v2468 = vrot.slane %v2464, %v2467
  %v2473 = vunpack.c.l.b16 %v2459
  %v2474 = vunpack.c.l.b16 %v2460
  %v2475 = vunpack.c.l.b16 %v2461
  %v2476 = vunpack.c.l.b16 %v2462
  %v2477 = vpack.c.b16 %v2474, %v2473
  %v2478 = vpack.c.b16 %v2476, %v2475
  %v2482 = vsel %vm50, %v2457, 0
  %v2485 = vsel %vm50, %v2458, 0
  %2487 = vmatprep.subr.bf16.mxu0 0
  %2488 = vmatpush1.bf16.msra.mxu0 %v2477
  %2489 = vmatprep.subr.bf16.mxu0 0
  %2490 = vmatpush1.bf16.msra.mxu0 %v2478
  %2491 = vmatprep.subr.bf16.mxu0 0
  %2492 = vmatpush1.bf16.msra.mxu0 0
  %2493 = vmatprep.subr.bf16.mxu0 0
  %2494 = vmatpush1.bf16.msra.mxu0 0
  %2495 = vmatprep.subr.bf16.mxu0 0
  %2496 = vmatpush1.bf16.msra.mxu0 0
  %2497 = vmatprep.subr.bf16.mxu0 0
  %2498 = vmatpush1.bf16.msra.mxu0 0
  %2499 = vmatprep.subr.bf16.mxu0 0
  %2500 = vmatpush1.bf16.msra.mxu0 0
  %2501 = vmatprep.subr.bf16.mxu0 0
  %2502 = vmatpush1.bf16.msra.mxu0 0
  %2503 = vmatprep.subr.bf16.mxu0 0
  %2504 = vmatpush1.bf16.msra.mxu0 0
  %2505 = vmatprep.subr.bf16.mxu0 0
  %2506 = vmatpush1.bf16.msra.mxu0 0
  %2507 = vmatprep.subr.bf16.mxu0 0
  %2508 = vmatpush1.bf16.msra.mxu0 0
  %2509 = vmatprep.subr.bf16.mxu0 0
  %2510 = vmatpush1.bf16.msra.mxu0 0
  %2511 = vmatprep.subr.bf16.mxu0 0
  %2512 = vmatpush1.bf16.msra.mxu0 0
  %2513 = vmatprep.subr.bf16.mxu0 0
  %2514 = vmatpush1.bf16.msra.mxu0 0
  %2515 = vmatprep.subr.bf16.mxu0 0
  %2516 = vmatpush1.bf16.msra.mxu0 0
  %2517 = vmatprep.subr.bf16.mxu0 0
  %2518 = vmatpush1.bf16.msra.mxu0 0
  %2519 = vmatprep.mubr.bf16.mxu0 0
  %2520 = vmatmul.mubr.bf16.gmra.mrb[0].mxu0 %v2482
  %v2521 = vpop.f32.mrb[0].mxu0
  %v2522 = vadd.f32 %v2468, %v2521
  %v2523 = vpop.f32.mrb[0].mxu0
  %v2524 = vpop.f32.mrb[0].mxu0
  %v2525 = vadd.f32 %v2468, %v2524
  %v2526 = vpop.f32.mrb[0].mxu0
  %2527 = vmatprep.mubr.bf16.mxu0 0
  %2528 = vmatmul.mubr.bf16.gmra.mrb[0].mxu0 %v2485
  %v2529 = vpop.f32.mrb[0].mxu0
  %v2530 = vadd.f32 %v2468, %v2529
  %v2531 = vpop.f32.mrb[0].mxu0
  %v2532 = vpop.f32.mrb[0].mxu0
  %v2533 = vadd.f32 %v2468, %v2532
  %v2534 = vpop.f32.mrb[0].mxu0
  %2535 = vdwg.mxu0
  %v2536 = vmax.f32 %v2522, 0.0
  %v2537 = vmax.f32 %v2525, 0.0
  %v2538 = vmax.f32 %v2530, 0.0
  %v2539 = vmax.f32 %v2533, 0.0
  %v2540 = vpack.c.bf16 %v2537, %v2536
  %v2541 = vpack.c.bf16 %v2539, %v2538
  %v2542 = vld [vmem:[%s10] sm:$0xf]
  %v2543 = vld [vmem:[%s10 + $0x4] sm:$0xf]
  %v2544 = vld [vmem:[%s10 + $0x8] sm:$0xf]
  %v2545 = vld [vmem:[%s10 + $0xc] sm:$0xf]
  %v2546 = vld [vmem:[%s10 + $0x10] sm:$0xf]
  %v2547 = vld [vmem:[%s10 + $0x14] sm:$0xf]
  %v2548 = vld [vmem:[%s10 + $0x18] sm:$0xf]
  %v2549 = vld [vmem:[%s10 + $0x1c] sm:$0xf]
  %v2550 = vld [vmem:[%s11] sm:$0x1]
  %v2551 = vunpack.c.l.bf16 %v2550
  %v2552 = vlaneseq
  %v2553 = vshrl.u32 %v2552, 7
  %v2554 = vsub.s32 0, %v2553
  %v2555 = vrot.slane %v2551, %v2554
  %v2564 = vunpack.c.l.b16 %v2542
  %v2565 = vunpack.c.l.b16 %v2543
  %v2566 = vunpack.c.l.b16 %v2544
  %v2567 = vunpack.c.l.b16 %v2545
  %v2568 = vunpack.c.l.b16 %v2546
  %v2569 = vunpack.c.l.b16 %v2547
  %v2570 = vunpack.c.l.b16 %v2548
  %v2571 = vunpack.c.l.b16 %v2549
  %v2572 = vpack.c.b16 %v2565, %v2564
  %v2573 = vpack.c.b16 %v2567, %v2566
  %v2574 = vpack.c.b16 %v2569, %v2568
  %v2575 = vpack.c.b16 %v2571, %v2570
  %vm2580 = vcmask 523264
  %v2582 = vsel %vm2580, %v2540, 0
  %v2585 = vsel %vm2580, %v2541, 0
  %2587 = vmatprep.subr.bf16.mxu0 0
  %2588 = vmatpush1.bf16.msra.mxu0 %v2572
  %2589 = vmatprep.subr.bf16.mxu0 0
  %2590 = vmatpush1.bf16.msra.mxu0 %v2573
  %2591 = vmatprep.subr.bf16.mxu0 0
  %2592 = vmatpush1.bf16.msra.mxu0 %v2574
  %2593 = vmatprep.subr.bf16.mxu0 0
  %2594 = vmatpush1.bf16.msra.mxu0 %v2575
  %2595 = vmatprep.subr.bf16.mxu0 0
  %2596 = vmatpush1.bf16.msra.mxu0 0
  %2597 = vmatprep.subr.bf16.mxu0 0
  %2598 = vmatpush1.bf16.msra.mxu0 0
  %2599 = vmatprep.subr.bf16.mxu0 0
  %2600 = vmatpush1.bf16.msra.mxu0 0
  %2601 = vmatprep.subr.bf16.mxu0 0
  %2602 = vmatpush1.bf16.msra.mxu0 0
  %2603 = vmatprep.subr.bf16.mxu0 0
  %2604 = vmatpush1.bf16.msra.mxu0 0
  %2605 = vmatprep.subr.bf16.mxu0 0
  %2606 = vmatpush1.bf16.msra.mxu0 0
  %2607 = vmatprep.subr.bf16.mxu0 0
  %2608 = vmatpush1.bf16.msra.mxu0 0
  %2609 = vmatprep.subr.bf16.mxu0 0
  %2610 = vmatpush1.bf16.msra.mxu0 0
  %2611 = vmatprep.subr.bf16.mxu0 0
  %2612 = vmatpush1.bf16.msra.mxu0 0
  %2613 = vmatprep.subr.bf16.mxu0 0
  %2614 = vmatpush1.bf16.msra.mxu0 0
  %2615 = vmatprep.subr.bf16.mxu0 0
  %2616 = vmatpush1.bf16.msra.mxu0 0
  %2617 = vmatprep.subr.bf16.mxu0 0
  %2618 = vmatpush1.bf16.msra.mxu0 0
  %2619 = vmatprep.mubr.bf16.mxu0 0
  %2620 = vmatmul.mubr.bf16.gmra.mrb[0].mxu0 %v2582
  %v2621 = vpop.f32.mrb[0].mxu0
  %v2622 = vadd.f32 %v2555, %v2621
  %v2623 = vpop.f32.mrb[0].mxu0
  %v2624 = vpop.f32.mrb[0].mxu0
  %v2625 = vadd.f32 %v2555, %v2624
  %v2626 = vpop.f32.mrb[0].mxu0
  %2627 = vmatprep.mubr.bf16.mxu0 0
  %2628 = vmatmul.mubr.bf16.gmra.mrb[0].mxu0 %v2585
  %v2629 = vpop.f32.mrb[0].mxu0
  %v2630 = vadd.f32 %v2555, %v2629
  %v2631 = vpop.f32.mrb[0].mxu0
  %v2632 = vpop.f32.mrb[0].mxu0
  %v2633 = vadd.f32 %v2555, %v2632
  %v2634 = vpop.f32.mrb[0].mxu0
  %2635 = vdwg.mxu0
  %v2636 = vadd.f32 %v2381, %v2622
  %v2637 = vadd.f32 %v2382, %v2625
  %v2638 = vadd.f32 %v2383, %v2630
  %v2639 = vadd.f32 %v2384, %v2633
  %v2640 = vpack.c.bf16 %v2637, %v2636
  %v2641 = vpack.c.bf16 %v2639, %v2638
  %v2644 = vunpack.c.l.b16 %v2640
  %v2645 = vunpack.c.h.b16 %v2640
  %v2646 = vunpack.c.l.b16 %v2641
  %v2647 = vunpack.c.h.b16 %v2641
  %v2648 = vpack.c.b16 %v2644, %v2644
  %v2649 = vpack.c.b16 %v2645, %v2645
  %v2650 = vpack.c.b16 %v2646, %v2646
  %v2651 = vpack.c.b16 %v2647, %v2647
  %vm2656 = vcmask 257024
  %2657 = vst.msk [vmem:[%s12] sm:$0xf] %vm2656, %v2648
  %2658 = vst.msk [vmem:[%s12 + $0x4] sm:$0xf] %vm2656, %v2649
  %2659 = vst.msk [vmem:[%s12 + $0x8] sm:$0xf] %vm2656, %v2650
  %2660 = vst.msk [vmem:[%s12 + $0xc] sm:$0xf] %vm2656, %v2651
  // Predicated region
  $region50: #{transformer_mapper_forward.4} parent=0 // pred_check
    _
  $region51: #{transformer_mapper_forward.4} parent=0 // pred_check_branch
    %2662 = sbr.rel (0) target = $region53
  $region52: #{transformer_mapper_forward.4} parent=0 // pred_region
    _
  $region53: #{transformer_mapper_forward.4} parent=0 // pred_fallthru
    _
  // Predicated region
  $region54: #{transformer_mapper_forward.4} parent=0 // pred_check
    _
  $region55: #{transformer_mapper_forward.4} parent=0 // pred_check_branch
    %2664 = sbr.rel (0) target = $region57
  $region56: #{transformer_mapper_forward.4} parent=0 // pred_region
    _
  $region57: #{transformer_mapper_forward.4} parent=0 // pred_fallthru
    _

</llo_original>
